<compile_context>
chip_gen: v6e
topology: v6e:2x2x1
jax: 0.10.0
libtpu: 0.0.40
codegen_flags: <defaults>
</compile_context>

<pallas_src>
import jax
import jax.numpy as jnp
from jax.experimental import pallas as pl
from jax.experimental.pallas import tpu as pltpu


# ----------------------------------------------------------------------------
# BlockSpec helpers
# ----------------------------------------------------------------------------
def _batch_spec(shape):
    """One batch element per grid step; batch dim squeezed, rest full."""
    nd = len(shape)
    return pl.BlockSpec((None,) + tuple(shape[1:]),
                        lambda b, _nd=nd: (b,) + (0,) * (_nd - 1))


def _bcast_spec(shape):
    """Same full block at every grid step (weights / biases stay resident)."""
    nd = len(shape)
    return pl.BlockSpec(tuple(shape), lambda b, _nd=nd: (0,) * _nd)


_PARALLEL = pltpu.CompilerParams(dimension_semantics=("parallel",))


# ----------------------------------------------------------------------------
# multi-head graph attention conv layer (MEGAN-style), heads fused into
# single matmuls; optional residual + node-mask epilogue.
# ----------------------------------------------------------------------------
def make_conv_kernel(*, use_residual, apply_activation, apply_node_mask):
    def kernel(*refs):
        x_ref, adj_ref, mask_ref = refs[:3]
        i = 3
        res_ref = nm_ref = None
        if use_residual:
            res_ref = refs[i]; i += 1
        if apply_node_mask:
            nm_ref = refs[i]; i += 1
        wcx_ref, wca_ref, bc_ref, wa_ref, ba_ref, wo_ref, bo_ref = refs[i:i + 7]
        o_ref = refs[i + 7]

        x = x_ref[...]                       # (N, Din)  f32
        adj = adj_ref[...]                   # (N, N, E) f32
        mask = mask_ref[...]                 # (N, N)    f32
        N, E = adj.shape[0], adj.shape[-1]
        nh, A = wa_ref.shape

        def mm(a, w_ref):                    # bf16 MXU operands, f32 accumulate
            return jnp.dot(a.astype(jnp.bfloat16), w_ref[...],
                           preferred_element_type=jnp.float32)

        # fused-head projections: one matmul for all heads
        xw = mm(x, wcx_ref)                              # (N, nh*A)
        adjw = mm(adj.reshape(N * N, E), wca_ref)        # (N*N, nh*A)
        adjw = adjw.reshape(N, N, nh * A)
        # conv[i, j] uses the neighbour row j ("x_rows" in the torch code)
        conv = jnp.tanh(xw[None, :, :] + adjw + bc_ref[...])   # (N, N, nh*A)

        # soft mask derived in-kernel from the hard mask (halves mask DMA)
        smask = (1.0 - mask) * (-1e9)

        wa = wa_ref[...]                     # (nh, A) f32
        ba = ba_ref[...]                     # (nh, 1) f32
        heads = []
        for h in range(nh):                  # attention part: VPU/EUP work only
            conv_h = conv[:, :, h * A:(h + 1) * A]                   # (N, N, A)
            att = jnp.sum(conv_h * wa[h:h + 1, :], axis=-1)          # (N, N)
            att = att + ba[h:h + 1, 0:1]
            att = jax.nn.softmax(att + smask, axis=-1) * mask
            heads.append(jnp.sum(att[:, :, None] * conv_h, axis=1))  # (N, A)
        head_cat = jnp.concatenate(heads, axis=-1)                   # (N, nh*A)

        out = mm(head_cat, wo_ref) + bo_ref[...]                     # (N, Dout)
        if use_residual:                       # conv w/o activation, then relu(out+prev)
            out = jnp.maximum(out + res_ref[...], 0.0)
        elif apply_activation:
            out = jnp.maximum(out, 0.0)
        if apply_node_mask:                    # final-layer node-mask epilogue
            out = out * nm_ref[...]            # (N, 1)
        o_ref[...] = out

    return kernel


def graph_conv_pallas(x, adj, mask, p, *, res=None, node_mask=None,
                      apply_activation=True):
    B, N, _ = x.shape
    Dout = p["wo"].shape[-1]
    use_residual = res is not None
    apply_node_mask = node_mask is not None

    data = [x, adj, mask]
    if use_residual:
        data.append(res)
    if apply_node_mask:
        data.append(node_mask)
    weights = [p["wcx"], p["wca"], p["bc"], p["wa"], p["ba"], p["wo"], p["bo"]]

    in_specs = ([_batch_spec(a.shape) for a in data]
                + [_bcast_spec(w.shape) for w in weights])
    kern = make_conv_kernel(use_residual=use_residual,
                            apply_activation=apply_activation,
                            apply_node_mask=apply_node_mask)
    return pl.pallas_call(
        kern,
        out_shape=jax.ShapeDtypeStruct((B, N, Dout), jnp.float32),
        grid=(B,),
        in_specs=in_specs,
        out_specs=_batch_spec((B, N, Dout)),
        compiler_params=_PARALLEL,
    )(*data, *weights)


# ----------------------------------------------------------------------------
# fused action head: atom FC stack + bond FC stack (with pairwise features),
# padding to max_feat, mask assembly and masked softmax -- all in one kernel,
# one batch element per grid step.
# ----------------------------------------------------------------------------
def make_action_kernel(*, n_fc, n_atom, n_bond, max_feat, base, use_sigmoid):
    assert n_fc >= 2  # TODO(synk): n_fc == 1 (shared first/last bond FC) not handled

    def kernel(*refs):
        ns_ref, adj_ref, nam_ref, bam_ref, nm_ref, aam_ref = refs[:6]
        i = 6
        fa = refs[i:i + 2 * n_fc]; i += 2 * n_fc          # fc_atom (W, b) pairs
        wab_ref, bab_ref = refs[i:i + 2]; i += 2          # fc_atom_bond
        w1x_ref, w1a_ref, b1_ref = refs[i:i + 3]; i += 3  # fc_bond[0] (split)
        n_mid = n_fc - 2
        mid = refs[i:i + 2 * n_mid]; i += 2 * n_mid       # fc_bond[1:-1]
        wbl_ref, bbl_ref = refs[i:i + 2]; i += 2          # fc_bond[-1]
        act_ref, msk_ref = refs[i:i + 2]

        def mm(a, w_ref):
            return jnp.dot(a.astype(jnp.bfloat16), w_ref[...],
                           preferred_element_type=jnp.float32)

        ns = ns_ref[...]                    # (N, H), already node-masked
        adj = adj_ref[...]                  # (N, N, E)
        N, E = adj.shape[0], adj.shape[-1]
        f32 = jnp.float32

        # ---- atom action head ----
        h = ns
        for li in range(n_fc - 1):
            h = jnp.maximum(mm(h, fa[2 * li]) + fa[2 * li + 1][...], 0.0)
        atom_actions = (mm(h, fa[2 * (n_fc - 1)])
                        + fa[2 * (n_fc - 1) + 1][...])               # (N, n_atom)

        # ---- bond action head ----
        afb = jnp.maximum(mm(ns, wab_ref) + bab_ref[...], 0.0)       # (N, bond_atom_dim)
        afw = mm(afb, w1x_ref)                                       # (N, Hb)
        adjw = mm(adj.reshape(N * N, E), w1a_ref)                    # (N*N, Hb)
        adjw = adjw.reshape(N, N, afw.shape[-1])
        # cat([af[j]+af[i], adj[i,j]]) @ W1  ==  afw[j] + afw[i] + adjw[i,j]
        bond_h = jnp.maximum(afw[None, :, :] + afw[:, None, :] + adjw
                             + b1_ref[...], 0.0)                     # (N, N, Hb)
        bond_h = bond_h.reshape(N * N, afw.shape[-1])
        for li in range(n_mid):
            bond_h = jnp.maximum(mm(bond_h, mid[2 * li]) + mid[2 * li + 1][...], 0.0)
        bond_actions = mm(bond_h, wbl_ref) + bbl_ref[...]            # (N*N, n_bond)

        # ---- pad to max_feat and stack bond rows (N*N) + atom rows (N) ----
        def pad_cols(a, n_valid):
            if n_valid == max_feat:
                return a
            return jnp.concatenate(
                [a, jnp.zeros((a.shape[0], max_feat - n_valid), f32)], axis=-1)

        logits = jnp.concatenate([pad_cols(bond_actions, n_bond),
                                  pad_cols(atom_actions, n_atom)], axis=0)

        bond_mask = (nam_ref[...][..., None] * bam_ref[...]).reshape(N * N, n_bond)
        atom_mask = nm_ref[...] * aam_ref[...]                       # (N, n_atom)
        mask = jnp.concatenate([pad_cols(bond_mask, n_bond),
                                pad_cols(atom_mask, n_atom)], axis=0)

        # ---- masked softmax / sigmoid over the whole per-batch action row ----
        if use_sigmoid:
            out = jax.nn.sigmoid(logits) * mask
        else:
            z = base * (logits + (1.0 - mask) * (-1e9))
            m = jnp.max(jnp.max(z, axis=-1, keepdims=True), axis=0, keepdims=True)
            e = jnp.exp(z - m)                                       # max-stable
            s = jnp.sum(jnp.sum(e, axis=-1, keepdims=True), axis=0, keepdims=True)
            out = e * pl.reciprocal(s, approx=False) * mask

        act_ref[...] = out                                           # ((N+1)*N, max_feat)
        msk_ref[...] = mask

    return kernel


def action_head_pallas(node_state, adj, node_adj_mask, bond_action_mask,
                       node_mask, atom_action_mask, params, *, base, use_sigmoid):
    B, N, _ = node_state.shape
    n_fc = len(params["fc_atom"])
    n_atom = params["fc_atom"][-1][0].shape[-1]
    n_bond = params["fc_bond_last"][0].shape[-1]
    max_feat = max(n_atom, n_bond)

    data = [node_state, adj, node_adj_mask, bond_action_mask,
            node_mask, atom_action_mask]
    weights = []
    for w_, b_ in params["fc_atom"]:
        weights += [w_, b_]
    weights += list(params["fc_atom_bond"])
    weights += list(params["fc_bond_first"])
    for w_, b_ in params["fc_bond_mid"]:
        weights += [w_, b_]
    weights += list(params["fc_bond_last"])

    in_specs = ([_batch_spec(a.shape) for a in data]
                + [_bcast_spec(w.shape) for w in weights])
    slab_shape = (B, (N + 1) * N, max_feat)
    out_shape = (jax.ShapeDtypeStruct(slab_shape, jnp.float32),
                 jax.ShapeDtypeStruct(slab_shape, jnp.float32))
    out_specs = (_batch_spec(slab_shape), _batch_spec(slab_shape))

    kern = make_action_kernel(n_fc=n_fc, n_atom=n_atom, n_bond=n_bond,
                              max_feat=max_feat, base=base, use_sigmoid=use_sigmoid)
    return pl.pallas_call(
        kern, out_shape=out_shape, grid=(B,),
        in_specs=in_specs, out_specs=out_specs,
        compiler_params=_PARALLEL,
    )(*data, *weights)


# ----------------------------------------------------------------------------
# parameter init (deterministic, synthetic).  MXU weight matrices are stored
# in bfloat16 (operand precision); biases / attention vectors stay f32.
# ----------------------------------------------------------------------------
def init_params(key, *, hidden_dim, bond_emb_dim, n_atom_actions, n_bond_actions,
                n_fc=2, n_conv=2, bond_atom_dim=16, atom_fc_hidden=16,
                bond_fc_hidden=16, dec_hidden_dim=0, att_heads=2, att_dim=16):
    if dec_hidden_dim == 0:
        dec_hidden_dim = hidden_dim
    keys = iter(jax.random.split(key, 256))
    bf16 = jnp.bfloat16

    def w(shape, scale=0.1, dtype=jnp.float32):
        return (scale * jax.random.normal(next(keys), shape)).astype(dtype)

    params = {}
    conv_params = []
    for i in range(n_conv):
        in_d = hidden_dim if i == 0 else dec_hidden_dim
        out_d = hidden_dim if i == n_conv - 1 else dec_hidden_dim
        conv_params.append(dict(
            wcx=w((in_d, att_heads * att_dim), dtype=bf16),     # heads fused
            wca=w((bond_emb_dim, att_heads * att_dim), dtype=bf16),
            bc=w((1, att_heads * att_dim)),
            wa=w((att_heads, att_dim)),
            ba=w((att_heads, 1)),
            wo=w((att_heads * att_dim, out_d), dtype=bf16),
            bo=w((1, out_d)),
        ))
    params["conv"] = conv_params

    fc_atom = []
    for i in range(n_fc):
        in_d = hidden_dim if i == 0 else atom_fc_hidden
        out_d = atom_fc_hidden if i < n_fc - 1 else n_atom_actions
        fc_atom.append((w((in_d, out_d), dtype=bf16), w((1, out_d))))
    params["fc_atom"] = fc_atom

    params["fc_atom_bond"] = (w((hidden_dim, bond_atom_dim), dtype=bf16),
                              w((1, bond_atom_dim)))

    fc_bond = []
    for i in range(n_fc):
        in_d = bond_atom_dim + bond_emb_dim if i == 0 else bond_fc_hidden
        out_d = bond_fc_hidden if i < n_fc - 1 else n_bond_actions
        fc_bond.append((w((in_d, out_d), dtype=bf16), w((1, out_d))))
    w0, b0 = fc_bond[0]
    params["fc_bond_first"] = (w0[:bond_atom_dim], w0[bond_atom_dim:], b0)
    params["fc_bond_mid"] = fc_bond[1:-1]
    params["fc_bond_last"] = fc_bond[-1]
    return params


# ----------------------------------------------------------------------------
# MeganDecoder forward
# ----------------------------------------------------------------------------
def megan_decoder_forward(params, x):
    base = float(x.get("base", 1.0))
    use_sigmoid = bool(x.get("sigmoid", False))

    node_features = x["node_features"]            # (B, N, H)
    adj = x["adj"]                                # (B, N, N, E)
    conv_mask = x["conv_mask"][..., 0]            # (B, N, N); soft mask derived in-kernel
    node_mask = x["node_mask"]                    # (B, N, 1)
    B = node_features.shape[0]

    # --- graph conv stack (residual every second layer, dec_residual=True) ---
    n_conv = len(params["conv"])
    atom_feats = node_features
    prev = atom_feats
    for i, cp in enumerate(params["conv"]):
        residual = (i % 2 == 1)
        last = (i == n_conv - 1)
        atom_feats = graph_conv_pallas(
            atom_feats, adj, conv_mask, cp,
            res=prev if residual else None,                 # no zero-residual DMA
            node_mask=node_mask if last else None,          # node-mask fused into last layer
            apply_activation=not residual)
        if residual:
            prev = atom_feats
    node_state = atom_feats                                 # already node-masked

    # --- fused atom + bond action heads + padding + masked softmax ---
    actions, mask = action_head_pallas(
        node_state, adj, x["node_adj_mask"][..., 0], x["bond_action_mask"],
        node_mask, x["atom_action_mask"], params,
        base=base, use_sigmoid=use_sigmoid)

    # (B, (N+1)*N, max_feat) -> (B, T) is a free, contiguous metadata reshape
    return node_state, actions.reshape(B, -1), mask.reshape(B, -1)


# ----------------------------------------------------------------------------
# main
# ----------------------------------------------------------------------------
if __name__ == "__main__":
    B, N = 2, 16
    hidden_dim, bond_emb_dim = 32, 8
    n_atom_actions, n_bond_actions = 6, 5

    key = jax.random.PRNGKey(0)
    kp, kx, ka, kbm, kam = jax.random.split(key, 5)

    params = init_params(kp, hidden_dim=hidden_dim, bond_emb_dim=bond_emb_dim,
                         n_atom_actions=n_atom_actions, n_bond_actions=n_bond_actions,
                         n_fc=2, n_conv=2, bond_atom_dim=16, atom_fc_hidden=16,
                         bond_fc_hidden=16, att_heads=2, att_dim=16)

    node_features = jax.random.normal(kx, (B, N, hidden_dim), jnp.float32)
    adj = 0.5 * jax.random.normal(ka, (B, N, N, bond_emb_dim), jnp.float32)

    counts = jnp.array([12, 9])
    node_mask = (jnp.arange(N)[None, :] < counts[:, None]).astype(jnp.float32)[..., None]
    pair_mask = node_mask[:, :, None, :] * node_mask[:, None, :, :]     # (B,N,N,1)

    bond_action_mask = jax.random.bernoulli(kbm, 0.7, (B, N, N, n_bond_actions)
                                            ).astype(jnp.float32) * pair_mask
    atom_action_mask = jax.random.bernoulli(kam, 0.7, (B, N, n_atom_actions)
                                            ).astype(jnp.float32) * node_mask

    x = dict(
        node_features=node_features,
        adj=adj * pair_mask,
        conv_mask=pair_mask,
        # conv_soft_mask kept for interface fidelity; the kernel derives the
        # (1-mask)*-1e9 soft mask from conv_mask directly (they are consistent).
        conv_soft_mask=(1.0 - pair_mask) * (-1e9),
        node_mask=node_mask,
        node_adj_mask=pair_mask,
        bond_action_mask=bond_action_mask,
        atom_action_mask=atom_action_mask,
    )

    node_state, all_actions, all_actions_mask = megan_decoder_forward(params, x)
    jax.block_until_ready((node_state, all_actions, all_actions_mask))

    assert node_state.shape == (B, N, hidden_dim)
    T = (N + 1) * N * max(n_atom_actions, n_bond_actions)
    assert all_actions.shape == (B, T) and all_actions_mask.shape == (B, T)
    assert bool(jnp.all(jnp.isfinite(all_actions)))
    assert bool(jnp.all(all_actions >= 0.0))
    print("KERNEL_OK")
</pallas_src>

<mosaic_0001>
module attributes {stable_mosaic.version = 11 : i64} {
  func.func @kernel(%arg0: i32, %arg1: memref<1x16x32xf32, #tpu.memory_space<vmem>>, %arg2: memref<1x16x16x8xf32, #tpu.memory_space<vmem>>, %arg3: memref<1x16x16xf32, #tpu.memory_space<vmem>>, %arg4: memref<32x32xbf16, #tpu.memory_space<vmem>>, %arg5: memref<8x32xbf16, #tpu.memory_space<vmem>>, %arg6: memref<1x32xf32, #tpu.memory_space<vmem>>, %arg7: memref<2x16xf32, #tpu.memory_space<vmem>>, %arg8: memref<2x1xf32, #tpu.memory_space<vmem>>, %arg9: memref<32x32xbf16, #tpu.memory_space<vmem>>, %arg10: memref<1x32xf32, #tpu.memory_space<vmem>>, %arg11: memref<1x16x32xf32, #tpu.memory_space<vmem>>) attributes {dimension_semantics = [#tpu.dimension_semantics<parallel>], iteration_bounds = array<i64: 2>, scalar_prefetch = 0 : i64, scratch_operands = 0 : i64, tpu.core_type = #tpu.core_type<tc>, window_params = [{transform_indices = @transform_0, window_bounds = array<i64: 1, 16, 32>}, {transform_indices = @transform_1, window_bounds = array<i64: 1, 16, 16, 8>}, {transform_indices = @transform_2, window_bounds = array<i64: 1, 16, 16>}, {pipeline_mode = #tpu.pipeline_mode<synchronous>, transform_indices = @transform_3, window_bounds = array<i64: 32, 32>}, {pipeline_mode = #tpu.pipeline_mode<synchronous>, transform_indices = @transform_4, window_bounds = array<i64: 8, 32>}, {pipeline_mode = #tpu.pipeline_mode<synchronous>, transform_indices = @transform_5, window_bounds = array<i64: 1, 32>}, {pipeline_mode = #tpu.pipeline_mode<synchronous>, transform_indices = @transform_6, window_bounds = array<i64: 2, 16>}, {pipeline_mode = #tpu.pipeline_mode<synchronous>, transform_indices = @transform_7, window_bounds = array<i64: 2, 1>}, {pipeline_mode = #tpu.pipeline_mode<synchronous>, transform_indices = @transform_8, window_bounds = array<i64: 32, 32>}, {pipeline_mode = #tpu.pipeline_mode<synchronous>, transform_indices = @transform_9, window_bounds = array<i64: 1, 32>}, {transform_indices = @transform_10, window_bounds = array<i64: 1, 16, 32>}]} {
    %c0 = arith.constant 0 : index
    %c0_0 = arith.constant 0 : index
    %c0_1 = arith.constant 0 : index
    %0 = vector.load %arg1[%c0, %c0_0, %c0_1] : memref<1x16x32xf32, #tpu.memory_space<vmem>>, vector<1x16x32xf32>
    %1 = vector.shape_cast %0 : vector<1x16x32xf32> to vector<16x32xf32>
    %c0_2 = arith.constant 0 : index
    %c0_3 = arith.constant 0 : index
    %c0_4 = arith.constant 0 : index
    %c0_5 = arith.constant 0 : index
    %2 = vector.load %arg2[%c0_2, %c0_3, %c0_4, %c0_5] : memref<1x16x16x8xf32, #tpu.memory_space<vmem>>, vector<1x16x16x8xf32>
    %3 = vector.shape_cast %2 : vector<1x16x16x8xf32> to vector<16x16x8xf32>
    %c0_6 = arith.constant 0 : index
    %c0_7 = arith.constant 0 : index
    %c0_8 = arith.constant 0 : index
    %4 = vector.load %arg3[%c0_6, %c0_7, %c0_8] : memref<1x16x16xf32, #tpu.memory_space<vmem>>, vector<1x16x16xf32>
    %5 = vector.shape_cast %4 : vector<1x16x16xf32> to vector<16x16xf32>
    %6 = arith.truncf %1 : vector<16x32xf32> to vector<16x32xbf16>
    %c0_9 = arith.constant 0 : index
    %c0_10 = arith.constant 0 : index
    %7 = vector.load %arg4[%c0_9, %c0_10] : memref<32x32xbf16, #tpu.memory_space<vmem>>, vector<32x32xbf16>
    %cst = arith.constant dense<0.000000e+00> : vector<16x32xf32>
    %8 = tpu.matmul %6, %7, %cst {dimension_numbers = #tpu.dot_dimension_numbers<[1], [0], [0], [1], [0, 0, 1, 1], [], []>} : vector<16x32xbf16>, vector<32x32xbf16>, vector<16x32xf32> -> vector<16x32xf32>
    %9 = vector.shape_cast %3 : vector<16x16x8xf32> to vector<256x8xf32>
    %10 = arith.truncf %9 : vector<256x8xf32> to vector<256x8xbf16>
    %c0_11 = arith.constant 0 : index
    %c0_12 = arith.constant 0 : index
    %11 = vector.load %arg5[%c0_11, %c0_12] : memref<8x32xbf16, #tpu.memory_space<vmem>>, vector<8x32xbf16>
    %cst_13 = arith.constant dense<0.000000e+00> : vector<256x32xf32>
    %12 = tpu.matmul %10, %11, %cst_13 {dimension_numbers = #tpu.dot_dimension_numbers<[1], [0], [0], [1], [0, 0, 1, 1], [], []>} : vector<256x8xbf16>, vector<8x32xbf16>, vector<256x32xf32> -> vector<256x32xf32>
    %13 = vector.shape_cast %12 : vector<256x32xf32> to vector<16x16x32xf32>
    %14 = vector.shape_cast %8 : vector<16x32xf32> to vector<1x16x32xf32>
    %15 = vector.broadcast %14 : vector<1x16x32xf32> to vector<16x16x32xf32>
    %16 = arith.addf %15, %13 : vector<16x16x32xf32>
    %c0_14 = arith.constant 0 : index
    %c0_15 = arith.constant 0 : index
    %17 = vector.load %arg6[%c0_14, %c0_15] : memref<1x32xf32, #tpu.memory_space<vmem>>, vector<1x32xf32>
    %18 = vector.shape_cast %17 : vector<1x32xf32> to vector<1x1x32xf32>
    %19 = vector.broadcast %18 : vector<1x1x32xf32> to vector<16x16x32xf32>
    %20 = arith.addf %16, %19 : vector<16x16x32xf32>
    %21 = math.tanh %20 : vector<16x16x32xf32>
    %cst_16 = arith.constant 1.000000e+00 : f32
    %22 = vector.broadcast %cst_16 : f32 to vector<16x16xf32>
    %23 = arith.subf %22, %5 : vector<16x16xf32>
    %cst_17 = arith.constant -1.000000e+09 : f32
    %24 = vector.broadcast %cst_17 : f32 to vector<16x16xf32>
    %25 = arith.mulf %23, %24 : vector<16x16xf32>
    %c0_18 = arith.constant 0 : index
    %c0_19 = arith.constant 0 : index
    %26 = vector.load %arg7[%c0_18, %c0_19] : memref<2x16xf32, #tpu.memory_space<vmem>>, vector<2x16xf32>
    %c0_20 = arith.constant 0 : index
    %c0_21 = arith.constant 0 : index
    %27 = vector.load %arg8[%c0_20, %c0_21] : memref<2x1xf32, #tpu.memory_space<vmem>>, vector<2x1xf32>
    %28 = vector.extract_strided_slice %21 {offsets = [0, 0, 0], sizes = [16, 16, 16], strides = [1, 1, 1]} : vector<16x16x32xf32> to vector<16x16x16xf32>
    %29 = vector.extract_strided_slice %26 {offsets = [0, 0], sizes = [1, 16], strides = [1, 1]} : vector<2x16xf32> to vector<1x16xf32>
    %30 = vector.shape_cast %29 : vector<1x16xf32> to vector<1x1x16xf32>
    %31 = vector.broadcast %30 : vector<1x1x16xf32> to vector<16x16x16xf32>
    %32 = arith.mulf %28, %31 : vector<16x16x16xf32>
    %cst_22 = arith.constant dense<0.000000e+00> : vector<16x16xf32>
    %33 = vector.multi_reduction <add>, %32, %cst_22 [2] : vector<16x16x16xf32> to vector<16x16xf32>
    %34 = vector.extract_strided_slice %27 {offsets = [0, 0], sizes = [1, 1], strides = [1, 1]} : vector<2x1xf32> to vector<1x1xf32>
    %35 = vector.broadcast %34 : vector<1x1xf32> to vector<16x16xf32>
    %36 = arith.addf %33, %35 : vector<16x16xf32>
    %37 = arith.addf %36, %25 : vector<16x16xf32>
    %cst_23 = arith.constant dense<0xFF800000> : vector<16xf32>
    %38 = vector.multi_reduction <maximumf>, %37, %cst_23 [1] : vector<16x16xf32> to vector<16xf32>
    %cst_24 = arith.constant 0xFF800000 : f32
    %39 = vector.broadcast %cst_24 : f32 to vector<16xf32>
    %40 = arith.maximumf %39, %38 : vector<16xf32>
    %41 = vector.shape_cast %40 : vector<16xf32> to vector<16x1xf32>
    %42 = vector.broadcast %41 : vector<16x1xf32> to vector<16x16xf32>
    %43 = arith.subf %37, %42 : vector<16x16xf32>
    %44 = math.exp %43 : vector<16x16xf32>
    %cst_25 = arith.constant dense<0.000000e+00> : vector<16xf32>
    %45 = vector.multi_reduction <add>, %44, %cst_25 [1] : vector<16x16xf32> to vector<16xf32>
    %46 = vector.shape_cast %45 : vector<16xf32> to vector<16x1xf32>
    %47 = vector.broadcast %46 : vector<16x1xf32> to vector<16x16xf32>
    %48 = arith.divf %44, %47 : vector<16x16xf32>
    %49 = arith.mulf %48, %5 : vector<16x16xf32>
    %50 = vector.shape_cast %49 : vector<16x16xf32> to vector<16x16x1xf32>
    %51 = vector.broadcast %50 : vector<16x16x1xf32> to vector<16x16x16xf32>
    %52 = arith.mulf %51, %28 : vector<16x16x16xf32>
    %cst_26 = arith.constant dense<0.000000e+00> : vector<16x16xf32>
    %53 = vector.multi_reduction <add>, %52, %cst_26 [1] : vector<16x16x16xf32> to vector<16x16xf32>
    %54 = vector.extract_strided_slice %21 {offsets = [0, 0, 16], sizes = [16, 16, 16], strides = [1, 1, 1]} : vector<16x16x32xf32> to vector<16x16x16xf32>
    %55 = vector.extract_strided_slice %26 {offsets = [1, 0], sizes = [1, 16], strides = [1, 1]} : vector<2x16xf32> to vector<1x16xf32>
    %56 = vector.shape_cast %55 : vector<1x16xf32> to vector<1x1x16xf32>
    %57 = vector.broadcast %56 : vector<1x1x16xf32> to vector<16x16x16xf32>
    %58 = arith.mulf %54, %57 : vector<16x16x16xf32>
    %cst_27 = arith.constant dense<0.000000e+00> : vector<16x16xf32>
    %59 = vector.multi_reduction <add>, %58, %cst_27 [2] : vector<16x16x16xf32> to vector<16x16xf32>
    %60 = vector.extract_strided_slice %27 {offsets = [1, 0], sizes = [1, 1], strides = [1, 1]} : vector<2x1xf32> to vector<1x1xf32>
    %61 = vector.broadcast %60 : vector<1x1xf32> to vector<16x16xf32>
    %62 = arith.addf %59, %61 : vector<16x16xf32>
    %63 = arith.addf %62, %25 : vector<16x16xf32>
    %cst_28 = arith.constant dense<0xFF800000> : vector<16xf32>
    %64 = vector.multi_reduction <maximumf>, %63, %cst_28 [1] : vector<16x16xf32> to vector<16xf32>
    %cst_29 = arith.constant 0xFF800000 : f32
    %65 = vector.broadcast %cst_29 : f32 to vector<16xf32>
    %66 = arith.maximumf %65, %64 : vector<16xf32>
    %67 = vector.shape_cast %66 : vector<16xf32> to vector<16x1xf32>
    %68 = vector.broadcast %67 : vector<16x1xf32> to vector<16x16xf32>
    %69 = arith.subf %63, %68 : vector<16x16xf32>
    %70 = math.exp %69 : vector<16x16xf32>
    %cst_30 = arith.constant dense<0.000000e+00> : vector<16xf32>
    %71 = vector.multi_reduction <add>, %70, %cst_30 [1] : vector<16x16xf32> to vector<16xf32>
    %72 = vector.shape_cast %71 : vector<16xf32> to vector<16x1xf32>
    %73 = vector.broadcast %72 : vector<16x1xf32> to vector<16x16xf32>
    %74 = arith.divf %70, %73 : vector<16x16xf32>
    %75 = arith.mulf %74, %5 : vector<16x16xf32>
    %76 = vector.shape_cast %75 : vector<16x16xf32> to vector<16x16x1xf32>
    %77 = vector.broadcast %76 : vector<16x16x1xf32> to vector<16x16x16xf32>
    %78 = arith.mulf %77, %54 : vector<16x16x16xf32>
    %cst_31 = arith.constant dense<0.000000e+00> : vector<16x16xf32>
    %79 = vector.multi_reduction <add>, %78, %cst_31 [1] : vector<16x16x16xf32> to vector<16x16xf32>
    %80 = tpu.concatenate %53, %79 in 1 : vector<16x16xf32>, vector<16x16xf32> -> vector<16x32xf32>
    %81 = arith.truncf %80 : vector<16x32xf32> to vector<16x32xbf16>
    %c0_32 = arith.constant 0 : index
    %c0_33 = arith.constant 0 : index
    %82 = vector.load %arg9[%c0_32, %c0_33] : memref<32x32xbf16, #tpu.memory_space<vmem>>, vector<32x32xbf16>
    %cst_34 = arith.constant dense<0.000000e+00> : vector<16x32xf32>
    %83 = tpu.matmul %81, %82, %cst_34 {dimension_numbers = #tpu.dot_dimension_numbers<[1], [0], [0], [1], [0, 0, 1, 1], [], []>} : vector<16x32xbf16>, vector<32x32xbf16>, vector<16x32xf32> -> vector<16x32xf32>
    %c0_35 = arith.constant 0 : index
    %c0_36 = arith.constant 0 : index
    %84 = vector.load %arg10[%c0_35, %c0_36] : memref<1x32xf32, #tpu.memory_space<vmem>>, vector<1x32xf32>
    %85 = vector.broadcast %84 : vector<1x32xf32> to vector<16x32xf32>
    %86 = arith.addf %83, %85 : vector<16x32xf32>
    %cst_37 = arith.constant 0.000000e+00 : f32
    %87 = vector.broadcast %cst_37 : f32 to vector<16x32xf32>
    %88 = arith.maximumf %86, %87 : vector<16x32xf32>
    %c0_38 = arith.constant 0 : index
    %c0_39 = arith.constant 0 : index
    %c0_40 = arith.constant 0 : index
    %89 = vector.load %arg11[%c0_38, %c0_39, %c0_40] : memref<1x16x32xf32, #tpu.memory_space<vmem>>, vector<1x16x32xf32>
    %90 = vector.shape_cast %89 : vector<1x16x32xf32> to vector<16x32xf32>
    %91 = vector.shape_cast %88 : vector<16x32xf32> to vector<1x16x32xf32>
    tpu.vector_store %arg11[%c0_38, %c0_39, %c0_40], %91 {strides = array<i32>} : memref<1x16x32xf32, #tpu.memory_space<vmem>>, vector<1x16x32xf32>,
    return
  }
  func.func @transform_0(%arg0: i32) -> (i32, i32, i32) {
    %c0_i32 = arith.constant 0 : i32
    %c0_i32_0 = arith.constant 0 : i32
    %c0_i32_1 = arith.constant 0 : i32
    return %arg0, %c0_i32, %c0_i32_0 : i32, i32, i32
  }
  func.func @transform_1(%arg0: i32) -> (i32, i32, i32, i32) {
    %c0_i32 = arith.constant 0 : i32
    %c0_i32_0 = arith.constant 0 : i32
    %c0_i32_1 = arith.constant 0 : i32
    %c0_i32_2 = arith.constant 0 : i32
    return %arg0, %c0_i32, %c0_i32_0, %c0_i32_1 : i32, i32, i32, i32
  }
  func.func @transform_2(%arg0: i32) -> (i32, i32, i32) {
    %c0_i32 = arith.constant 0 : i32
    %c0_i32_0 = arith.constant 0 : i32
    %c0_i32_1 = arith.constant 0 : i32
    return %arg0, %c0_i32, %c0_i32_0 : i32, i32, i32
  }
  func.func @transform_3(%arg0: i32) -> (i32, i32) {
    %c0_i32 = arith.constant 0 : i32
    %c0_i32_0 = arith.constant 0 : i32
    %c0_i32_1 = arith.constant 0 : i32
    return %c0_i32, %c0_i32_0 : i32, i32
  }
  func.func @transform_4(%arg0: i32) -> (i32, i32) {
    %c0_i32 = arith.constant 0 : i32
    %c0_i32_0 = arith.constant 0 : i32
    %c0_i32_1 = arith.constant 0 : i32
    return %c0_i32, %c0_i32_0 : i32, i32
  }
  func.func @transform_5(%arg0: i32) -> (i32, i32) {
    %c0_i32 = arith.constant 0 : i32
    %c0_i32_0 = arith.constant 0 : i32
    %c0_i32_1 = arith.constant 0 : i32
    return %c0_i32, %c0_i32_0 : i32, i32
  }
  func.func @transform_6(%arg0: i32) -> (i32, i32) {
    %c0_i32 = arith.constant 0 : i32
    %c0_i32_0 = arith.constant 0 : i32
    %c0_i32_1 = arith.constant 0 : i32
    return %c0_i32, %c0_i32_0 : i32, i32
  }
  func.func @transform_7(%arg0: i32) -> (i32, i32) {
    %c0_i32 = arith.constant 0 : i32
    %c0_i32_0 = arith.constant 0 : i32
    %c0_i32_1 = arith.constant 0 : i32
    return %c0_i32, %c0_i32_0 : i32, i32
  }
  func.func @transform_8(%arg0: i32) -> (i32, i32) {
    %c0_i32 = arith.constant 0 : i32
    %c0_i32_0 = arith.constant 0 : i32
    %c0_i32_1 = arith.constant 0 : i32
    return %c0_i32, %c0_i32_0 : i32, i32
  }
  func.func @transform_9(%arg0: i32) -> (i32, i32) {
    %c0_i32 = arith.constant 0 : i32
    %c0_i32_0 = arith.constant 0 : i32
    %c0_i32_1 = arith.constant 0 : i32
    return %c0_i32, %c0_i32_0 : i32, i32
  }
  func.func @transform_10(%arg0: i32) -> (i32, i32, i32) {
    %c0_i32 = arith.constant 0 : i32
    %c0_i32_0 = arith.constant 0 : i32
    %c0_i32_1 = arith.constant 0 : i32
    return %arg0, %c0_i32, %c0_i32_0 : i32, i32, i32
  }
}

</mosaic_0001>

<llo_original>
// kernel: tpu_custom_call.1
$region0: #{tpu_custom_call.1}
  #allocation0 [shape = 'u32[]', space=smem, size = 0x4, offset = 0x4, fixed_abs, tag = 'smem constant byte address 0x4 - core index']
  #allocation1 [shape = 'u32[144,128]{1,0:T(1,128)}', space=vmem, size = 0x12000, scoped, tag = 'internal scratch']
  %s0 = inlined_call_operand.vmem [shape: f32[2,16,32], index: 0, kind: input, shape index: {}]
  %s1 = inlined_call_operand.vmem [shape: f32[2,16,16,8], index: 1, kind: input, shape index: {}]
  %s2 = inlined_call_operand.vmem [shape: f32[2,16,16], index: 2, kind: input, shape index: {}]
  %s3 = inlined_call_operand.vmem [shape: bf16[32,32], index: 3, kind: input, shape index: {}]
  %s4 = inlined_call_operand.vmem [shape: bf16[8,32], index: 4, kind: input, shape index: {}]
  %s5 = inlined_call_operand.vmem [shape: f32[1,32], index: 5, kind: input, shape index: {}]
  %s6 = inlined_call_operand.vmem [shape: f32[2,16], index: 6, kind: input, shape index: {}]
  %s7 = inlined_call_operand.vmem [shape: f32[2,1], index: 7, kind: input, shape index: {}]
  %s8 = inlined_call_operand.vmem [shape: bf16[32,32], index: 8, kind: input, shape index: {}]
  %s9 = inlined_call_operand.vmem [shape: f32[1,32], index: 9, kind: input, shape index: {}]
  %s10 = inlined_call_operand.hbm [shape: f32[2,16,32], index: 10, kind: output, shape index: {}]
  %s11 = sld [smem:[#allocation0]]
  $region73: #{tpu_custom_call.1} parent=0
    _
  %s13 = ssub.s32 1, %s11
  %s14 = scalar_select 0, %s13, %s11
  $region1: #{tpu_custom_call.1} parent=0
    #allocation2 [shape = 'u8[16384]{0}', space=vmem, size = 0x4000, scoped, tag = 'output window, operand 0']
    #allocation3 [shape = 's32[2]{0}', space=sflag, size = 0x8, scoped, tag = 'scoped memory for tpu_custom_call.1']
    %15 = vsyncpa [#allocation3], 0
    %s16 = scalar_lea.sflag [#allocation3], 1
    %17 = vsyncpa %s16, 0
    loop: start=0, step=1, limit=4
    $region2: #{tpu_custom_call.1} parent=1 // loop_pre_header
      _
    $region3: #{tpu_custom_call.1} parent=1 // loop_header
      %s19 = sphi 0, %s23
      %p20 = scmp.ge.s32.totalorder %s19, 4
      %s29 = sphi 0, %s31
      %s32 = sphi 0, %s29
      %s33 = sphi 0, %s32
      %s49 = sphi 0, %s33
      %s55 = sphi 0, %s57
      %s58 = sphi 0, %s55
      %s59 = sphi 0, %s58
      %s75 = sphi 0, %s59
      %s81 = sphi 0, %s83
      %s84 = sphi 0, %s81
      %s85 = sphi 0, %s84
      %s101 = sphi 0, %s85
      %s105 = sphi 0, %s105
      %s107 = sphi 0, %s105
      %s108 = sphi 0, %s107
      %s122 = sphi 0, %s108
      %s126 = sphi 0, %s126
      %s128 = sphi 0, %s126
      %s129 = sphi 0, %s128
      %s143 = sphi 0, %s129
      %s147 = sphi 0, %s147
      %s149 = sphi 0, %s147
      %s150 = sphi 0, %s149
      %s164 = sphi 0, %s150
      %s168 = sphi 0, %s168
      %s170 = sphi 0, %s168
      %s171 = sphi 0, %s170
      %s185 = sphi 0, %s171
      %s189 = sphi 0, %s189
      %s191 = sphi 0, %s189
      %s192 = sphi 0, %s191
      %s206 = sphi 0, %s192
      %s210 = sphi 0, %s210
      %s212 = sphi 0, %s210
      %s213 = sphi 0, %s212
      %s227 = sphi 0, %s213
      %s231 = sphi 0, %s231
      %s233 = sphi 0, %s231
      %s234 = sphi 0, %s233
      %s248 = sphi 0, %s234
      %s254 = sphi 0, %s256
      %s257 = sphi 0, %s254
      %s258 = sphi 0, %s257
      %s274 = sphi 0, %s258
    $region4: #{tpu_custom_call.1} parent=1 // loop_header_branch
      %22 = sbr.rel (%p20) target = $region8
    $region5: #{tpu_custom_call.1} parent=1 // loop_body
      %s24 = ssub.s32 %s19, 1
      %s25 = ssub.s32 %s19, 2
      %s26 = sadd.s32 %s19, 1
      %s27 = ssub.s32 %s19, %s26
      %p28 = scmp.eq.s32.totalorder %s27, 0
      %s30 = sadd.s32 %s29, 1
      %s31 = scalar_select %p28, %s29, %s30
      %p34 = pneg %p28
      %p35 = scmp.eq.s32.totalorder %s19, 1
      %p36 = por %p34, %p35
      %p37 = scmp.ne.s32.totalorder %s29, %s32
      %p38 = scmp.eq.s32.totalorder %s19, 0
      %p39 = por %p37, %p38
      %p40 = scmp.ne.s32.totalorder %s29, %s32
      %p41 = scmp.eq.s32.totalorder %s24, 1
      %p42 = por %p40, %p41
      %p43 = scmp.ne.s32.totalorder %s32, %s33
      %p44 = scmp.eq.s32.totalorder %s24, 0
      %p45 = por %p43, %p44
      %p46 = scmp.ne.s32.totalorder %s32, %s33
      %p47 = scmp.eq.s32.totalorder %s25, 1
      %p48 = por %p46, %p47
      %p50 = scmp.ne.s32.totalorder %s33, %s49
      %p51 = scmp.eq.s32.totalorder %s25, 0
      %p52 = por %p50, %p51
      %s53 = ssub.s32 %s19, %s26
      %p54 = scmp.eq.s32.totalorder %s53, 0
      %s56 = sadd.s32 %s55, 1
      %s57 = scalar_select %p54, %s55, %s56
      %p60 = pneg %p54
      %p61 = scmp.eq.s32.totalorder %s19, 1
      %p62 = por %p60, %p61
      %p63 = scmp.ne.s32.totalorder %s55, %s58
      %p64 = scmp.eq.s32.totalorder %s19, 0
      %p65 = por %p63, %p64
      %p66 = scmp.ne.s32.totalorder %s55, %s58
      %p67 = scmp.eq.s32.totalorder %s24, 1
      %p68 = por %p66, %p67
      %p69 = scmp.ne.s32.totalorder %s58, %s59
      %p70 = scmp.eq.s32.totalorder %s24, 0
      %p71 = por %p69, %p70
      %p72 = scmp.ne.s32.totalorder %s58, %s59
      %p73 = scmp.eq.s32.totalorder %s25, 1
      %p74 = por %p72, %p73
      %p76 = scmp.ne.s32.totalorder %s59, %s75
      %p77 = scmp.eq.s32.totalorder %s25, 0
      %p78 = por %p76, %p77
      %s79 = ssub.s32 %s19, %s26
      %p80 = scmp.eq.s32.totalorder %s79, 0
      %s82 = sadd.s32 %s81, 1
      %s83 = scalar_select %p80, %s81, %s82
      %p86 = pneg %p80
      %p87 = scmp.eq.s32.totalorder %s19, 1
      %p88 = por %p86, %p87
      %p89 = scmp.ne.s32.totalorder %s81, %s84
      %p90 = scmp.eq.s32.totalorder %s19, 0
      %p91 = por %p89, %p90
      %p92 = scmp.ne.s32.totalorder %s81, %s84
      %p93 = scmp.eq.s32.totalorder %s24, 1
      %p94 = por %p92, %p93
      %p95 = scmp.ne.s32.totalorder %s84, %s85
      %p96 = scmp.eq.s32.totalorder %s24, 0
      %p97 = por %p95, %p96
      %p98 = scmp.ne.s32.totalorder %s84, %s85
      %p99 = scmp.eq.s32.totalorder %s25, 1
      %p100 = por %p98, %p99
      %p102 = scmp.ne.s32.totalorder %s85, %s101
      %p103 = scmp.eq.s32.totalorder %s25, 0
      %p104 = por %p102, %p103
      %s106 = sadd.s32 %s105, 1
      %p109 = scmp.eq.s32.totalorder %s19, 1
      %p110 = scmp.ne.s32.totalorder %s105, %s107
      %p111 = scmp.eq.s32.totalorder %s19, 0
      %p112 = por %p110, %p111
      %p113 = scmp.ne.s32.totalorder %s105, %s107
      %p114 = scmp.eq.s32.totalorder %s24, 1
      %p115 = por %p113, %p114
      %p116 = scmp.ne.s32.totalorder %s107, %s108
      %p117 = scmp.eq.s32.totalorder %s24, 0
      %p118 = por %p116, %p117
      %p119 = scmp.ne.s32.totalorder %s107, %s108
      %p120 = scmp.eq.s32.totalorder %s25, 1
      %p121 = por %p119, %p120
      %p123 = scmp.ne.s32.totalorder %s108, %s122
      %p124 = scmp.eq.s32.totalorder %s25, 0
      %p125 = por %p123, %p124
      %s127 = sadd.s32 %s126, 1
      %p130 = scmp.eq.s32.totalorder %s19, 1
      %p131 = scmp.ne.s32.totalorder %s126, %s128
      %p132 = scmp.eq.s32.totalorder %s19, 0
      %p133 = por %p131, %p132
      %p134 = scmp.ne.s32.totalorder %s126, %s128
      %p135 = scmp.eq.s32.totalorder %s24, 1
      %p136 = por %p134, %p135
      %p137 = scmp.ne.s32.totalorder %s128, %s129
      %p138 = scmp.eq.s32.totalorder %s24, 0
      %p139 = por %p137, %p138
      %p140 = scmp.ne.s32.totalorder %s128, %s129
      %p141 = scmp.eq.s32.totalorder %s25, 1
      %p142 = por %p140, %p141
      %p144 = scmp.ne.s32.totalorder %s129, %s143
      %p145 = scmp.eq.s32.totalorder %s25, 0
      %p146 = por %p144, %p145
      %s148 = sadd.s32 %s147, 1
      %p151 = scmp.eq.s32.totalorder %s19, 1
      %p152 = scmp.ne.s32.totalorder %s147, %s149
      %p153 = scmp.eq.s32.totalorder %s19, 0
      %p154 = por %p152, %p153
      %p155 = scmp.ne.s32.totalorder %s147, %s149
      %p156 = scmp.eq.s32.totalorder %s24, 1
      %p157 = por %p155, %p156
      %p158 = scmp.ne.s32.totalorder %s149, %s150
      %p159 = scmp.eq.s32.totalorder %s24, 0
      %p160 = por %p158, %p159
      %p161 = scmp.ne.s32.totalorder %s149, %s150
      %p162 = scmp.eq.s32.totalorder %s25, 1
      %p163 = por %p161, %p162
      %p165 = scmp.ne.s32.totalorder %s150, %s164
      %p166 = scmp.eq.s32.totalorder %s25, 0
      %p167 = por %p165, %p166
      %s169 = sadd.s32 %s168, 1
      %p172 = scmp.eq.s32.totalorder %s19, 1
      %p173 = scmp.ne.s32.totalorder %s168, %s170
      %p174 = scmp.eq.s32.totalorder %s19, 0
      %p175 = por %p173, %p174
      %p176 = scmp.ne.s32.totalorder %s168, %s170
      %p177 = scmp.eq.s32.totalorder %s24, 1
      %p178 = por %p176, %p177
      %p179 = scmp.ne.s32.totalorder %s170, %s171
      %p180 = scmp.eq.s32.totalorder %s24, 0
      %p181 = por %p179, %p180
      %p182 = scmp.ne.s32.totalorder %s170, %s171
      %p183 = scmp.eq.s32.totalorder %s25, 1
      %p184 = por %p182, %p183
      %p186 = scmp.ne.s32.totalorder %s171, %s185
      %p187 = scmp.eq.s32.totalorder %s25, 0
      %p188 = por %p186, %p187
      %s190 = sadd.s32 %s189, 1
      %p193 = scmp.eq.s32.totalorder %s19, 1
      %p194 = scmp.ne.s32.totalorder %s189, %s191
      %p195 = scmp.eq.s32.totalorder %s19, 0
      %p196 = por %p194, %p195
      %p197 = scmp.ne.s32.totalorder %s189, %s191
      %p198 = scmp.eq.s32.totalorder %s24, 1
      %p199 = por %p197, %p198
      %p200 = scmp.ne.s32.totalorder %s191, %s192
      %p201 = scmp.eq.s32.totalorder %s24, 0
      %p202 = por %p200, %p201
      %p203 = scmp.ne.s32.totalorder %s191, %s192
      %p204 = scmp.eq.s32.totalorder %s25, 1
      %p205 = por %p203, %p204
      %p207 = scmp.ne.s32.totalorder %s192, %s206
      %p208 = scmp.eq.s32.totalorder %s25, 0
      %p209 = por %p207, %p208
      %s211 = sadd.s32 %s210, 1
      %p214 = scmp.eq.s32.totalorder %s19, 1
      %p215 = scmp.ne.s32.totalorder %s210, %s212
      %p216 = scmp.eq.s32.totalorder %s19, 0
      %p217 = por %p215, %p216
      %p218 = scmp.ne.s32.totalorder %s210, %s212
      %p219 = scmp.eq.s32.totalorder %s24, 1
      %p220 = por %p218, %p219
      %p221 = scmp.ne.s32.totalorder %s212, %s213
      %p222 = scmp.eq.s32.totalorder %s24, 0
      %p223 = por %p221, %p222
      %p224 = scmp.ne.s32.totalorder %s212, %s213
      %p225 = scmp.eq.s32.totalorder %s25, 1
      %p226 = por %p224, %p225
      %p228 = scmp.ne.s32.totalorder %s213, %s227
      %p229 = scmp.eq.s32.totalorder %s25, 0
      %p230 = por %p228, %p229
      %s232 = sadd.s32 %s231, 1
      %p235 = scmp.eq.s32.totalorder %s19, 1
      %p236 = scmp.ne.s32.totalorder %s231, %s233
      %p237 = scmp.eq.s32.totalorder %s19, 0
      %p238 = por %p236, %p237
      %p239 = scmp.ne.s32.totalorder %s231, %s233
      %p240 = scmp.eq.s32.totalorder %s24, 1
      %p241 = por %p239, %p240
      %p242 = scmp.ne.s32.totalorder %s233, %s234
      %p243 = scmp.eq.s32.totalorder %s24, 0
      %p244 = por %p242, %p243
      %p245 = scmp.ne.s32.totalorder %s233, %s234
      %p246 = scmp.eq.s32.totalorder %s25, 1
      %p247 = por %p245, %p246
      %p249 = scmp.ne.s32.totalorder %s234, %s248
      %p250 = scmp.eq.s32.totalorder %s25, 0
      %p251 = por %p249, %p250
      %s252 = ssub.s32 %s19, %s26
      %p253 = scmp.eq.s32.totalorder %s252, 0
      %s255 = sadd.s32 %s254, 1
      %s256 = scalar_select %p253, %s254, %s255
      %p259 = pneg %p253
      %p260 = scmp.eq.s32.totalorder %s19, 1
      %p261 = por %p259, %p260
      %p262 = scmp.ne.s32.totalorder %s254, %s257
      %p263 = scmp.eq.s32.totalorder %s19, 0
      %p264 = por %p262, %p263
      %p265 = scmp.ne.s32.totalorder %s254, %s257
      %p266 = scmp.eq.s32.totalorder %s24, 1
      %p267 = por %p265, %p266
      %p268 = scmp.ne.s32.totalorder %s257, %s258
      %p269 = scmp.eq.s32.totalorder %s24, 0
      %p270 = por %p268, %p269
      %p271 = scmp.ne.s32.totalorder %s257, %s258
      %p272 = scmp.eq.s32.totalorder %s25, 1
      %p273 = por %p271, %p272
      %p275 = scmp.ne.s32.totalorder %s258, %s274
      %p276 = scmp.eq.s32.totalorder %s25, 0
      %p277 = por %p275, %p276
      %p278 = scmp.le.s32.totalorder 1, %s19
      %p279 = scmp.lt.s32.totalorder %s19, 3
      %p280 = pnand %p278, %p279
      %p281 = pneg %p280
      // Predicated region
      $region9: #{tpu_custom_call.1} parent=5 // pred_check
        _
      $region10: #{tpu_custom_call.1} parent=5 // pred_check_branch
        %283 = sbr.rel (%p280) target = $region12
      $region11: #{tpu_custom_call.1} parent=5 // pred_region
        %s284 = ssub.s32 %s19, 1
        // Predicated region
        $region13: #{tpu_custom_call.1} parent=11 // pred_check
          %p285 = pneg %p118
        $region14: #{tpu_custom_call.1} parent=11 // pred_check_branch
          %287 = sbr.rel (%p285) target = $region16
        $region15: #{tpu_custom_call.1} parent=11 // pred_region
          _
        $region16: #{tpu_custom_call.1} parent=11 // pred_fallthru
          _
        // Predicated region
        $region17: #{tpu_custom_call.1} parent=11 // pred_check
          %p288 = pneg %p139
        $region18: #{tpu_custom_call.1} parent=11 // pred_check_branch
          %290 = sbr.rel (%p288) target = $region20
        $region19: #{tpu_custom_call.1} parent=11 // pred_region
          _
        $region20: #{tpu_custom_call.1} parent=11 // pred_fallthru
          _
        // Predicated region
        $region21: #{tpu_custom_call.1} parent=11 // pred_check
          %p291 = pneg %p160
        $region22: #{tpu_custom_call.1} parent=11 // pred_check_branch
          %293 = sbr.rel (%p291) target = $region24
        $region23: #{tpu_custom_call.1} parent=11 // pred_region
          _
        $region24: #{tpu_custom_call.1} parent=11 // pred_fallthru
          _
        // Predicated region
        $region25: #{tpu_custom_call.1} parent=11 // pred_check
          %p294 = pneg %p181
        $region26: #{tpu_custom_call.1} parent=11 // pred_check_branch
          %296 = sbr.rel (%p294) target = $region28
        $region27: #{tpu_custom_call.1} parent=11 // pred_region
          _
        $region28: #{tpu_custom_call.1} parent=11 // pred_fallthru
          _
        // Predicated region
        $region29: #{tpu_custom_call.1} parent=11 // pred_check
          %p297 = pneg %p202
        $region30: #{tpu_custom_call.1} parent=11 // pred_check_branch
          %299 = sbr.rel (%p297) target = $region32
        $region31: #{tpu_custom_call.1} parent=11 // pred_region
          _
        $region32: #{tpu_custom_call.1} parent=11 // pred_fallthru
          _
        // Predicated region
        $region33: #{tpu_custom_call.1} parent=11 // pred_check
          %p300 = pneg %p223
        $region34: #{tpu_custom_call.1} parent=11 // pred_check_branch
          %302 = sbr.rel (%p300) target = $region36
        $region35: #{tpu_custom_call.1} parent=11 // pred_region
          _
        $region36: #{tpu_custom_call.1} parent=11 // pred_fallthru
          _
        // Predicated region
        $region37: #{tpu_custom_call.1} parent=11 // pred_check
          %p303 = pneg %p244
        $region38: #{tpu_custom_call.1} parent=11 // pred_check_branch
          %305 = sbr.rel (%p303) target = $region40
        $region39: #{tpu_custom_call.1} parent=11 // pred_region
          _
        $region40: #{tpu_custom_call.1} parent=11 // pred_fallthru
          _
      $region12: #{tpu_custom_call.1} parent=5 // pred_fallthru
        _
      %p306 = scmp.lt.s32.totalorder %s19, 2
      // Predicated region
      $region41: #{tpu_custom_call.1} parent=5 // pred_check
        %p307 = pneg %p306
      $region42: #{tpu_custom_call.1} parent=5 // pred_check_branch
        %309 = sbr.rel (%p307) target = $region44
      $region43: #{tpu_custom_call.1} parent=5 // pred_region
        // Predicated region
        $region45: #{tpu_custom_call.1} parent=43 // pred_check
          %p310 = pneg %p39
        $region46: #{tpu_custom_call.1} parent=43 // pred_check_branch
          %312 = sbr.rel (%p310) target = $region48
        $region47: #{tpu_custom_call.1} parent=43 // pred_region
          %p313 = scmp.lt.s32.totalorder %s19, 1
          %s314 = scalar_select %p313, %s19, 1
          %s315 = smul.addr %s314, 2
          %s316 = smul.addr %s315, 8
          %s317 = scalar_lea.vmem %s0, %s316
        $region48: #{tpu_custom_call.1} parent=43 // pred_fallthru
          _
        // Predicated region
        $region49: #{tpu_custom_call.1} parent=43 // pred_check
          %p318 = pneg %p65
        $region50: #{tpu_custom_call.1} parent=43 // pred_check_branch
          %320 = sbr.rel (%p318) target = $region52
        $region51: #{tpu_custom_call.1} parent=43 // pred_region
          %p321 = scmp.lt.s32.totalorder %s19, 1
          %s322 = scalar_select %p321, %s19, 1
          %s323 = smul.addr %s322, 32
          %s324 = smul.addr %s323, 8
          %s325 = scalar_lea.vmem %s1, %s324
        $region52: #{tpu_custom_call.1} parent=43 // pred_fallthru
          _
        // Predicated region
        $region53: #{tpu_custom_call.1} parent=43 // pred_check
          %p326 = pneg %p91
        $region54: #{tpu_custom_call.1} parent=43 // pred_check_branch
          %328 = sbr.rel (%p326) target = $region56
        $region55: #{tpu_custom_call.1} parent=43 // pred_region
          %p329 = scmp.lt.s32.totalorder %s19, 1
          %s330 = scalar_select %p329, %s19, 1
          %s331 = smul.addr %s330, 2
          %s332 = smul.addr %s331, 8
          %s333 = scalar_lea.vmem %s2, %s332
        $region56: #{tpu_custom_call.1} parent=43 // pred_fallthru
          _
      $region44: #{tpu_custom_call.1} parent=5 // pred_fallthru
        _
      %p334 = scmp.le.s32.totalorder 1, %s19
      %p335 = scmp.lt.s32.totalorder %s19, 3
      %p336 = pnand %p334, %p335
      %p337 = pneg %p336
      // Predicated region
      $region57: #{tpu_custom_call.1} parent=5 // pred_check
        _
      $region58: #{tpu_custom_call.1} parent=5 // pred_check_branch
        %339 = sbr.rel (%p336) target = $region60
      $region59: #{tpu_custom_call.1} parent=5 // pred_region
        %s340 = ssub.s32 %s19, 1
        %p341 = scmp.lt.s32.totalorder %s24, 1
        %s342 = scalar_select %p341, %s24, 1
        %s343 = smul.addr %s342, 2
        %s344 = smul.addr %s343, 8
        %s345 = scalar_lea.vmem %s0, %s344
        %p346 = pneg %p45
        %p347 = pneg %p42
        %p348 = scmp.lt.s32.totalorder %s24, 1
        %s349 = scalar_select %p348, %s24, 1
        %s350 = smul.addr %s349, 32
        %s351 = smul.addr %s350, 8
        %s352 = scalar_lea.vmem %s1, %s351
        %p353 = pneg %p71
        %p354 = pneg %p68
        %p355 = scmp.lt.s32.totalorder %s24, 1
        %s356 = scalar_select %p355, %s24, 1
        %s357 = smul.addr %s356, 2
        %s358 = smul.addr %s357, 8
        %s359 = scalar_lea.vmem %s2, %s358
        %p360 = pneg %p97
        %p361 = pneg %p94
        %p362 = pneg %p118
        %p363 = pneg %p115
        %p364 = pneg %p139
        %p365 = pneg %p136
        %p366 = pneg %p160
        %p367 = pneg %p157
        %p368 = pneg %p181
        %p369 = pneg %p178
        %p370 = pneg %p202
        %p371 = pneg %p199
        %p372 = pneg %p223
        %p373 = pneg %p220
        %p374 = pneg %p244
        %p375 = pneg %p241
        %p376 = pneg %p270
        %p377 = pneg %p267
        %s378 = sand.u32 %s257, 1
        %s379 = scalar_lea.sflag [#allocation3], %s378
        %s380 = sand.u32 %s257, 1
        %s381 = smul.addr %s380, 16
        %s382 = scalar_lea.vmem [#allocation2], %s381
        %p383 = scmp.lt.s32.totalorder %s24, 1
        %s384 = scalar_select %p383, %s24, 1
        %s385 = smul.addr %s384, 2
        %s386 = smul.addr %s385, 8
        %s387 = scalar_lea.vmem %s0, %s386
        %p388 = scmp.lt.s32.totalorder %s24, 1
        %s389 = scalar_select %p388, %s24, 1
        %s390 = smul.addr %s389, 32
        %s391 = smul.addr %s390, 8
        %s392 = scalar_lea.vmem %s1, %s391
        %p393 = scmp.lt.s32.totalorder %s24, 1
        %s394 = scalar_select %p393, %s24, 1
        %s395 = smul.addr %s394, 2
        %s396 = smul.addr %s395, 8
        %s397 = scalar_lea.vmem %s2, %s396
        %v399 = vld [vmem:[%s387] sm:$0xff]
        %v400 = vld [vmem:[%s387 + $0x8] sm:$0xff]
        %v401 = vld [vmem:[%s392] sm:$0xff]
        %v402 = vld [vmem:[%s392 + $0x8] sm:$0xff]
        %v403 = vld [vmem:[%s392 + $0x10] sm:$0xff]
        %v404 = vld [vmem:[%s392 + $0x18] sm:$0xff]
        %v405 = vld [vmem:[%s392 + $0x20] sm:$0xff]
        %v406 = vld [vmem:[%s392 + $0x28] sm:$0xff]
        %v407 = vld [vmem:[%s392 + $0x30] sm:$0xff]
        %v408 = vld [vmem:[%s392 + $0x38] sm:$0xff]
        %v409 = vld [vmem:[%s392 + $0x40] sm:$0xff]
        %v410 = vld [vmem:[%s392 + $0x48] sm:$0xff]
        %v411 = vld [vmem:[%s392 + $0x50] sm:$0xff]
        %v412 = vld [vmem:[%s392 + $0x58] sm:$0xff]
        %v413 = vld [vmem:[%s392 + $0x60] sm:$0xff]
        %v414 = vld [vmem:[%s392 + $0x68] sm:$0xff]
        %v415 = vld [vmem:[%s392 + $0x70] sm:$0xff]
        %v416 = vld [vmem:[%s392 + $0x78] sm:$0xff]
        %v417 = vld [vmem:[%s392 + $0x80] sm:$0xff]
        %v418 = vld [vmem:[%s392 + $0x88] sm:$0xff]
        %v419 = vld [vmem:[%s392 + $0x90] sm:$0xff]
        %v420 = vld [vmem:[%s392 + $0x98] sm:$0xff]
        %v421 = vld [vmem:[%s392 + $0xa0] sm:$0xff]
        %v422 = vld [vmem:[%s392 + $0xa8] sm:$0xff]
        %v423 = vld [vmem:[%s392 + $0xb0] sm:$0xff]
        %v424 = vld [vmem:[%s392 + $0xb8] sm:$0xff]
        %v425 = vld [vmem:[%s392 + $0xc0] sm:$0xff]
        %v426 = vld [vmem:[%s392 + $0xc8] sm:$0xff]
        %v427 = vld [vmem:[%s392 + $0xd0] sm:$0xff]
        %v428 = vld [vmem:[%s392 + $0xd8] sm:$0xff]
        %v429 = vld [vmem:[%s392 + $0xe0] sm:$0xff]
        %v430 = vld [vmem:[%s392 + $0xe8] sm:$0xff]
        %v431 = vld [vmem:[%s392 + $0xf0] sm:$0xff]
        %v432 = vld [vmem:[%s392 + $0xf8] sm:$0xff]
        %v433 = vld [vmem:[%s397] sm:$0xff]
        %v434 = vld [vmem:[%s397 + $0x8] sm:$0xff]
        %v435 = vpack.c.bf16 %v400, %v399
        %v436 = vld [vmem:[%s3] sm:$0xf]
        %v437 = vld [vmem:[%s3 + $0x4] sm:$0xf]
        %v438 = vld [vmem:[%s3 + $0x8] sm:$0xf]
        %v439 = vld [vmem:[%s3 + $0xc] sm:$0xf]
        %v444 = vunpack.c.l.b16 %v436
        %v445 = vunpack.c.l.b16 %v437
        %v446 = vunpack.c.l.b16 %v438
        %v447 = vunpack.c.l.b16 %v439
        %v448 = vpack.c.b16 %v445, %v444
        %v449 = vpack.c.b16 %v447, %v446
        %vm452 = vcmask 261120
        %v454 = vsel %vm452, %v435, 0
        %456 = vmatprep.subr.bf16.mxu0 0
        %457 = vmatpush1.bf16.msra.mxu0 0
        %458 = vmatprep.subr.bf16.mxu0 0
        %459 = vmatpush1.bf16.msra.mxu0 0
        %460 = vmatprep.subr.bf16.mxu0 0
        %461 = vmatpush1.bf16.msra.mxu0 0
        %462 = vmatprep.subr.bf16.mxu0 0
        %463 = vmatpush1.bf16.msra.mxu0 0
        %464 = vmatprep.subr.bf16.mxu0 0
        %465 = vmatpush1.bf16.msra.mxu0 0
        %466 = vmatprep.subr.bf16.mxu0 0
        %467 = vmatpush1.bf16.msra.mxu0 0
        %468 = vmatprep.subr.bf16.mxu0 0
        %469 = vmatpush1.bf16.msra.mxu0 %v449
        %470 = vmatprep.subr.bf16.mxu0 0
        %471 = vmatpush1.bf16.msra.mxu0 %v448
        %472 = vmatprep.subr.bf16.mxu0 0
        %473 = vmatpush2.bf16.msra.mxu0 0
        %474 = vmatprep.subr.bf16.mxu0 0
        %475 = vmatpush2.bf16.msra.mxu0 0
        %476 = vmatprep.subr.bf16.mxu0 0
        %477 = vmatpush2.bf16.msra.mxu0 0
        %478 = vmatprep.subr.bf16.mxu0 0
        %479 = vmatpush2.bf16.msra.mxu0 0
        %480 = vmatprep.subr.bf16.mxu0 0
        %481 = vmatpush2.bf16.msra.mxu0 0
        %482 = vmatprep.subr.bf16.mxu0 0
        %483 = vmatpush2.bf16.msra.mxu0 0
        %484 = vmatprep.subr.bf16.mxu0 0
        %485 = vmatpush2.bf16.msra.mxu0 0
        %486 = vmatprep.subr.bf16.mxu0 0
        %487 = vmatpush2.bf16.msra.mxu0 0
        %488 = vmatprep.mubr.bf16.mxu0 0
        %489 = vmatmul.mubr.bf16.gmra.mxu0 %v454
        %v490 = vpop.f32.mrf.mxu0
        %v491 = vadd.f32 0.0, %v490
        %v492 = vpop.f32.mrf.mxu0
        %v493 = vpop.f32.mrf.mxu0
        %v494 = vadd.f32 0.0, %v493
        %v495 = vpop.f32.mrf.mxu0
        %496 = vdwg.mxu0
        %v497 = vpack.c.bf16 %v402, %v401
        %v498 = vpack.c.bf16 %v404, %v403
        %v499 = vpack.c.bf16 %v406, %v405
        %v500 = vpack.c.bf16 %v408, %v407
        %v501 = vpack.c.bf16 %v410, %v409
        %v502 = vpack.c.bf16 %v412, %v411
        %v503 = vpack.c.bf16 %v414, %v413
        %v504 = vpack.c.bf16 %v416, %v415
        %v505 = vpack.c.bf16 %v418, %v417
        %v506 = vpack.c.bf16 %v420, %v419
        %v507 = vpack.c.bf16 %v422, %v421
        %v508 = vpack.c.bf16 %v424, %v423
        %v509 = vpack.c.bf16 %v426, %v425
        %v510 = vpack.c.bf16 %v428, %v427
        %v511 = vpack.c.bf16 %v430, %v429
        %v512 = vpack.c.bf16 %v432, %v431
        %v513 = vld [vmem:[%s4] sm:$0xf]
        %vm514 = vcmask 64512
        %v516 = vsel %vm514, %v497, 0
        %v519 = vsel %vm514, %v498, 0
        %v522 = vsel %vm514, %v499, 0
        %v525 = vsel %vm514, %v500, 0
        %v528 = vsel %vm514, %v501, 0
        %v531 = vsel %vm514, %v502, 0
        %v534 = vsel %vm514, %v503, 0
        %v537 = vsel %vm514, %v504, 0
        %v540 = vsel %vm514, %v505, 0
        %v543 = vsel %vm514, %v506, 0
        %v546 = vsel %vm514, %v507, 0
        %v549 = vsel %vm514, %v508, 0
        %v552 = vsel %vm514, %v509, 0
        %v555 = vsel %vm514, %v510, 0
        %v558 = vsel %vm514, %v511, 0
        %v561 = vsel %vm514, %v512, 0
        %vm563 = vcmask 1043456
        %v565 = vsel %vm563, %v513, 0
        %567 = vmatprep.subr.bf16.mxu0 0
        %568 = vmatpush1.bf16.msra.mxu0 0
        %569 = vmatprep.subr.bf16.mxu0 0
        %570 = vmatpush1.bf16.msra.mxu0 0
        %571 = vmatprep.subr.bf16.mxu0 0
        %572 = vmatpush1.bf16.msra.mxu0 0
        %573 = vmatprep.subr.bf16.mxu0 0
        %574 = vmatpush1.bf16.msra.mxu0 0
        %575 = vmatprep.subr.bf16.mxu0 0
        %576 = vmatpush1.bf16.msra.mxu0 0
        %577 = vmatprep.subr.bf16.mxu0 0
        %578 = vmatpush1.bf16.msra.mxu0 0
        %579 = vmatprep.subr.bf16.mxu0 0
        %580 = vmatpush1.bf16.msra.mxu0 0
        %581 = vmatprep.subr.bf16.mxu0 0
        %582 = vmatpush1.bf16.msra.mxu0 %v565
        %583 = vmatprep.subr.bf16.mxu0 0
        %584 = vmatpush2.bf16.msra.mxu0 0
        %585 = vmatprep.subr.bf16.mxu0 0
        %586 = vmatpush2.bf16.msra.mxu0 0
        %587 = vmatprep.subr.bf16.mxu0 0
        %588 = vmatpush2.bf16.msra.mxu0 0
        %589 = vmatprep.subr.bf16.mxu0 0
        %590 = vmatpush2.bf16.msra.mxu0 0
        %591 = vmatprep.subr.bf16.mxu0 0
        %592 = vmatpush2.bf16.msra.mxu0 0
        %593 = vmatprep.subr.bf16.mxu0 0
        %594 = vmatpush2.bf16.msra.mxu0 0
        %595 = vmatprep.subr.bf16.mxu0 0
        %596 = vmatpush2.bf16.msra.mxu0 0
        %597 = vmatprep.subr.bf16.mxu0 0
        %598 = vmatpush2.bf16.msra.mxu0 0
        %599 = vmatprep.mubr.bf16.mxu0 0
        %600 = vmatmul.mubr.bf16.gmra.mxu0 %v516
        %v601 = vpop.f32.mrf.mxu0
        %v602 = vadd.f32 0.0, %v601
        %v603 = vpop.f32.mrf.mxu0
        %v604 = vpop.f32.mrf.mxu0
        %v605 = vadd.f32 0.0, %v604
        %v606 = vpop.f32.mrf.mxu0
        %607 = vmatprep.mubr.bf16.mxu0 0
        %608 = vmatmul.mubr.bf16.gmra.mxu0 %v519
        %v609 = vpop.f32.mrf.mxu0
        %v610 = vadd.f32 0.0, %v609
        %v611 = vpop.f32.mrf.mxu0
        %v612 = vpop.f32.mrf.mxu0
        %v613 = vadd.f32 0.0, %v612
        %v614 = vpop.f32.mrf.mxu0
        %615 = vmatprep.mubr.bf16.mxu0 0
        %616 = vmatmul.mubr.bf16.gmra.mxu0 %v522
        %v617 = vpop.f32.mrf.mxu0
        %v618 = vadd.f32 0.0, %v617
        %v619 = vpop.f32.mrf.mxu0
        %v620 = vpop.f32.mrf.mxu0
        %v621 = vadd.f32 0.0, %v620
        %v622 = vpop.f32.mrf.mxu0
        %623 = vmatprep.mubr.bf16.mxu0 0
        %624 = vmatmul.mubr.bf16.gmra.mxu0 %v525
        %v625 = vpop.f32.mrf.mxu0
        %v626 = vadd.f32 0.0, %v625
        %v627 = vpop.f32.mrf.mxu0
        %v628 = vpop.f32.mrf.mxu0
        %v629 = vadd.f32 0.0, %v628
        %v630 = vpop.f32.mrf.mxu0
        %631 = vmatprep.mubr.bf16.mxu0 0
        %632 = vmatmul.mubr.bf16.gmra.mxu0 %v528
        %v633 = vpop.f32.mrf.mxu0
        %v634 = vadd.f32 0.0, %v633
        %v635 = vpop.f32.mrf.mxu0
        %v636 = vpop.f32.mrf.mxu0
        %v637 = vadd.f32 0.0, %v636
        %v638 = vpop.f32.mrf.mxu0
        %639 = vmatprep.mubr.bf16.mxu0 0
        %640 = vmatmul.mubr.bf16.gmra.mxu0 %v531
        %v641 = vpop.f32.mrf.mxu0
        %v642 = vadd.f32 0.0, %v641
        %v643 = vpop.f32.mrf.mxu0
        %v644 = vpop.f32.mrf.mxu0
        %v645 = vadd.f32 0.0, %v644
        %v646 = vpop.f32.mrf.mxu0
        %647 = vmatprep.mubr.bf16.mxu0 0
        %648 = vmatmul.mubr.bf16.gmra.mxu0 %v534
        %v649 = vpop.f32.mrf.mxu0
        %v650 = vadd.f32 0.0, %v649
        %v651 = vpop.f32.mrf.mxu0
        %v652 = vpop.f32.mrf.mxu0
        %v653 = vadd.f32 0.0, %v652
        %v654 = vpop.f32.mrf.mxu0
        %655 = vmatprep.mubr.bf16.mxu0 0
        %656 = vmatmul.mubr.bf16.gmra.mxu0 %v537
        %v657 = vpop.f32.mrf.mxu0
        %v658 = vadd.f32 0.0, %v657
        %v659 = vpop.f32.mrf.mxu0
        %v660 = vpop.f32.mrf.mxu0
        %v661 = vadd.f32 0.0, %v660
        %v662 = vpop.f32.mrf.mxu0
        %663 = vmatprep.mubr.bf16.mxu0 0
        %664 = vmatmul.mubr.bf16.gmra.mxu0 %v540
        %v665 = vpop.f32.mrf.mxu0
        %v666 = vadd.f32 0.0, %v665
        %v667 = vpop.f32.mrf.mxu0
        %v668 = vpop.f32.mrf.mxu0
        %v669 = vadd.f32 0.0, %v668
        %v670 = vpop.f32.mrf.mxu0
        %671 = vmatprep.mubr.bf16.mxu0 0
        %672 = vmatmul.mubr.bf16.gmra.mxu0 %v543
        %v673 = vpop.f32.mrf.mxu0
        %v674 = vadd.f32 0.0, %v673
        %v675 = vpop.f32.mrf.mxu0
        %v676 = vpop.f32.mrf.mxu0
        %v677 = vadd.f32 0.0, %v676
        %v678 = vpop.f32.mrf.mxu0
        %679 = vmatprep.mubr.bf16.mxu0 0
        %680 = vmatmul.mubr.bf16.gmra.mxu0 %v546
        %v681 = vpop.f32.mrf.mxu0
        %v682 = vadd.f32 0.0, %v681
        %v683 = vpop.f32.mrf.mxu0
        %v684 = vpop.f32.mrf.mxu0
        %v685 = vadd.f32 0.0, %v684
        %v686 = vpop.f32.mrf.mxu0
        %687 = vmatprep.mubr.bf16.mxu0 0
        %688 = vmatmul.mubr.bf16.gmra.mxu0 %v549
        %v689 = vpop.f32.mrf.mxu0
        %v690 = vadd.f32 0.0, %v689
        %v691 = vpop.f32.mrf.mxu0
        %v692 = vpop.f32.mrf.mxu0
        %v693 = vadd.f32 0.0, %v692
        %v694 = vpop.f32.mrf.mxu0
        %695 = vmatprep.mubr.bf16.mxu0 0
        %696 = vmatmul.mubr.bf16.gmra.mxu0 %v552
        %v697 = vpop.f32.mrf.mxu0
        %v698 = vadd.f32 0.0, %v697
        %v699 = vpop.f32.mrf.mxu0
        %v700 = vpop.f32.mrf.mxu0
        %v701 = vadd.f32 0.0, %v700
        %v702 = vpop.f32.mrf.mxu0
        %703 = vmatprep.mubr.bf16.mxu0 0
        %704 = vmatmul.mubr.bf16.gmra.mxu0 %v555
        %v705 = vpop.f32.mrf.mxu0
        %v706 = vadd.f32 0.0, %v705
        %v707 = vpop.f32.mrf.mxu0
        %v708 = vpop.f32.mrf.mxu0
        %v709 = vadd.f32 0.0, %v708
        %v710 = vpop.f32.mrf.mxu0
        %711 = vmatprep.mubr.bf16.mxu0 0
        %712 = vmatmul.mubr.bf16.gmra.mxu0 %v558
        %v713 = vpop.f32.mrf.mxu0
        %v714 = vadd.f32 0.0, %v713
        %v715 = vpop.f32.mrf.mxu0
        %v716 = vpop.f32.mrf.mxu0
        %v717 = vadd.f32 0.0, %v716
        %v718 = vpop.f32.mrf.mxu0
        %719 = vmatprep.mubr.bf16.mxu0 0
        %720 = vmatmul.mubr.bf16.gmra.mxu0 %v561
        %v721 = vpop.f32.mrf.mxu0
        %v722 = vadd.f32 0.0, %v721
        %v723 = vpop.f32.mrf.mxu0
        %v724 = vpop.f32.mrf.mxu0
        %v725 = vadd.f32 0.0, %v724
        %v726 = vpop.f32.mrf.mxu0
        %727 = vdwg.mxu0
        %v728 = vadd.f32 %v491, %v602
        %v729 = vadd.f32 %v494, %v605
        %v730 = vadd.f32 %v491, %v610
        %v731 = vadd.f32 %v494, %v613
        %v732 = vadd.f32 %v491, %v618
        %v733 = vadd.f32 %v494, %v621
        %v734 = vadd.f32 %v491, %v626
        %v735 = vadd.f32 %v494, %v629
        %v736 = vadd.f32 %v491, %v634
        %v737 = vadd.f32 %v494, %v637
        %v738 = vadd.f32 %v491, %v642
        %v739 = vadd.f32 %v494, %v645
        %v740 = vadd.f32 %v491, %v650
        %v741 = vadd.f32 %v494, %v653
        %v742 = vadd.f32 %v491, %v658
        %v743 = vadd.f32 %v494, %v661
        %v744 = vadd.f32 %v491, %v666
        %v745 = vadd.f32 %v494, %v669
        %v746 = vadd.f32 %v491, %v674
        %v747 = vadd.f32 %v494, %v677
        %v748 = vadd.f32 %v491, %v682
        %v749 = vadd.f32 %v494, %v685
        %v750 = vadd.f32 %v491, %v690
        %v751 = vadd.f32 %v494, %v693
        %v752 = vadd.f32 %v491, %v698
        %v753 = vadd.f32 %v494, %v701
        %v754 = vadd.f32 %v491, %v706
        %v755 = vadd.f32 %v494, %v709
        %v756 = vadd.f32 %v491, %v714
        %v757 = vadd.f32 %v494, %v717
        %v758 = vadd.f32 %v491, %v722
        %v759 = vadd.f32 %v494, %v725
        %v760 = vld [vmem:[%s5] sm:$0x1]
        %v762 = vlaneseq
        %v763 = vshrl.u32 %v762, 7
        %v764 = vsub.s32 0, %v763
        %v765 = vrot.slane %v760, %v764
        %v767 = vadd.f32 %v728, %v765
        %v768 = vadd.f32 %v729, %v765
        %v769 = vadd.f32 %v730, %v765
        %v770 = vadd.f32 %v731, %v765
        %v771 = vadd.f32 %v732, %v765
        %v772 = vadd.f32 %v733, %v765
        %v773 = vadd.f32 %v734, %v765
        %v774 = vadd.f32 %v735, %v765
        %v775 = vadd.f32 %v736, %v765
        %v776 = vadd.f32 %v737, %v765
        %v777 = vadd.f32 %v738, %v765
        %v778 = vadd.f32 %v739, %v765
        %v779 = vadd.f32 %v740, %v765
        %v780 = vadd.f32 %v741, %v765
        %v781 = vadd.f32 %v742, %v765
        %v782 = vadd.f32 %v743, %v765
        %v783 = vadd.f32 %v744, %v765
        %v784 = vadd.f32 %v745, %v765
        %v785 = vadd.f32 %v746, %v765
        %v786 = vadd.f32 %v747, %v765
        %v787 = vadd.f32 %v748, %v765
        %v788 = vadd.f32 %v749, %v765
        %v789 = vadd.f32 %v750, %v765
        %v790 = vadd.f32 %v751, %v765
        %v791 = vadd.f32 %v752, %v765
        %v792 = vadd.f32 %v753, %v765
        %v793 = vadd.f32 %v754, %v765
        %v794 = vadd.f32 %v755, %v765
        %v795 = vadd.f32 %v756, %v765
        %v796 = vadd.f32 %v757, %v765
        %v797 = vadd.f32 %v758, %v765
        %v798 = vadd.f32 %v759, %v765
        %v799 = vtanh.pop %v767
        %v800 = vtanh.pop %v768
        %v801 = vtanh.pop %v769
        %v802 = vtanh.pop %v770
        %v803 = vtanh.pop %v771
        %v804 = vtanh.pop %v772
        %v805 = vtanh.pop %v773
        %v806 = vtanh.pop %v774
        %v807 = vtanh.pop %v775
        %v808 = vtanh.pop %v776
        %v809 = vtanh.pop %v777
        %v810 = vtanh.pop %v778
        %v811 = vtanh.pop %v779
        %v812 = vtanh.pop %v780
        %v813 = vtanh.pop %v781
        %v814 = vtanh.pop %v782
        %v815 = vtanh.pop %v783
        %v816 = vtanh.pop %v784
        %v817 = vtanh.pop %v785
        %v818 = vtanh.pop %v786
        %v819 = vtanh.pop %v787
        %v820 = vtanh.pop %v788
        %v821 = vtanh.pop %v789
        %v822 = vtanh.pop %v790
        %v823 = vtanh.pop %v791
        %v824 = vtanh.pop %v792
        %v825 = vtanh.pop %v793
        %v826 = vtanh.pop %v794
        %v827 = vtanh.pop %v795
        %v828 = vtanh.pop %v796
        %v829 = vtanh.pop %v797
        %v830 = vtanh.pop %v798
        %v831 = vsub.f32 1.0, %v433
        %v832 = vsub.f32 1.0, %v434
        %v833 = vmul.f32 %v831, -1e+09
        %v834 = vmul.f32 %v832, -1e+09
        %v835 = vld [vmem:[%s6] sm:$0x3]
        %v836 = vld [vmem:[%s7] sm:$0x3]
        %v837 = vlaneseq
        %v838 = vshrl.u32 %v837, 7
        %v839 = vsub.s32 0, %v838
        %v840 = vrot.slane %v835, %v839
        %v841 = vmul.f32 %v799, %v840
        %v842 = vmul.f32 %v800, %v840
        %v843 = vmul.f32 %v801, %v840
        %v844 = vmul.f32 %v802, %v840
        %v845 = vmul.f32 %v803, %v840
        %v846 = vmul.f32 %v804, %v840
        %v847 = vmul.f32 %v805, %v840
        %v848 = vmul.f32 %v806, %v840
        %v849 = vmul.f32 %v807, %v840
        %v850 = vmul.f32 %v808, %v840
        %v851 = vmul.f32 %v809, %v840
        %v852 = vmul.f32 %v810, %v840
        %v853 = vmul.f32 %v811, %v840
        %v854 = vmul.f32 %v812, %v840
        %v855 = vmul.f32 %v813, %v840
        %v856 = vmul.f32 %v814, %v840
        %v857 = vmul.f32 %v815, %v840
        %v858 = vmul.f32 %v816, %v840
        %v859 = vmul.f32 %v817, %v840
        %v860 = vmul.f32 %v818, %v840
        %v861 = vmul.f32 %v819, %v840
        %v862 = vmul.f32 %v820, %v840
        %v863 = vmul.f32 %v821, %v840
        %v864 = vmul.f32 %v822, %v840
        %v865 = vmul.f32 %v823, %v840
        %v866 = vmul.f32 %v824, %v840
        %v867 = vmul.f32 %v825, %v840
        %v868 = vmul.f32 %v826, %v840
        %v869 = vmul.f32 %v827, %v840
        %v870 = vmul.f32 %v828, %v840
        %v871 = vmul.f32 %v829, %v840
        %v872 = vmul.f32 %v830, %v840
        %vm873 = vcmask 130048
        %v874 = vsel %vm873, %v841, 0.0
        %875 = vadd.xlane.f32.xlu0 %v874
        %v876 = vpop.xlane.xlu0 %875
        %v877 = vsel %vm873, %v842, 0.0
        %878 = vadd.xlane.f32.xlu0 %v877
        %v879 = vpop.xlane.xlu0 %878
        %v880 = vsel %vm873, %v843, 0.0
        %881 = vadd.xlane.f32.xlu0 %v880
        %v882 = vpop.xlane.xlu0 %881
        %v883 = vsel %vm873, %v844, 0.0
        %884 = vadd.xlane.f32.xlu0 %v883
        %v885 = vpop.xlane.xlu0 %884
        %v886 = vsel %vm873, %v845, 0.0
        %887 = vadd.xlane.f32.xlu0 %v886
        %v888 = vpop.xlane.xlu0 %887
        %v889 = vsel %vm873, %v846, 0.0
        %890 = vadd.xlane.f32.xlu0 %v889
        %v891 = vpop.xlane.xlu0 %890
        %v892 = vsel %vm873, %v847, 0.0
        %893 = vadd.xlane.f32.xlu0 %v892
        %v894 = vpop.xlane.xlu0 %893
        %v895 = vsel %vm873, %v848, 0.0
        %896 = vadd.xlane.f32.xlu0 %v895
        %v897 = vpop.xlane.xlu0 %896
        %v898 = vsel %vm873, %v849, 0.0
        %899 = vadd.xlane.f32.xlu0 %v898
        %v900 = vpop.xlane.xlu0 %899
        %v901 = vsel %vm873, %v850, 0.0
        %902 = vadd.xlane.f32.xlu0 %v901
        %v903 = vpop.xlane.xlu0 %902
        %v904 = vsel %vm873, %v851, 0.0
        %905 = vadd.xlane.f32.xlu0 %v904
        %v906 = vpop.xlane.xlu0 %905
        %v907 = vsel %vm873, %v852, 0.0
        %908 = vadd.xlane.f32.xlu0 %v907
        %v909 = vpop.xlane.xlu0 %908
        %v910 = vsel %vm873, %v853, 0.0
        %911 = vadd.xlane.f32.xlu0 %v910
        %v912 = vpop.xlane.xlu0 %911
        %v913 = vsel %vm873, %v854, 0.0
        %914 = vadd.xlane.f32.xlu0 %v913
        %v915 = vpop.xlane.xlu0 %914
        %v916 = vsel %vm873, %v855, 0.0
        %917 = vadd.xlane.f32.xlu0 %v916
        %v918 = vpop.xlane.xlu0 %917
        %v919 = vsel %vm873, %v856, 0.0
        %920 = vadd.xlane.f32.xlu0 %v919
        %v921 = vpop.xlane.xlu0 %920
        %v922 = vsel %vm873, %v857, 0.0
        %923 = vadd.xlane.f32.xlu0 %v922
        %v924 = vpop.xlane.xlu0 %923
        %v925 = vsel %vm873, %v858, 0.0
        %926 = vadd.xlane.f32.xlu0 %v925
        %v927 = vpop.xlane.xlu0 %926
        %v928 = vsel %vm873, %v859, 0.0
        %929 = vadd.xlane.f32.xlu0 %v928
        %v930 = vpop.xlane.xlu0 %929
        %v931 = vsel %vm873, %v860, 0.0
        %932 = vadd.xlane.f32.xlu0 %v931
        %v933 = vpop.xlane.xlu0 %932
        %v934 = vsel %vm873, %v861, 0.0
        %935 = vadd.xlane.f32.xlu0 %v934
        %v936 = vpop.xlane.xlu0 %935
        %v937 = vsel %vm873, %v862, 0.0
        %938 = vadd.xlane.f32.xlu0 %v937
        %v939 = vpop.xlane.xlu0 %938
        %v940 = vsel %vm873, %v863, 0.0
        %941 = vadd.xlane.f32.xlu0 %v940
        %v942 = vpop.xlane.xlu0 %941
        %v943 = vsel %vm873, %v864, 0.0
        %944 = vadd.xlane.f32.xlu0 %v943
        %v945 = vpop.xlane.xlu0 %944
        %v946 = vsel %vm873, %v865, 0.0
        %947 = vadd.xlane.f32.xlu0 %v946
        %v948 = vpop.xlane.xlu0 %947
        %v949 = vsel %vm873, %v866, 0.0
        %950 = vadd.xlane.f32.xlu0 %v949
        %v951 = vpop.xlane.xlu0 %950
        %v952 = vsel %vm873, %v867, 0.0
        %953 = vadd.xlane.f32.xlu0 %v952
        %v954 = vpop.xlane.xlu0 %953
        %v955 = vsel %vm873, %v868, 0.0
        %956 = vadd.xlane.f32.xlu0 %v955
        %v957 = vpop.xlane.xlu0 %956
        %v958 = vsel %vm873, %v869, 0.0
        %959 = vadd.xlane.f32.xlu0 %v958
        %v960 = vpop.xlane.xlu0 %959
        %v961 = vsel %vm873, %v870, 0.0
        %962 = vadd.xlane.f32.xlu0 %v961
        %v963 = vpop.xlane.xlu0 %962
        %v964 = vsel %vm873, %v871, 0.0
        %965 = vadd.xlane.f32.xlu0 %v964
        %v966 = vpop.xlane.xlu0 %965
        %v967 = vsel %vm873, %v872, 0.0
        %968 = vadd.xlane.f32.xlu0 %v967
        %v969 = vpop.xlane.xlu0 %968
        %s971 = vtos %v836
        %v972 = vstv %s971
        %v974 = vadd.f32 %v876, %v972
        %v975 = vadd.f32 %v879, %v972
        %v976 = vadd.f32 %v882, %v972
        %v977 = vadd.f32 %v885, %v972
        %v978 = vadd.f32 %v888, %v972
        %v979 = vadd.f32 %v891, %v972
        %v980 = vadd.f32 %v894, %v972
        %v981 = vadd.f32 %v897, %v972
        %v982 = vadd.f32 %v900, %v972
        %v983 = vadd.f32 %v903, %v972
        %v984 = vadd.f32 %v906, %v972
        %v985 = vadd.f32 %v909, %v972
        %v986 = vadd.f32 %v912, %v972
        %v987 = vadd.f32 %v915, %v972
        %v988 = vadd.f32 %v918, %v972
        %v989 = vadd.f32 %v921, %v972
        %v990 = vadd.f32 %v924, %v972
        %v991 = vadd.f32 %v927, %v972
        %v992 = vadd.f32 %v930, %v972
        %v993 = vadd.f32 %v933, %v972
        %v994 = vadd.f32 %v936, %v972
        %v995 = vadd.f32 %v939, %v972
        %v996 = vadd.f32 %v942, %v972
        %v997 = vadd.f32 %v945, %v972
        %v998 = vadd.f32 %v948, %v972
        %v999 = vadd.f32 %v951, %v972
        %v1000 = vadd.f32 %v954, %v972
        %v1001 = vadd.f32 %v957, %v972
        %v1002 = vadd.f32 %v960, %v972
        %v1003 = vadd.f32 %v963, %v972
        %v1004 = vadd.f32 %v966, %v972
        %v1005 = vadd.f32 %v969, %v972
        %v1008 = vlaneseq
        %v1009 = vshrl.u32 %v1008, 7
        %v1010 = vsub.s32 0, %v1009
        %v1011 = vrot.slane %v833, %v1010
        %1013 = vbcast.lane.b32.xlu0 %v1011, 256
        %v1014 = vpop.permute.xlu0 %1013
        %s1016 = sor.u32 256, 8
        %1017 = vbcast.lane.b32.xlu0 %v1011, %s1016
        %v1018 = vpop.permute.xlu0 %1017
        %v1019 = vlaneseq
        %v1020 = vshrl.u32 %v1019, 7
        %v1021 = vsub.s32 1, %v1020
        %v1022 = vrot.slane %v833, %v1021
        %1024 = vbcast.lane.b32.xlu0 %v1022, 256
        %v1025 = vpop.permute.xlu0 %1024
        %s1027 = sor.u32 256, 8
        %1028 = vbcast.lane.b32.xlu0 %v1022, %s1027
        %v1029 = vpop.permute.xlu0 %1028
        %v1030 = vlaneseq
        %v1031 = vshrl.u32 %v1030, 7
        %v1032 = vsub.s32 2, %v1031
        %v1033 = vrot.slane %v833, %v1032
        %1035 = vbcast.lane.b32.xlu0 %v1033, 256
        %v1036 = vpop.permute.xlu0 %1035
        %s1038 = sor.u32 256, 8
        %1039 = vbcast.lane.b32.xlu0 %v1033, %s1038
        %v1040 = vpop.permute.xlu0 %1039
        %v1041 = vlaneseq
        %v1042 = vshrl.u32 %v1041, 7
        %v1043 = vsub.s32 3, %v1042
        %v1044 = vrot.slane %v833, %v1043
        %1046 = vbcast.lane.b32.xlu0 %v1044, 256
        %v1047 = vpop.permute.xlu0 %1046
        %s1049 = sor.u32 256, 8
        %1050 = vbcast.lane.b32.xlu0 %v1044, %s1049
        %v1051 = vpop.permute.xlu0 %1050
        %v1052 = vlaneseq
        %v1053 = vshrl.u32 %v1052, 7
        %v1054 = vsub.s32 4, %v1053
        %v1055 = vrot.slane %v833, %v1054
        %1057 = vbcast.lane.b32.xlu0 %v1055, 256
        %v1058 = vpop.permute.xlu0 %1057
        %s1060 = sor.u32 256, 8
        %1061 = vbcast.lane.b32.xlu0 %v1055, %s1060
        %v1062 = vpop.permute.xlu0 %1061
        %v1063 = vlaneseq
        %v1064 = vshrl.u32 %v1063, 7
        %v1065 = vsub.s32 5, %v1064
        %v1066 = vrot.slane %v833, %v1065
        %1068 = vbcast.lane.b32.xlu0 %v1066, 256
        %v1069 = vpop.permute.xlu0 %1068
        %s1071 = sor.u32 256, 8
        %1072 = vbcast.lane.b32.xlu0 %v1066, %s1071
        %v1073 = vpop.permute.xlu0 %1072
        %v1074 = vlaneseq
        %v1075 = vshrl.u32 %v1074, 7
        %v1076 = vsub.s32 6, %v1075
        %v1077 = vrot.slane %v833, %v1076
        %1079 = vbcast.lane.b32.xlu0 %v1077, 256
        %v1080 = vpop.permute.xlu0 %1079
        %s1082 = sor.u32 256, 8
        %1083 = vbcast.lane.b32.xlu0 %v1077, %s1082
        %v1084 = vpop.permute.xlu0 %1083
        %v1085 = vlaneseq
        %v1086 = vshrl.u32 %v1085, 7
        %v1087 = vsub.s32 7, %v1086
        %v1088 = vrot.slane %v833, %v1087
        %1090 = vbcast.lane.b32.xlu0 %v1088, 256
        %v1091 = vpop.permute.xlu0 %1090
        %s1093 = sor.u32 256, 8
        %1094 = vbcast.lane.b32.xlu0 %v1088, %s1093
        %v1095 = vpop.permute.xlu0 %1094
        %v1096 = vlaneseq
        %v1097 = vshrl.u32 %v1096, 7
        %v1098 = vsub.s32 0, %v1097
        %v1099 = vrot.slane %v834, %v1098
        %1101 = vbcast.lane.b32.xlu0 %v1099, 256
        %v1102 = vpop.permute.xlu0 %1101
        %s1104 = sor.u32 256, 8
        %1105 = vbcast.lane.b32.xlu0 %v1099, %s1104
        %v1106 = vpop.permute.xlu0 %1105
        %v1107 = vlaneseq
        %v1108 = vshrl.u32 %v1107, 7
        %v1109 = vsub.s32 1, %v1108
        %v1110 = vrot.slane %v834, %v1109
        %1112 = vbcast.lane.b32.xlu0 %v1110, 256
        %v1113 = vpop.permute.xlu0 %1112
        %s1115 = sor.u32 256, 8
        %1116 = vbcast.lane.b32.xlu0 %v1110, %s1115
        %v1117 = vpop.permute.xlu0 %1116
        %v1118 = vlaneseq
        %v1119 = vshrl.u32 %v1118, 7
        %v1120 = vsub.s32 2, %v1119
        %v1121 = vrot.slane %v834, %v1120
        %1123 = vbcast.lane.b32.xlu0 %v1121, 256
        %v1124 = vpop.permute.xlu0 %1123
        %s1126 = sor.u32 256, 8
        %1127 = vbcast.lane.b32.xlu0 %v1121, %s1126
        %v1128 = vpop.permute.xlu0 %1127
        %v1129 = vlaneseq
        %v1130 = vshrl.u32 %v1129, 7
        %v1131 = vsub.s32 3, %v1130
        %v1132 = vrot.slane %v834, %v1131
        %1134 = vbcast.lane.b32.xlu0 %v1132, 256
        %v1135 = vpop.permute.xlu0 %1134
        %s1137 = sor.u32 256, 8
        %1138 = vbcast.lane.b32.xlu0 %v1132, %s1137
        %v1139 = vpop.permute.xlu0 %1138
        %v1140 = vlaneseq
        %v1141 = vshrl.u32 %v1140, 7
        %v1142 = vsub.s32 4, %v1141
        %v1143 = vrot.slane %v834, %v1142
        %1145 = vbcast.lane.b32.xlu0 %v1143, 256
        %v1146 = vpop.permute.xlu0 %1145
        %s1148 = sor.u32 256, 8
        %1149 = vbcast.lane.b32.xlu0 %v1143, %s1148
        %v1150 = vpop.permute.xlu0 %1149
        %v1151 = vlaneseq
        %v1152 = vshrl.u32 %v1151, 7
        %v1153 = vsub.s32 5, %v1152
        %v1154 = vrot.slane %v834, %v1153
        %1156 = vbcast.lane.b32.xlu0 %v1154, 256
        %v1157 = vpop.permute.xlu0 %1156
        %s1159 = sor.u32 256, 8
        %1160 = vbcast.lane.b32.xlu0 %v1154, %s1159
        %v1161 = vpop.permute.xlu0 %1160
        %v1162 = vlaneseq
        %v1163 = vshrl.u32 %v1162, 7
        %v1164 = vsub.s32 6, %v1163
        %v1165 = vrot.slane %v834, %v1164
        %1167 = vbcast.lane.b32.xlu0 %v1165, 256
        %v1168 = vpop.permute.xlu0 %1167
        %s1170 = sor.u32 256, 8
        %1171 = vbcast.lane.b32.xlu0 %v1165, %s1170
        %v1172 = vpop.permute.xlu0 %1171
        %v1173 = vlaneseq
        %v1174 = vshrl.u32 %v1173, 7
        %v1175 = vsub.s32 7, %v1174
        %v1176 = vrot.slane %v834, %v1175
        %1178 = vbcast.lane.b32.xlu0 %v1176, 256
        %v1179 = vpop.permute.xlu0 %1178
        %s1181 = sor.u32 256, 8
        %1182 = vbcast.lane.b32.xlu0 %v1176, %s1181
        %v1183 = vpop.permute.xlu0 %1182
        %v1216 = vadd.f32 %v974, %v1014
        %v1217 = vadd.f32 %v975, %v1018
        %v1218 = vadd.f32 %v976, %v1025
        %v1219 = vadd.f32 %v977, %v1029
        %v1220 = vadd.f32 %v978, %v1036
        %v1221 = vadd.f32 %v979, %v1040
        %v1222 = vadd.f32 %v980, %v1047
        %v1223 = vadd.f32 %v981, %v1051
        %v1224 = vadd.f32 %v982, %v1058
        %v1225 = vadd.f32 %v983, %v1062
        %v1226 = vadd.f32 %v984, %v1069
        %v1227 = vadd.f32 %v985, %v1073
        %v1228 = vadd.f32 %v986, %v1080
        %v1229 = vadd.f32 %v987, %v1084
        %v1230 = vadd.f32 %v988, %v1091
        %v1231 = vadd.f32 %v989, %v1095
        %v1232 = vadd.f32 %v990, %v1102
        %v1233 = vadd.f32 %v991, %v1106
        %v1234 = vadd.f32 %v992, %v1113
        %v1235 = vadd.f32 %v993, %v1117
        %v1236 = vadd.f32 %v994, %v1124
        %v1237 = vadd.f32 %v995, %v1128
        %v1238 = vadd.f32 %v996, %v1135
        %v1239 = vadd.f32 %v997, %v1139
        %v1240 = vadd.f32 %v998, %v1146
        %v1241 = vadd.f32 %v999, %v1150
        %v1242 = vadd.f32 %v1000, %v1157
        %v1243 = vadd.f32 %v1001, %v1161
        %v1244 = vadd.f32 %v1002, %v1168
        %v1245 = vadd.f32 %v1003, %v1172
        %v1246 = vadd.f32 %v1004, %v1179
        %v1247 = vadd.f32 %v1005, %v1183
        %1280 = vset.pattern.permute.xlu0 0
        %1281 = vperm.xlu0 %1280, %v1216
        %v1282 = vpop.permute.xlu0 %1281
        %1283 = vset.pattern.permute.xlu0 0
        %1284 = vperm.xlu0 %1283, %v1217
        %v1285 = vpop.permute.xlu0 %1284
        %1286 = vset.pattern.permute.xlu0 0
        %1287 = vperm.xlu0 %1286, %v1218
        %v1288 = vpop.permute.xlu0 %1287
        %1289 = vset.pattern.permute.xlu0 0
        %1290 = vperm.xlu0 %1289, %v1219
        %v1291 = vpop.permute.xlu0 %1290
        %1292 = vset.pattern.permute.xlu0 0
        %1293 = vperm.xlu0 %1292, %v1220
        %v1294 = vpop.permute.xlu0 %1293
        %1295 = vset.pattern.permute.xlu0 0
        %1296 = vperm.xlu0 %1295, %v1221
        %v1297 = vpop.permute.xlu0 %1296
        %1298 = vset.pattern.permute.xlu0 0
        %1299 = vperm.xlu0 %1298, %v1222
        %v1300 = vpop.permute.xlu0 %1299
        %1301 = vset.pattern.permute.xlu0 0
        %1302 = vperm.xlu0 %1301, %v1223
        %v1303 = vpop.permute.xlu0 %1302
        %1304 = vset.pattern.permute.xlu0 0
        %1305 = vperm.xlu0 %1304, %v1224
        %v1306 = vpop.permute.xlu0 %1305
        %1307 = vset.pattern.permute.xlu0 0
        %1308 = vperm.xlu0 %1307, %v1225
        %v1309 = vpop.permute.xlu0 %1308
        %1310 = vset.pattern.permute.xlu0 0
        %1311 = vperm.xlu0 %1310, %v1226
        %v1312 = vpop.permute.xlu0 %1311
        %1313 = vset.pattern.permute.xlu0 0
        %1314 = vperm.xlu0 %1313, %v1227
        %v1315 = vpop.permute.xlu0 %1314
        %1316 = vset.pattern.permute.xlu0 0
        %1317 = vperm.xlu0 %1316, %v1228
        %v1318 = vpop.permute.xlu0 %1317
        %1319 = vset.pattern.permute.xlu0 0
        %1320 = vperm.xlu0 %1319, %v1229
        %v1321 = vpop.permute.xlu0 %1320
        %1322 = vset.pattern.permute.xlu0 0
        %1323 = vperm.xlu0 %1322, %v1230
        %v1324 = vpop.permute.xlu0 %1323
        %1325 = vset.pattern.permute.xlu0 0
        %1326 = vperm.xlu0 %1325, %v1231
        %v1327 = vpop.permute.xlu0 %1326
        %1328 = vset.pattern.permute.xlu0 0
        %1329 = vperm.xlu0 %1328, %v1232
        %v1330 = vpop.permute.xlu0 %1329
        %1331 = vset.pattern.permute.xlu0 0
        %1332 = vperm.xlu0 %1331, %v1233
        %v1333 = vpop.permute.xlu0 %1332
        %1334 = vset.pattern.permute.xlu0 0
        %1335 = vperm.xlu0 %1334, %v1234
        %v1336 = vpop.permute.xlu0 %1335
        %1337 = vset.pattern.permute.xlu0 0
        %1338 = vperm.xlu0 %1337, %v1235
        %v1339 = vpop.permute.xlu0 %1338
        %1340 = vset.pattern.permute.xlu0 0
        %1341 = vperm.xlu0 %1340, %v1236
        %v1342 = vpop.permute.xlu0 %1341
        %1343 = vset.pattern.permute.xlu0 0
        %1344 = vperm.xlu0 %1343, %v1237
        %v1345 = vpop.permute.xlu0 %1344
        %1346 = vset.pattern.permute.xlu0 0
        %1347 = vperm.xlu0 %1346, %v1238
        %v1348 = vpop.permute.xlu0 %1347
        %1349 = vset.pattern.permute.xlu0 0
        %1350 = vperm.xlu0 %1349, %v1239
        %v1351 = vpop.permute.xlu0 %1350
        %1352 = vset.pattern.permute.xlu0 0
        %1353 = vperm.xlu0 %1352, %v1240
        %v1354 = vpop.permute.xlu0 %1353
        %1355 = vset.pattern.permute.xlu0 0
        %1356 = vperm.xlu0 %1355, %v1241
        %v1357 = vpop.permute.xlu0 %1356
        %1358 = vset.pattern.permute.xlu0 0
        %1359 = vperm.xlu0 %1358, %v1242
        %v1360 = vpop.permute.xlu0 %1359
        %1361 = vset.pattern.permute.xlu0 0
        %1362 = vperm.xlu0 %1361, %v1243
        %v1363 = vpop.permute.xlu0 %1362
        %1364 = vset.pattern.permute.xlu0 0
        %1365 = vperm.xlu0 %1364, %v1244
        %v1366 = vpop.permute.xlu0 %1365
        %1367 = vset.pattern.permute.xlu0 0
        %1368 = vperm.xlu0 %1367, %v1245
        %v1369 = vpop.permute.xlu0 %1368
        %1370 = vset.pattern.permute.xlu0 0
        %1371 = vperm.xlu0 %1370, %v1246
        %v1372 = vpop.permute.xlu0 %1371
        %1373 = vset.pattern.permute.xlu0 0
        %1374 = vperm.xlu0 %1373, %v1247
        %v1375 = vpop.permute.xlu0 %1374
        %v1376 = vlaneseq
        %v1377 = vand.u32 %v1376, 127
        %v1378 = vlaneseq
        %v1379 = vshrl.u32 %v1378, 7
        %v1380 = vsub.s32 %v1377, %v1379
        %v1381 = vrot.slane %v1282, %v1380
        %v1382 = vadd.s32 %v1377, 4294967288
        %v1383 = vlaneseq
        %v1384 = vshrl.u32 %v1383, 7
        %v1385 = vsub.s32 %v1382, %v1384
        %v1386 = vrot.slane %v1285, %v1385
        %vm1387 = vcmask 130112
        %v1388 = vsel %vm1387, %v1386, %v1381
        %v1389 = vlaneseq
        %v1390 = vshrl.u32 %v1389, 7
        %v1391 = vsub.s32 %v1377, %v1390
        %v1392 = vrot.slane %v1288, %v1391
        %v1393 = vlaneseq
        %v1394 = vshrl.u32 %v1393, 7
        %v1395 = vsub.s32 %v1382, %v1394
        %v1396 = vrot.slane %v1291, %v1395
        %v1397 = vsel %vm1387, %v1396, %v1392
        %v1398 = vlaneseq
        %v1399 = vshrl.u32 %v1398, 7
        %v1400 = vsub.s32 %v1377, %v1399
        %v1401 = vrot.slane %v1294, %v1400
        %v1402 = vlaneseq
        %v1403 = vshrl.u32 %v1402, 7
        %v1404 = vsub.s32 %v1382, %v1403
        %v1405 = vrot.slane %v1297, %v1404
        %v1406 = vsel %vm1387, %v1405, %v1401
        %v1407 = vlaneseq
        %v1408 = vshrl.u32 %v1407, 7
        %v1409 = vsub.s32 %v1377, %v1408
        %v1410 = vrot.slane %v1300, %v1409
        %v1411 = vlaneseq
        %v1412 = vshrl.u32 %v1411, 7
        %v1413 = vsub.s32 %v1382, %v1412
        %v1414 = vrot.slane %v1303, %v1413
        %v1415 = vsel %vm1387, %v1414, %v1410
        %v1416 = vlaneseq
        %v1417 = vshrl.u32 %v1416, 7
        %v1418 = vsub.s32 %v1377, %v1417
        %v1419 = vrot.slane %v1306, %v1418
        %v1420 = vlaneseq
        %v1421 = vshrl.u32 %v1420, 7
        %v1422 = vsub.s32 %v1382, %v1421
        %v1423 = vrot.slane %v1309, %v1422
        %v1424 = vsel %vm1387, %v1423, %v1419
        %v1425 = vlaneseq
        %v1426 = vshrl.u32 %v1425, 7
        %v1427 = vsub.s32 %v1377, %v1426
        %v1428 = vrot.slane %v1312, %v1427
        %v1429 = vlaneseq
        %v1430 = vshrl.u32 %v1429, 7
        %v1431 = vsub.s32 %v1382, %v1430
        %v1432 = vrot.slane %v1315, %v1431
        %v1433 = vsel %vm1387, %v1432, %v1428
        %v1434 = vlaneseq
        %v1435 = vshrl.u32 %v1434, 7
        %v1436 = vsub.s32 %v1377, %v1435
        %v1437 = vrot.slane %v1318, %v1436
        %v1438 = vlaneseq
        %v1439 = vshrl.u32 %v1438, 7
        %v1440 = vsub.s32 %v1382, %v1439
        %v1441 = vrot.slane %v1321, %v1440
        %v1442 = vsel %vm1387, %v1441, %v1437
        %v1443 = vlaneseq
        %v1444 = vshrl.u32 %v1443, 7
        %v1445 = vsub.s32 %v1377, %v1444
        %v1446 = vrot.slane %v1324, %v1445
        %v1447 = vlaneseq
        %v1448 = vshrl.u32 %v1447, 7
        %v1449 = vsub.s32 %v1382, %v1448
        %v1450 = vrot.slane %v1327, %v1449
        %v1451 = vsel %vm1387, %v1450, %v1446
        %v1452 = vlaneseq
        %v1453 = vshrl.u32 %v1452, 7
        %v1454 = vsub.s32 %v1377, %v1453
        %v1455 = vrot.slane %v1330, %v1454
        %v1456 = vlaneseq
        %v1457 = vshrl.u32 %v1456, 7
        %v1458 = vsub.s32 %v1382, %v1457
        %v1459 = vrot.slane %v1333, %v1458
        %v1460 = vsel %vm1387, %v1459, %v1455
        %v1461 = vlaneseq
        %v1462 = vshrl.u32 %v1461, 7
        %v1463 = vsub.s32 %v1377, %v1462
        %v1464 = vrot.slane %v1336, %v1463
        %v1465 = vlaneseq
        %v1466 = vshrl.u32 %v1465, 7
        %v1467 = vsub.s32 %v1382, %v1466
        %v1468 = vrot.slane %v1339, %v1467
        %v1469 = vsel %vm1387, %v1468, %v1464
        %v1470 = vlaneseq
        %v1471 = vshrl.u32 %v1470, 7
        %v1472 = vsub.s32 %v1377, %v1471
        %v1473 = vrot.slane %v1342, %v1472
        %v1474 = vlaneseq
        %v1475 = vshrl.u32 %v1474, 7
        %v1476 = vsub.s32 %v1382, %v1475
        %v1477 = vrot.slane %v1345, %v1476
        %v1478 = vsel %vm1387, %v1477, %v1473
        %v1479 = vlaneseq
        %v1480 = vshrl.u32 %v1479, 7
        %v1481 = vsub.s32 %v1377, %v1480
        %v1482 = vrot.slane %v1348, %v1481
        %v1483 = vlaneseq
        %v1484 = vshrl.u32 %v1483, 7
        %v1485 = vsub.s32 %v1382, %v1484
        %v1486 = vrot.slane %v1351, %v1485
        %v1487 = vsel %vm1387, %v1486, %v1482
        %v1488 = vlaneseq
        %v1489 = vshrl.u32 %v1488, 7
        %v1490 = vsub.s32 %v1377, %v1489
        %v1491 = vrot.slane %v1354, %v1490
        %v1492 = vlaneseq
        %v1493 = vshrl.u32 %v1492, 7
        %v1494 = vsub.s32 %v1382, %v1493
        %v1495 = vrot.slane %v1357, %v1494
        %v1496 = vsel %vm1387, %v1495, %v1491
        %v1497 = vlaneseq
        %v1498 = vshrl.u32 %v1497, 7
        %v1499 = vsub.s32 %v1377, %v1498
        %v1500 = vrot.slane %v1360, %v1499
        %v1501 = vlaneseq
        %v1502 = vshrl.u32 %v1501, 7
        %v1503 = vsub.s32 %v1382, %v1502
        %v1504 = vrot.slane %v1363, %v1503
        %v1505 = vsel %vm1387, %v1504, %v1500
        %v1506 = vlaneseq
        %v1507 = vshrl.u32 %v1506, 7
        %v1508 = vsub.s32 %v1377, %v1507
        %v1509 = vrot.slane %v1366, %v1508
        %v1510 = vlaneseq
        %v1511 = vshrl.u32 %v1510, 7
        %v1512 = vsub.s32 %v1382, %v1511
        %v1513 = vrot.slane %v1369, %v1512
        %v1514 = vsel %vm1387, %v1513, %v1509
        %v1515 = vlaneseq
        %v1516 = vshrl.u32 %v1515, 7
        %v1517 = vsub.s32 %v1377, %v1516
        %v1518 = vrot.slane %v1372, %v1517
        %v1519 = vlaneseq
        %v1520 = vshrl.u32 %v1519, 7
        %v1521 = vsub.s32 %v1382, %v1520
        %v1522 = vrot.slane %v1375, %v1521
        %v1523 = vsel %vm1387, %v1522, %v1518
        %vm1524 = vcmask 1041409
        %v1525 = vsel %vm1524, %v1397, %v1388
        %vm1526 = vcmask 1042434
        %v1527 = vsel %vm1526, %v1406, %v1525
        %vm1528 = vcmask 1043459
        %v1529 = vsel %vm1528, %v1415, %v1527
        %vm1530 = vcmask 1044484
        %v1531 = vsel %vm1530, %v1424, %v1529
        %vm1532 = vcmask 1045509
        %v1533 = vsel %vm1532, %v1433, %v1531
        %vm1534 = vcmask 1046534
        %v1535 = vsel %vm1534, %v1442, %v1533
        %vm1536 = vcmask 1047559
        %v1537 = vsel %vm1536, %v1451, %v1535
        %v1538 = vsel %vm1524, %v1469, %v1460
        %v1539 = vsel %vm1526, %v1478, %v1538
        %v1540 = vsel %vm1528, %v1487, %v1539
        %v1541 = vsel %vm1530, %v1496, %v1540
        %v1542 = vsel %vm1532, %v1505, %v1541
        %v1543 = vsel %vm1534, %v1514, %v1542
        %v1544 = vsel %vm1536, %v1523, %v1543
        %v1547 = vsel %vm873, %v1537, -inf
        %1548 = vmax.xlane.f32.xlu0 %v1547
        %v1549 = vpop.xlane.xlu0 %1548
        %v1550 = vsel %vm873, %v1544, -inf
        %1551 = vmax.xlane.f32.xlu0 %v1550
        %v1552 = vpop.xlane.xlu0 %1551
        %v1555 = vlaneseq
        %v1556 = vshrl.u32 %v1555, 7
        %v1557 = vsub.s32 0, %v1556
        %v1558 = vrot.slane %v1549, %v1557
        %v1559 = vlaneseq
        %v1560 = vshrl.u32 %v1559, 7
        %v1561 = vsub.s32 1, %v1560
        %v1562 = vrot.slane %v1549, %v1561
        %v1563 = vlaneseq
        %v1564 = vshrl.u32 %v1563, 7
        %v1565 = vsub.s32 2, %v1564
        %v1566 = vrot.slane %v1549, %v1565
        %v1567 = vlaneseq
        %v1568 = vshrl.u32 %v1567, 7
        %v1569 = vsub.s32 3, %v1568
        %v1570 = vrot.slane %v1549, %v1569
        %v1571 = vlaneseq
        %v1572 = vshrl.u32 %v1571, 7
        %v1573 = vsub.s32 4, %v1572
        %v1574 = vrot.slane %v1549, %v1573
        %v1575 = vlaneseq
        %v1576 = vshrl.u32 %v1575, 7
        %v1577 = vsub.s32 5, %v1576
        %v1578 = vrot.slane %v1549, %v1577
        %v1579 = vlaneseq
        %v1580 = vshrl.u32 %v1579, 7
        %v1581 = vsub.s32 6, %v1580
        %v1582 = vrot.slane %v1549, %v1581
        %v1583 = vlaneseq
        %v1584 = vshrl.u32 %v1583, 7
        %v1585 = vsub.s32 7, %v1584
        %v1586 = vrot.slane %v1549, %v1585
        %v1587 = vlaneseq
        %v1588 = vshrl.u32 %v1587, 7
        %v1589 = vsub.s32 0, %v1588
        %v1590 = vrot.slane %v1552, %v1589
        %v1591 = vlaneseq
        %v1592 = vshrl.u32 %v1591, 7
        %v1593 = vsub.s32 1, %v1592
        %v1594 = vrot.slane %v1552, %v1593
        %v1595 = vlaneseq
        %v1596 = vshrl.u32 %v1595, 7
        %v1597 = vsub.s32 2, %v1596
        %v1598 = vrot.slane %v1552, %v1597
        %v1599 = vlaneseq
        %v1600 = vshrl.u32 %v1599, 7
        %v1601 = vsub.s32 3, %v1600
        %v1602 = vrot.slane %v1552, %v1601
        %v1603 = vlaneseq
        %v1604 = vshrl.u32 %v1603, 7
        %v1605 = vsub.s32 4, %v1604
        %v1606 = vrot.slane %v1552, %v1605
        %v1607 = vlaneseq
        %v1608 = vshrl.u32 %v1607, 7
        %v1609 = vsub.s32 5, %v1608
        %v1610 = vrot.slane %v1552, %v1609
        %v1611 = vlaneseq
        %v1612 = vshrl.u32 %v1611, 7
        %v1613 = vsub.s32 6, %v1612
        %v1614 = vrot.slane %v1552, %v1613
        %v1615 = vlaneseq
        %v1616 = vshrl.u32 %v1615, 7
        %v1617 = vsub.s32 7, %v1616
        %v1618 = vrot.slane %v1552, %v1617
        %v1635 = vsub.f32 %v1216, %v1558
        %v1636 = vsub.f32 %v1217, %v1558
        %v1637 = vsub.f32 %v1218, %v1562
        %v1638 = vsub.f32 %v1219, %v1562
        %v1639 = vsub.f32 %v1220, %v1566
        %v1640 = vsub.f32 %v1221, %v1566
        %v1641 = vsub.f32 %v1222, %v1570
        %v1642 = vsub.f32 %v1223, %v1570
        %v1643 = vsub.f32 %v1224, %v1574
        %v1644 = vsub.f32 %v1225, %v1574
        %v1645 = vsub.f32 %v1226, %v1578
        %v1646 = vsub.f32 %v1227, %v1578
        %v1647 = vsub.f32 %v1228, %v1582
        %v1648 = vsub.f32 %v1229, %v1582
        %v1649 = vsub.f32 %v1230, %v1586
        %v1650 = vsub.f32 %v1231, %v1586
        %v1651 = vsub.f32 %v1232, %v1590
        %v1652 = vsub.f32 %v1233, %v1590
        %v1653 = vsub.f32 %v1234, %v1594
        %v1654 = vsub.f32 %v1235, %v1594
        %v1655 = vsub.f32 %v1236, %v1598
        %v1656 = vsub.f32 %v1237, %v1598
        %v1657 = vsub.f32 %v1238, %v1602
        %v1658 = vsub.f32 %v1239, %v1602
        %v1659 = vsub.f32 %v1240, %v1606
        %v1660 = vsub.f32 %v1241, %v1606
        %v1661 = vsub.f32 %v1242, %v1610
        %v1662 = vsub.f32 %v1243, %v1610
        %v1663 = vsub.f32 %v1244, %v1614
        %v1664 = vsub.f32 %v1245, %v1614
        %v1665 = vsub.f32 %v1246, %v1618
        %v1666 = vsub.f32 %v1247, %v1618
        %v1667 = vmul.f32 %v1635, 1.442695
        %v1668 = vpow.pop %v1667
        %v1669 = vmul.f32 %v1636, 1.442695
        %v1670 = vpow.pop %v1669
        %v1671 = vmul.f32 %v1637, 1.442695
        %v1672 = vpow.pop %v1671
        %v1673 = vmul.f32 %v1638, 1.442695
        %v1674 = vpow.pop %v1673
        %v1675 = vmul.f32 %v1639, 1.442695
        %v1676 = vpow.pop %v1675
        %v1677 = vmul.f32 %v1640, 1.442695
        %v1678 = vpow.pop %v1677
        %v1679 = vmul.f32 %v1641, 1.442695
        %v1680 = vpow.pop %v1679
        %v1681 = vmul.f32 %v1642, 1.442695
        %v1682 = vpow.pop %v1681
        %v1683 = vmul.f32 %v1643, 1.442695
        %v1684 = vpow.pop %v1683
        %v1685 = vmul.f32 %v1644, 1.442695
        %v1686 = vpow.pop %v1685
        %v1687 = vmul.f32 %v1645, 1.442695
        %v1688 = vpow.pop %v1687
        %v1689 = vmul.f32 %v1646, 1.442695
        %v1690 = vpow.pop %v1689
        %v1691 = vmul.f32 %v1647, 1.442695
        %v1692 = vpow.pop %v1691
        %v1693 = vmul.f32 %v1648, 1.442695
        %v1694 = vpow.pop %v1693
        %v1695 = vmul.f32 %v1649, 1.442695
        %v1696 = vpow.pop %v1695
        %v1697 = vmul.f32 %v1650, 1.442695
        %v1698 = vpow.pop %v1697
        %v1699 = vmul.f32 %v1651, 1.442695
        %v1700 = vpow.pop %v1699
        %v1701 = vmul.f32 %v1652, 1.442695
        %v1702 = vpow.pop %v1701
        %v1703 = vmul.f32 %v1653, 1.442695
        %v1704 = vpow.pop %v1703
        %v1705 = vmul.f32 %v1654, 1.442695
        %v1706 = vpow.pop %v1705
        %v1707 = vmul.f32 %v1655, 1.442695
        %v1708 = vpow.pop %v1707
        %v1709 = vmul.f32 %v1656, 1.442695
        %v1710 = vpow.pop %v1709
        %v1711 = vmul.f32 %v1657, 1.442695
        %v1712 = vpow.pop %v1711
        %v1713 = vmul.f32 %v1658, 1.442695
        %v1714 = vpow.pop %v1713
        %v1715 = vmul.f32 %v1659, 1.442695
        %v1716 = vpow.pop %v1715
        %v1717 = vmul.f32 %v1660, 1.442695
        %v1718 = vpow.pop %v1717
        %v1719 = vmul.f32 %v1661, 1.442695
        %v1720 = vpow.pop %v1719
        %v1721 = vmul.f32 %v1662, 1.442695
        %v1722 = vpow.pop %v1721
        %v1723 = vmul.f32 %v1663, 1.442695
        %v1724 = vpow.pop %v1723
        %v1725 = vmul.f32 %v1664, 1.442695
        %v1726 = vpow.pop %v1725
        %v1727 = vmul.f32 %v1665, 1.442695
        %v1728 = vpow.pop %v1727
        %v1729 = vmul.f32 %v1666, 1.442695
        %v1730 = vpow.pop %v1729
        %1763 = vset.pattern.permute.xlu0 0
        %1764 = vperm.xlu0 %1763, %v1668
        %v1765 = vpop.permute.xlu0 %1764
        %1766 = vset.pattern.permute.xlu0 0
        %1767 = vperm.xlu0 %1766, %v1670
        %v1768 = vpop.permute.xlu0 %1767
        %1769 = vset.pattern.permute.xlu0 0
        %1770 = vperm.xlu0 %1769, %v1672
        %v1771 = vpop.permute.xlu0 %1770
        %1772 = vset.pattern.permute.xlu0 0
        %1773 = vperm.xlu0 %1772, %v1674
        %v1774 = vpop.permute.xlu0 %1773
        %1775 = vset.pattern.permute.xlu0 0
        %1776 = vperm.xlu0 %1775, %v1676
        %v1777 = vpop.permute.xlu0 %1776
        %1778 = vset.pattern.permute.xlu0 0
        %1779 = vperm.xlu0 %1778, %v1678
        %v1780 = vpop.permute.xlu0 %1779
        %1781 = vset.pattern.permute.xlu0 0
        %1782 = vperm.xlu0 %1781, %v1680
        %v1783 = vpop.permute.xlu0 %1782
        %1784 = vset.pattern.permute.xlu0 0
        %1785 = vperm.xlu0 %1784, %v1682
        %v1786 = vpop.permute.xlu0 %1785
        %1787 = vset.pattern.permute.xlu0 0
        %1788 = vperm.xlu0 %1787, %v1684
        %v1789 = vpop.permute.xlu0 %1788
        %1790 = vset.pattern.permute.xlu0 0
        %1791 = vperm.xlu0 %1790, %v1686
        %v1792 = vpop.permute.xlu0 %1791
        %1793 = vset.pattern.permute.xlu0 0
        %1794 = vperm.xlu0 %1793, %v1688
        %v1795 = vpop.permute.xlu0 %1794
        %1796 = vset.pattern.permute.xlu0 0
        %1797 = vperm.xlu0 %1796, %v1690
        %v1798 = vpop.permute.xlu0 %1797
        %1799 = vset.pattern.permute.xlu0 0
        %1800 = vperm.xlu0 %1799, %v1692
        %v1801 = vpop.permute.xlu0 %1800
        %1802 = vset.pattern.permute.xlu0 0
        %1803 = vperm.xlu0 %1802, %v1694
        %v1804 = vpop.permute.xlu0 %1803
        %1805 = vset.pattern.permute.xlu0 0
        %1806 = vperm.xlu0 %1805, %v1696
        %v1807 = vpop.permute.xlu0 %1806
        %1808 = vset.pattern.permute.xlu0 0
        %1809 = vperm.xlu0 %1808, %v1698
        %v1810 = vpop.permute.xlu0 %1809
        %1811 = vset.pattern.permute.xlu0 0
        %1812 = vperm.xlu0 %1811, %v1700
        %v1813 = vpop.permute.xlu0 %1812
        %1814 = vset.pattern.permute.xlu0 0
        %1815 = vperm.xlu0 %1814, %v1702
        %v1816 = vpop.permute.xlu0 %1815
        %1817 = vset.pattern.permute.xlu0 0
        %1818 = vperm.xlu0 %1817, %v1704
        %v1819 = vpop.permute.xlu0 %1818
        %1820 = vset.pattern.permute.xlu0 0
        %1821 = vperm.xlu0 %1820, %v1706
        %v1822 = vpop.permute.xlu0 %1821
        %1823 = vset.pattern.permute.xlu0 0
        %1824 = vperm.xlu0 %1823, %v1708
        %v1825 = vpop.permute.xlu0 %1824
        %1826 = vset.pattern.permute.xlu0 0
        %1827 = vperm.xlu0 %1826, %v1710
        %v1828 = vpop.permute.xlu0 %1827
        %1829 = vset.pattern.permute.xlu0 0
        %1830 = vperm.xlu0 %1829, %v1712
        %v1831 = vpop.permute.xlu0 %1830
        %1832 = vset.pattern.permute.xlu0 0
        %1833 = vperm.xlu0 %1832, %v1714
        %v1834 = vpop.permute.xlu0 %1833
        %1835 = vset.pattern.permute.xlu0 0
        %1836 = vperm.xlu0 %1835, %v1716
        %v1837 = vpop.permute.xlu0 %1836
        %1838 = vset.pattern.permute.xlu0 0
        %1839 = vperm.xlu0 %1838, %v1718
        %v1840 = vpop.permute.xlu0 %1839
        %1841 = vset.pattern.permute.xlu0 0
        %1842 = vperm.xlu0 %1841, %v1720
        %v1843 = vpop.permute.xlu0 %1842
        %1844 = vset.pattern.permute.xlu0 0
        %1845 = vperm.xlu0 %1844, %v1722
        %v1846 = vpop.permute.xlu0 %1845
        %1847 = vset.pattern.permute.xlu0 0
        %1848 = vperm.xlu0 %1847, %v1724
        %v1849 = vpop.permute.xlu0 %1848
        %1850 = vset.pattern.permute.xlu0 0
        %1851 = vperm.xlu0 %1850, %v1726
        %v1852 = vpop.permute.xlu0 %1851
        %1853 = vset.pattern.permute.xlu0 0
        %1854 = vperm.xlu0 %1853, %v1728
        %v1855 = vpop.permute.xlu0 %1854
        %1856 = vset.pattern.permute.xlu0 0
        %1857 = vperm.xlu0 %1856, %v1730
        %v1858 = vpop.permute.xlu0 %1857
        %v1859 = vlaneseq
        %v1860 = vshrl.u32 %v1859, 7
        %v1861 = vsub.s32 %v1377, %v1860
        %v1862 = vrot.slane %v1765, %v1861
        %v1863 = vlaneseq
        %v1864 = vshrl.u32 %v1863, 7
        %v1865 = vsub.s32 %v1382, %v1864
        %v1866 = vrot.slane %v1768, %v1865
        %v1867 = vsel %vm1387, %v1866, %v1862
        %v1868 = vlaneseq
        %v1869 = vshrl.u32 %v1868, 7
        %v1870 = vsub.s32 %v1377, %v1869
        %v1871 = vrot.slane %v1771, %v1870
        %v1872 = vlaneseq
        %v1873 = vshrl.u32 %v1872, 7
        %v1874 = vsub.s32 %v1382, %v1873
        %v1875 = vrot.slane %v1774, %v1874
        %v1876 = vsel %vm1387, %v1875, %v1871
        %v1877 = vlaneseq
        %v1878 = vshrl.u32 %v1877, 7
        %v1879 = vsub.s32 %v1377, %v1878
        %v1880 = vrot.slane %v1777, %v1879
        %v1881 = vlaneseq
        %v1882 = vshrl.u32 %v1881, 7
        %v1883 = vsub.s32 %v1382, %v1882
        %v1884 = vrot.slane %v1780, %v1883
        %v1885 = vsel %vm1387, %v1884, %v1880
        %v1886 = vlaneseq
        %v1887 = vshrl.u32 %v1886, 7
        %v1888 = vsub.s32 %v1377, %v1887
        %v1889 = vrot.slane %v1783, %v1888
        %v1890 = vlaneseq
        %v1891 = vshrl.u32 %v1890, 7
        %v1892 = vsub.s32 %v1382, %v1891
        %v1893 = vrot.slane %v1786, %v1892
        %v1894 = vsel %vm1387, %v1893, %v1889
        %v1895 = vlaneseq
        %v1896 = vshrl.u32 %v1895, 7
        %v1897 = vsub.s32 %v1377, %v1896
        %v1898 = vrot.slane %v1789, %v1897
        %v1899 = vlaneseq
        %v1900 = vshrl.u32 %v1899, 7
        %v1901 = vsub.s32 %v1382, %v1900
        %v1902 = vrot.slane %v1792, %v1901
        %v1903 = vsel %vm1387, %v1902, %v1898
        %v1904 = vlaneseq
        %v1905 = vshrl.u32 %v1904, 7
        %v1906 = vsub.s32 %v1377, %v1905
        %v1907 = vrot.slane %v1795, %v1906
        %v1908 = vlaneseq
        %v1909 = vshrl.u32 %v1908, 7
        %v1910 = vsub.s32 %v1382, %v1909
        %v1911 = vrot.slane %v1798, %v1910
        %v1912 = vsel %vm1387, %v1911, %v1907
        %v1913 = vlaneseq
        %v1914 = vshrl.u32 %v1913, 7
        %v1915 = vsub.s32 %v1377, %v1914
        %v1916 = vrot.slane %v1801, %v1915
        %v1917 = vlaneseq
        %v1918 = vshrl.u32 %v1917, 7
        %v1919 = vsub.s32 %v1382, %v1918
        %v1920 = vrot.slane %v1804, %v1919
        %v1921 = vsel %vm1387, %v1920, %v1916
        %v1922 = vlaneseq
        %v1923 = vshrl.u32 %v1922, 7
        %v1924 = vsub.s32 %v1377, %v1923
        %v1925 = vrot.slane %v1807, %v1924
        %v1926 = vlaneseq
        %v1927 = vshrl.u32 %v1926, 7
        %v1928 = vsub.s32 %v1382, %v1927
        %v1929 = vrot.slane %v1810, %v1928
        %v1930 = vsel %vm1387, %v1929, %v1925
        %v1931 = vlaneseq
        %v1932 = vshrl.u32 %v1931, 7
        %v1933 = vsub.s32 %v1377, %v1932
        %v1934 = vrot.slane %v1813, %v1933
        %v1935 = vlaneseq
        %v1936 = vshrl.u32 %v1935, 7
        %v1937 = vsub.s32 %v1382, %v1936
        %v1938 = vrot.slane %v1816, %v1937
        %v1939 = vsel %vm1387, %v1938, %v1934
        %v1940 = vlaneseq
        %v1941 = vshrl.u32 %v1940, 7
        %v1942 = vsub.s32 %v1377, %v1941
        %v1943 = vrot.slane %v1819, %v1942
        %v1944 = vlaneseq
        %v1945 = vshrl.u32 %v1944, 7
        %v1946 = vsub.s32 %v1382, %v1945
        %v1947 = vrot.slane %v1822, %v1946
        %v1948 = vsel %vm1387, %v1947, %v1943
        %v1949 = vlaneseq
        %v1950 = vshrl.u32 %v1949, 7
        %v1951 = vsub.s32 %v1377, %v1950
        %v1952 = vrot.slane %v1825, %v1951
        %v1953 = vlaneseq
        %v1954 = vshrl.u32 %v1953, 7
        %v1955 = vsub.s32 %v1382, %v1954
        %v1956 = vrot.slane %v1828, %v1955
        %v1957 = vsel %vm1387, %v1956, %v1952
        %v1958 = vlaneseq
        %v1959 = vshrl.u32 %v1958, 7
        %v1960 = vsub.s32 %v1377, %v1959
        %v1961 = vrot.slane %v1831, %v1960
        %v1962 = vlaneseq
        %v1963 = vshrl.u32 %v1962, 7
        %v1964 = vsub.s32 %v1382, %v1963
        %v1965 = vrot.slane %v1834, %v1964
        %v1966 = vsel %vm1387, %v1965, %v1961
        %v1967 = vlaneseq
        %v1968 = vshrl.u32 %v1967, 7
        %v1969 = vsub.s32 %v1377, %v1968
        %v1970 = vrot.slane %v1837, %v1969
        %v1971 = vlaneseq
        %v1972 = vshrl.u32 %v1971, 7
        %v1973 = vsub.s32 %v1382, %v1972
        %v1974 = vrot.slane %v1840, %v1973
        %v1975 = vsel %vm1387, %v1974, %v1970
        %v1976 = vlaneseq
        %v1977 = vshrl.u32 %v1976, 7
        %v1978 = vsub.s32 %v1377, %v1977
        %v1979 = vrot.slane %v1843, %v1978
        %v1980 = vlaneseq
        %v1981 = vshrl.u32 %v1980, 7
        %v1982 = vsub.s32 %v1382, %v1981
        %v1983 = vrot.slane %v1846, %v1982
        %v1984 = vsel %vm1387, %v1983, %v1979
        %v1985 = vlaneseq
        %v1986 = vshrl.u32 %v1985, 7
        %v1987 = vsub.s32 %v1377, %v1986
        %v1988 = vrot.slane %v1849, %v1987
        %v1989 = vlaneseq
        %v1990 = vshrl.u32 %v1989, 7
        %v1991 = vsub.s32 %v1382, %v1990
        %v1992 = vrot.slane %v1852, %v1991
        %v1993 = vsel %vm1387, %v1992, %v1988
        %v1994 = vlaneseq
        %v1995 = vshrl.u32 %v1994, 7
        %v1996 = vsub.s32 %v1377, %v1995
        %v1997 = vrot.slane %v1855, %v1996
        %v1998 = vlaneseq
        %v1999 = vshrl.u32 %v1998, 7
        %v2000 = vsub.s32 %v1382, %v1999
        %v2001 = vrot.slane %v1858, %v2000
        %v2002 = vsel %vm1387, %v2001, %v1997
        %v2003 = vsel %vm1524, %v1876, %v1867
        %v2004 = vsel %vm1526, %v1885, %v2003
        %v2005 = vsel %vm1528, %v1894, %v2004
        %v2006 = vsel %vm1530, %v1903, %v2005
        %v2007 = vsel %vm1532, %v1912, %v2006
        %v2008 = vsel %vm1534, %v1921, %v2007
        %v2009 = vsel %vm1536, %v1930, %v2008
        %v2010 = vsel %vm1524, %v1948, %v1939
        %v2011 = vsel %vm1526, %v1957, %v2010
        %v2012 = vsel %vm1528, %v1966, %v2011
        %v2013 = vsel %vm1530, %v1975, %v2012
        %v2014 = vsel %vm1532, %v1984, %v2013
        %v2015 = vsel %vm1534, %v1993, %v2014
        %v2016 = vsel %vm1536, %v2002, %v2015
        %v2019 = vsel %vm873, %v2009, 0.0
        %2020 = vadd.xlane.f32.xlu0 %v2019
        %v2021 = vpop.xlane.xlu0 %2020
        %v2022 = vsel %vm873, %v2016, 0.0
        %2023 = vadd.xlane.f32.xlu0 %v2022
        %v2024 = vpop.xlane.xlu0 %2023
        %v2027 = vlaneseq
        %v2028 = vshrl.u32 %v2027, 7
        %v2029 = vsub.s32 0, %v2028
        %v2030 = vrot.slane %v2021, %v2029
        %v2031 = vlaneseq
        %v2032 = vshrl.u32 %v2031, 7
        %v2033 = vsub.s32 1, %v2032
        %v2034 = vrot.slane %v2021, %v2033
        %v2035 = vlaneseq
        %v2036 = vshrl.u32 %v2035, 7
        %v2037 = vsub.s32 2, %v2036
        %v2038 = vrot.slane %v2021, %v2037
        %v2039 = vlaneseq
        %v2040 = vshrl.u32 %v2039, 7
        %v2041 = vsub.s32 3, %v2040
        %v2042 = vrot.slane %v2021, %v2041
        %v2043 = vlaneseq
        %v2044 = vshrl.u32 %v2043, 7
        %v2045 = vsub.s32 4, %v2044
        %v2046 = vrot.slane %v2021, %v2045
        %v2047 = vlaneseq
        %v2048 = vshrl.u32 %v2047, 7
        %v2049 = vsub.s32 5, %v2048
        %v2050 = vrot.slane %v2021, %v2049
        %v2051 = vlaneseq
        %v2052 = vshrl.u32 %v2051, 7
        %v2053 = vsub.s32 6, %v2052
        %v2054 = vrot.slane %v2021, %v2053
        %v2055 = vlaneseq
        %v2056 = vshrl.u32 %v2055, 7
        %v2057 = vsub.s32 7, %v2056
        %v2058 = vrot.slane %v2021, %v2057
        %v2059 = vlaneseq
        %v2060 = vshrl.u32 %v2059, 7
        %v2061 = vsub.s32 0, %v2060
        %v2062 = vrot.slane %v2024, %v2061
        %v2063 = vlaneseq
        %v2064 = vshrl.u32 %v2063, 7
        %v2065 = vsub.s32 1, %v2064
        %v2066 = vrot.slane %v2024, %v2065
        %v2067 = vlaneseq
        %v2068 = vshrl.u32 %v2067, 7
        %v2069 = vsub.s32 2, %v2068
        %v2070 = vrot.slane %v2024, %v2069
        %v2071 = vlaneseq
        %v2072 = vshrl.u32 %v2071, 7
        %v2073 = vsub.s32 3, %v2072
        %v2074 = vrot.slane %v2024, %v2073
        %v2075 = vlaneseq
        %v2076 = vshrl.u32 %v2075, 7
        %v2077 = vsub.s32 4, %v2076
        %v2078 = vrot.slane %v2024, %v2077
        %v2079 = vlaneseq
        %v2080 = vshrl.u32 %v2079, 7
        %v2081 = vsub.s32 5, %v2080
        %v2082 = vrot.slane %v2024, %v2081
        %v2083 = vlaneseq
        %v2084 = vshrl.u32 %v2083, 7
        %v2085 = vsub.s32 6, %v2084
        %v2086 = vrot.slane %v2024, %v2085
        %v2087 = vlaneseq
        %v2088 = vshrl.u32 %v2087, 7
        %v2089 = vsub.s32 7, %v2088
        %v2090 = vrot.slane %v2024, %v2089
        %v2107 = vrcp.pop %v2030
        %v2108 = vmul.f32 %v1668, %v2107
        %v2109 = vmul.f32 %v1670, %v2107
        %v2110 = vrcp.pop %v2034
        %v2111 = vmul.f32 %v1672, %v2110
        %v2112 = vmul.f32 %v1674, %v2110
        %v2113 = vrcp.pop %v2038
        %v2114 = vmul.f32 %v1676, %v2113
        %v2115 = vmul.f32 %v1678, %v2113
        %v2116 = vrcp.pop %v2042
        %v2117 = vmul.f32 %v1680, %v2116
        %v2118 = vmul.f32 %v1682, %v2116
        %v2119 = vrcp.pop %v2046
        %v2120 = vmul.f32 %v1684, %v2119
        %v2121 = vmul.f32 %v1686, %v2119
        %v2122 = vrcp.pop %v2050
        %v2123 = vmul.f32 %v1688, %v2122
        %v2124 = vmul.f32 %v1690, %v2122
        %v2125 = vrcp.pop %v2054
        %v2126 = vmul.f32 %v1692, %v2125
        %v2127 = vmul.f32 %v1694, %v2125
        %v2128 = vrcp.pop %v2058
        %v2129 = vmul.f32 %v1696, %v2128
        %v2130 = vmul.f32 %v1698, %v2128
        %v2131 = vrcp.pop %v2062
        %v2132 = vmul.f32 %v1700, %v2131
        %v2133 = vmul.f32 %v1702, %v2131
        %v2134 = vrcp.pop %v2066
        %v2135 = vmul.f32 %v1704, %v2134
        %v2136 = vmul.f32 %v1706, %v2134
        %v2137 = vrcp.pop %v2070
        %v2138 = vmul.f32 %v1708, %v2137
        %v2139 = vmul.f32 %v1710, %v2137
        %v2140 = vrcp.pop %v2074
        %v2141 = vmul.f32 %v1712, %v2140
        %v2142 = vmul.f32 %v1714, %v2140
        %v2143 = vrcp.pop %v2078
        %v2144 = vmul.f32 %v1716, %v2143
        %v2145 = vmul.f32 %v1718, %v2143
        %v2146 = vrcp.pop %v2082
        %v2147 = vmul.f32 %v1720, %v2146
        %v2148 = vmul.f32 %v1722, %v2146
        %v2149 = vrcp.pop %v2086
        %v2150 = vmul.f32 %v1724, %v2149
        %v2151 = vmul.f32 %v1726, %v2149
        %v2152 = vrcp.pop %v2090
        %v2153 = vmul.f32 %v1728, %v2152
        %v2154 = vmul.f32 %v1730, %v2152
        %v2157 = vlaneseq
        %v2158 = vshrl.u32 %v2157, 7
        %v2159 = vsub.s32 0, %v2158
        %v2160 = vrot.slane %v433, %v2159
        %2162 = vbcast.lane.b32.xlu0 %v2160, 256
        %v2163 = vpop.permute.xlu0 %2162
        %s2165 = sor.u32 256, 8
        %2166 = vbcast.lane.b32.xlu0 %v2160, %s2165
        %v2167 = vpop.permute.xlu0 %2166
        %v2168 = vlaneseq
        %v2169 = vshrl.u32 %v2168, 7
        %v2170 = vsub.s32 1, %v2169
        %v2171 = vrot.slane %v433, %v2170
        %2173 = vbcast.lane.b32.xlu0 %v2171, 256
        %v2174 = vpop.permute.xlu0 %2173
        %s2176 = sor.u32 256, 8
        %2177 = vbcast.lane.b32.xlu0 %v2171, %s2176
        %v2178 = vpop.permute.xlu0 %2177
        %v2179 = vlaneseq
        %v2180 = vshrl.u32 %v2179, 7
        %v2181 = vsub.s32 2, %v2180
        %v2182 = vrot.slane %v433, %v2181
        %2184 = vbcast.lane.b32.xlu0 %v2182, 256
        %v2185 = vpop.permute.xlu0 %2184
        %s2187 = sor.u32 256, 8
        %2188 = vbcast.lane.b32.xlu0 %v2182, %s2187
        %v2189 = vpop.permute.xlu0 %2188
        %v2190 = vlaneseq
        %v2191 = vshrl.u32 %v2190, 7
        %v2192 = vsub.s32 3, %v2191
        %v2193 = vrot.slane %v433, %v2192
        %2195 = vbcast.lane.b32.xlu0 %v2193, 256
        %v2196 = vpop.permute.xlu0 %2195
        %s2198 = sor.u32 256, 8
        %2199 = vbcast.lane.b32.xlu0 %v2193, %s2198
        %v2200 = vpop.permute.xlu0 %2199
        %v2201 = vlaneseq
        %v2202 = vshrl.u32 %v2201, 7
        %v2203 = vsub.s32 4, %v2202
        %v2204 = vrot.slane %v433, %v2203
        %2206 = vbcast.lane.b32.xlu0 %v2204, 256
        %v2207 = vpop.permute.xlu0 %2206
        %s2209 = sor.u32 256, 8
        %2210 = vbcast.lane.b32.xlu0 %v2204, %s2209
        %v2211 = vpop.permute.xlu0 %2210
        %v2212 = vlaneseq
        %v2213 = vshrl.u32 %v2212, 7
        %v2214 = vsub.s32 5, %v2213
        %v2215 = vrot.slane %v433, %v2214
        %2217 = vbcast.lane.b32.xlu0 %v2215, 256
        %v2218 = vpop.permute.xlu0 %2217
        %s2220 = sor.u32 256, 8
        %2221 = vbcast.lane.b32.xlu0 %v2215, %s2220
        %v2222 = vpop.permute.xlu0 %2221
        %v2223 = vlaneseq
        %v2224 = vshrl.u32 %v2223, 7
        %v2225 = vsub.s32 6, %v2224
        %v2226 = vrot.slane %v433, %v2225
        %2228 = vbcast.lane.b32.xlu0 %v2226, 256
        %v2229 = vpop.permute.xlu0 %2228
        %s2231 = sor.u32 256, 8
        %2232 = vbcast.lane.b32.xlu0 %v2226, %s2231
        %v2233 = vpop.permute.xlu0 %2232
        %v2234 = vlaneseq
        %v2235 = vshrl.u32 %v2234, 7
        %v2236 = vsub.s32 7, %v2235
        %v2237 = vrot.slane %v433, %v2236
        %2239 = vbcast.lane.b32.xlu0 %v2237, 256
        %v2240 = vpop.permute.xlu0 %2239
        %s2242 = sor.u32 256, 8
        %2243 = vbcast.lane.b32.xlu0 %v2237, %s2242
        %v2244 = vpop.permute.xlu0 %2243
        %v2245 = vlaneseq
        %v2246 = vshrl.u32 %v2245, 7
        %v2247 = vsub.s32 0, %v2246
        %v2248 = vrot.slane %v434, %v2247
        %2250 = vbcast.lane.b32.xlu0 %v2248, 256
        %v2251 = vpop.permute.xlu0 %2250
        %s2253 = sor.u32 256, 8
        %2254 = vbcast.lane.b32.xlu0 %v2248, %s2253
        %v2255 = vpop.permute.xlu0 %2254
        %v2256 = vlaneseq
        %v2257 = vshrl.u32 %v2256, 7
        %v2258 = vsub.s32 1, %v2257
        %v2259 = vrot.slane %v434, %v2258
        %2261 = vbcast.lane.b32.xlu0 %v2259, 256
        %v2262 = vpop.permute.xlu0 %2261
        %s2264 = sor.u32 256, 8
        %2265 = vbcast.lane.b32.xlu0 %v2259, %s2264
        %v2266 = vpop.permute.xlu0 %2265
        %v2267 = vlaneseq
        %v2268 = vshrl.u32 %v2267, 7
        %v2269 = vsub.s32 2, %v2268
        %v2270 = vrot.slane %v434, %v2269
        %2272 = vbcast.lane.b32.xlu0 %v2270, 256
        %v2273 = vpop.permute.xlu0 %2272
        %s2275 = sor.u32 256, 8
        %2276 = vbcast.lane.b32.xlu0 %v2270, %s2275
        %v2277 = vpop.permute.xlu0 %2276
        %v2278 = vlaneseq
        %v2279 = vshrl.u32 %v2278, 7
        %v2280 = vsub.s32 3, %v2279
        %v2281 = vrot.slane %v434, %v2280
        %2283 = vbcast.lane.b32.xlu0 %v2281, 256
        %v2284 = vpop.permute.xlu0 %2283
        %s2286 = sor.u32 256, 8
        %2287 = vbcast.lane.b32.xlu0 %v2281, %s2286
        %v2288 = vpop.permute.xlu0 %2287
        %v2289 = vlaneseq
        %v2290 = vshrl.u32 %v2289, 7
        %v2291 = vsub.s32 4, %v2290
        %v2292 = vrot.slane %v434, %v2291
        %2294 = vbcast.lane.b32.xlu0 %v2292, 256
        %v2295 = vpop.permute.xlu0 %2294
        %s2297 = sor.u32 256, 8
        %2298 = vbcast.lane.b32.xlu0 %v2292, %s2297
        %v2299 = vpop.permute.xlu0 %2298
        %v2300 = vlaneseq
        %v2301 = vshrl.u32 %v2300, 7
        %v2302 = vsub.s32 5, %v2301
        %v2303 = vrot.slane %v434, %v2302
        %2305 = vbcast.lane.b32.xlu0 %v2303, 256
        %v2306 = vpop.permute.xlu0 %2305
        %s2308 = sor.u32 256, 8
        %2309 = vbcast.lane.b32.xlu0 %v2303, %s2308
        %v2310 = vpop.permute.xlu0 %2309
        %v2311 = vlaneseq
        %v2312 = vshrl.u32 %v2311, 7
        %v2313 = vsub.s32 6, %v2312
        %v2314 = vrot.slane %v434, %v2313
        %2316 = vbcast.lane.b32.xlu0 %v2314, 256
        %v2317 = vpop.permute.xlu0 %2316
        %s2319 = sor.u32 256, 8
        %2320 = vbcast.lane.b32.xlu0 %v2314, %s2319
        %v2321 = vpop.permute.xlu0 %2320
        %v2322 = vlaneseq
        %v2323 = vshrl.u32 %v2322, 7
        %v2324 = vsub.s32 7, %v2323
        %v2325 = vrot.slane %v434, %v2324
        %2327 = vbcast.lane.b32.xlu0 %v2325, 256
        %v2328 = vpop.permute.xlu0 %2327
        %s2330 = sor.u32 256, 8
        %2331 = vbcast.lane.b32.xlu0 %v2325, %s2330
        %v2332 = vpop.permute.xlu0 %2331
        %v2365 = vmul.f32 %v2108, %v2163
        %v2366 = vmul.f32 %v2109, %v2167
        %v2367 = vmul.f32 %v2111, %v2174
        %v2368 = vmul.f32 %v2112, %v2178
        %v2369 = vmul.f32 %v2114, %v2185
        %v2370 = vmul.f32 %v2115, %v2189
        %v2371 = vmul.f32 %v2117, %v2196
        %v2372 = vmul.f32 %v2118, %v2200
        %v2373 = vmul.f32 %v2120, %v2207
        %v2374 = vmul.f32 %v2121, %v2211
        %v2375 = vmul.f32 %v2123, %v2218
        %v2376 = vmul.f32 %v2124, %v2222
        %v2377 = vmul.f32 %v2126, %v2229
        %v2378 = vmul.f32 %v2127, %v2233
        %v2379 = vmul.f32 %v2129, %v2240
        %v2380 = vmul.f32 %v2130, %v2244
        %v2381 = vmul.f32 %v2132, %v2251
        %v2382 = vmul.f32 %v2133, %v2255
        %v2383 = vmul.f32 %v2135, %v2262
        %v2384 = vmul.f32 %v2136, %v2266
        %v2385 = vmul.f32 %v2138, %v2273
        %v2386 = vmul.f32 %v2139, %v2277
        %v2387 = vmul.f32 %v2141, %v2284
        %v2388 = vmul.f32 %v2142, %v2288
        %v2389 = vmul.f32 %v2144, %v2295
        %v2390 = vmul.f32 %v2145, %v2299
        %v2391 = vmul.f32 %v2147, %v2306
        %v2392 = vmul.f32 %v2148, %v2310
        %v2393 = vmul.f32 %v2150, %v2317
        %v2394 = vmul.f32 %v2151, %v2321
        %v2395 = vmul.f32 %v2153, %v2328
        %v2396 = vmul.f32 %v2154, %v2332
        %2398 = vset.pattern.permute.xlu0 0
        %2399 = vperm.xlu0 %2398, %v2365
        %v2400 = vpop.permute.xlu0 %2399
        %2403 = vset.pattern.permute.xlu0 0
        %2404 = vperm.xlu0 %2403, %v2366
        %v2405 = vpop.permute.xlu0 %2404
        %2408 = vset.pattern.permute.xlu0 0
        %2409 = vperm.xlu0 %2408, %v2367
        %v2410 = vpop.permute.xlu0 %2409
        %2413 = vset.pattern.permute.xlu0 0
        %2414 = vperm.xlu0 %2413, %v2368
        %v2415 = vpop.permute.xlu0 %2414
        %2418 = vset.pattern.permute.xlu0 0
        %2419 = vperm.xlu0 %2418, %v2369
        %v2420 = vpop.permute.xlu0 %2419
        %2423 = vset.pattern.permute.xlu0 0
        %2424 = vperm.xlu0 %2423, %v2370
        %v2425 = vpop.permute.xlu0 %2424
        %2428 = vset.pattern.permute.xlu0 0
        %2429 = vperm.xlu0 %2428, %v2371
        %v2430 = vpop.permute.xlu0 %2429
        %2433 = vset.pattern.permute.xlu0 0
        %2434 = vperm.xlu0 %2433, %v2372
        %v2435 = vpop.permute.xlu0 %2434
        %2438 = vset.pattern.permute.xlu0 0
        %2439 = vperm.xlu0 %2438, %v2373
        %v2440 = vpop.permute.xlu0 %2439
        %2443 = vset.pattern.permute.xlu0 0
        %2444 = vperm.xlu0 %2443, %v2374
        %v2445 = vpop.permute.xlu0 %2444
        %2448 = vset.pattern.permute.xlu0 0
        %2449 = vperm.xlu0 %2448, %v2375
        %v2450 = vpop.permute.xlu0 %2449
        %2453 = vset.pattern.permute.xlu0 0
        %2454 = vperm.xlu0 %2453, %v2376
        %v2455 = vpop.permute.xlu0 %2454
        %2458 = vset.pattern.permute.xlu0 0
        %2459 = vperm.xlu0 %2458, %v2377
        %v2460 = vpop.permute.xlu0 %2459
        %2463 = vset.pattern.permute.xlu0 0
        %2464 = vperm.xlu0 %2463, %v2378
        %v2465 = vpop.permute.xlu0 %2464
        %2468 = vset.pattern.permute.xlu0 0
        %2469 = vperm.xlu0 %2468, %v2379
        %v2470 = vpop.permute.xlu0 %2469
        %2473 = vset.pattern.permute.xlu0 0
        %2474 = vperm.xlu0 %2473, %v2380
        %v2475 = vpop.permute.xlu0 %2474
        %2478 = vset.pattern.permute.xlu0 0
        %2479 = vperm.xlu0 %2478, %v2381
        %v2480 = vpop.permute.xlu0 %2479
        %2483 = vset.pattern.permute.xlu0 0
        %2484 = vperm.xlu0 %2483, %v2382
        %v2485 = vpop.permute.xlu0 %2484
        %2488 = vset.pattern.permute.xlu0 0
        %2489 = vperm.xlu0 %2488, %v2383
        %v2490 = vpop.permute.xlu0 %2489
        %2493 = vset.pattern.permute.xlu0 0
        %2494 = vperm.xlu0 %2493, %v2384
        %v2495 = vpop.permute.xlu0 %2494
        %2498 = vset.pattern.permute.xlu0 0
        %2499 = vperm.xlu0 %2498, %v2385
        %v2500 = vpop.permute.xlu0 %2499
        %2503 = vset.pattern.permute.xlu0 0
        %2504 = vperm.xlu0 %2503, %v2386
        %v2505 = vpop.permute.xlu0 %2504
        %2508 = vset.pattern.permute.xlu0 0
        %2509 = vperm.xlu0 %2508, %v2387
        %v2510 = vpop.permute.xlu0 %2509
        %2513 = vset.pattern.permute.xlu0 0
        %2514 = vperm.xlu0 %2513, %v2388
        %v2515 = vpop.permute.xlu0 %2514
        %2518 = vset.pattern.permute.xlu0 0
        %2519 = vperm.xlu0 %2518, %v2389
        %v2520 = vpop.permute.xlu0 %2519
        %2523 = vset.pattern.permute.xlu0 0
        %2524 = vperm.xlu0 %2523, %v2390
        %v2525 = vpop.permute.xlu0 %2524
        %2528 = vset.pattern.permute.xlu0 0
        %2529 = vperm.xlu0 %2528, %v2391
        %v2530 = vpop.permute.xlu0 %2529
        %2533 = vset.pattern.permute.xlu0 0
        %2534 = vperm.xlu0 %2533, %v2392
        %v2535 = vpop.permute.xlu0 %2534
        %2538 = vset.pattern.permute.xlu0 0
        %2539 = vperm.xlu0 %2538, %v2393
        %v2540 = vpop.permute.xlu0 %2539
        %2543 = vset.pattern.permute.xlu0 0
        %2544 = vperm.xlu0 %2543, %v2394
        %v2545 = vpop.permute.xlu0 %2544
        %2548 = vset.pattern.permute.xlu0 0
        %2549 = vperm.xlu0 %2548, %v2395
        %v2550 = vpop.permute.xlu0 %2549
        %2553 = vset.pattern.permute.xlu0 0
        %2554 = vperm.xlu0 %2553, %v2396
        %v2555 = vpop.permute.xlu0 %2554
        %v2557 = vmul.f32 %v2400, %v799
        %v2558 = vmul.f32 %v2405, %v800
        %v2559 = vmul.f32 %v2410, %v801
        %v2560 = vmul.f32 %v2415, %v802
        %v2561 = vmul.f32 %v2420, %v803
        %v2562 = vmul.f32 %v2425, %v804
        %v2563 = vmul.f32 %v2430, %v805
        %v2564 = vmul.f32 %v2435, %v806
        %v2565 = vmul.f32 %v2440, %v807
        %v2566 = vmul.f32 %v2445, %v808
        %v2567 = vmul.f32 %v2450, %v809
        %v2568 = vmul.f32 %v2455, %v810
        %v2569 = vmul.f32 %v2460, %v811
        %v2570 = vmul.f32 %v2465, %v812
        %v2571 = vmul.f32 %v2470, %v813
        %v2572 = vmul.f32 %v2475, %v814
        %v2573 = vmul.f32 %v2480, %v815
        %v2574 = vmul.f32 %v2485, %v816
        %v2575 = vmul.f32 %v2490, %v817
        %v2576 = vmul.f32 %v2495, %v818
        %v2577 = vmul.f32 %v2500, %v819
        %v2578 = vmul.f32 %v2505, %v820
        %v2579 = vmul.f32 %v2510, %v821
        %v2580 = vmul.f32 %v2515, %v822
        %v2581 = vmul.f32 %v2520, %v823
        %v2582 = vmul.f32 %v2525, %v824
        %v2583 = vmul.f32 %v2530, %v825
        %v2584 = vmul.f32 %v2535, %v826
        %v2585 = vmul.f32 %v2540, %v827
        %v2586 = vmul.f32 %v2545, %v828
        %v2587 = vmul.f32 %v2550, %v829
        %v2588 = vmul.f32 %v2555, %v830
        %v2589 = vsel %vm873, %v2557, 0.0
        %v2590 = vsel %vm873, %v2558, 0.0
        %v2591 = vadd.f32 %v2589, %v2590
        %v2592 = vrot.slane %v2591, 4
        %v2593 = vadd.f32 %v2591, %v2592
        %v2594 = vrot.slane %v2593, 2
        %v2595 = vadd.f32 %v2593, %v2594
        %v2596 = vrot.slane %v2595, 1
        %v2597 = vadd.f32 %v2595, %v2596
        %v2598 = vsel %vm873, %v2559, 0.0
        %v2599 = vsel %vm873, %v2560, 0.0
        %v2600 = vadd.f32 %v2598, %v2599
        %v2601 = vrot.slane %v2600, 4
        %v2602 = vadd.f32 %v2600, %v2601
        %v2603 = vrot.slane %v2602, 2
        %v2604 = vadd.f32 %v2602, %v2603
        %v2605 = vrot.slane %v2604, 1
        %v2606 = vadd.f32 %v2604, %v2605
        %v2607 = vsel %vm873, %v2561, 0.0
        %v2608 = vsel %vm873, %v2562, 0.0
        %v2609 = vadd.f32 %v2607, %v2608
        %v2610 = vrot.slane %v2609, 4
        %v2611 = vadd.f32 %v2609, %v2610
        %v2612 = vrot.slane %v2611, 2
        %v2613 = vadd.f32 %v2611, %v2612
        %v2614 = vrot.slane %v2613, 1
        %v2615 = vadd.f32 %v2613, %v2614
        %v2616 = vsel %vm873, %v2563, 0.0
        %v2617 = vsel %vm873, %v2564, 0.0
        %v2618 = vadd.f32 %v2616, %v2617
        %v2619 = vrot.slane %v2618, 4
        %v2620 = vadd.f32 %v2618, %v2619
        %v2621 = vrot.slane %v2620, 2
        %v2622 = vadd.f32 %v2620, %v2621
        %v2623 = vrot.slane %v2622, 1
        %v2624 = vadd.f32 %v2622, %v2623
        %v2625 = vsel %vm873, %v2565, 0.0
        %v2626 = vsel %vm873, %v2566, 0.0
        %v2627 = vadd.f32 %v2625, %v2626
        %v2628 = vrot.slane %v2627, 4
        %v2629 = vadd.f32 %v2627, %v2628
        %v2630 = vrot.slane %v2629, 2
        %v2631 = vadd.f32 %v2629, %v2630
        %v2632 = vrot.slane %v2631, 1
        %v2633 = vadd.f32 %v2631, %v2632
        %v2634 = vsel %vm873, %v2567, 0.0
        %v2635 = vsel %vm873, %v2568, 0.0
        %v2636 = vadd.f32 %v2634, %v2635
        %v2637 = vrot.slane %v2636, 4
        %v2638 = vadd.f32 %v2636, %v2637
        %v2639 = vrot.slane %v2638, 2
        %v2640 = vadd.f32 %v2638, %v2639
        %v2641 = vrot.slane %v2640, 1
        %v2642 = vadd.f32 %v2640, %v2641
        %v2643 = vsel %vm873, %v2569, 0.0
        %v2644 = vsel %vm873, %v2570, 0.0
        %v2645 = vadd.f32 %v2643, %v2644
        %v2646 = vrot.slane %v2645, 4
        %v2647 = vadd.f32 %v2645, %v2646
        %v2648 = vrot.slane %v2647, 2
        %v2649 = vadd.f32 %v2647, %v2648
        %v2650 = vrot.slane %v2649, 1
        %v2651 = vadd.f32 %v2649, %v2650
        %v2652 = vsel %vm873, %v2571, 0.0
        %v2653 = vsel %vm873, %v2572, 0.0
        %v2654 = vadd.f32 %v2652, %v2653
        %v2655 = vrot.slane %v2654, 4
        %v2656 = vadd.f32 %v2654, %v2655
        %v2657 = vrot.slane %v2656, 2
        %v2658 = vadd.f32 %v2656, %v2657
        %v2659 = vrot.slane %v2658, 1
        %v2660 = vadd.f32 %v2658, %v2659
        %v2661 = vsel %vm873, %v2573, 0.0
        %v2662 = vsel %vm873, %v2574, 0.0
        %v2663 = vadd.f32 %v2661, %v2662
        %v2664 = vrot.slane %v2663, 4
        %v2665 = vadd.f32 %v2663, %v2664
        %v2666 = vrot.slane %v2665, 2
        %v2667 = vadd.f32 %v2665, %v2666
        %v2668 = vrot.slane %v2667, 1
        %v2669 = vadd.f32 %v2667, %v2668
        %v2670 = vsel %vm873, %v2575, 0.0
        %v2671 = vsel %vm873, %v2576, 0.0
        %v2672 = vadd.f32 %v2670, %v2671
        %v2673 = vrot.slane %v2672, 4
        %v2674 = vadd.f32 %v2672, %v2673
        %v2675 = vrot.slane %v2674, 2
        %v2676 = vadd.f32 %v2674, %v2675
        %v2677 = vrot.slane %v2676, 1
        %v2678 = vadd.f32 %v2676, %v2677
        %v2679 = vsel %vm873, %v2577, 0.0
        %v2680 = vsel %vm873, %v2578, 0.0
        %v2681 = vadd.f32 %v2679, %v2680
        %v2682 = vrot.slane %v2681, 4
        %v2683 = vadd.f32 %v2681, %v2682
        %v2684 = vrot.slane %v2683, 2
        %v2685 = vadd.f32 %v2683, %v2684
        %v2686 = vrot.slane %v2685, 1
        %v2687 = vadd.f32 %v2685, %v2686
        %v2688 = vsel %vm873, %v2579, 0.0
        %v2689 = vsel %vm873, %v2580, 0.0
        %v2690 = vadd.f32 %v2688, %v2689
        %v2691 = vrot.slane %v2690, 4
        %v2692 = vadd.f32 %v2690, %v2691
        %v2693 = vrot.slane %v2692, 2
        %v2694 = vadd.f32 %v2692, %v2693
        %v2695 = vrot.slane %v2694, 1
        %v2696 = vadd.f32 %v2694, %v2695
        %v2697 = vsel %vm873, %v2581, 0.0
        %v2698 = vsel %vm873, %v2582, 0.0
        %v2699 = vadd.f32 %v2697, %v2698
        %v2700 = vrot.slane %v2699, 4
        %v2701 = vadd.f32 %v2699, %v2700
        %v2702 = vrot.slane %v2701, 2
        %v2703 = vadd.f32 %v2701, %v2702
        %v2704 = vrot.slane %v2703, 1
        %v2705 = vadd.f32 %v2703, %v2704
        %v2706 = vsel %vm873, %v2583, 0.0
        %v2707 = vsel %vm873, %v2584, 0.0
        %v2708 = vadd.f32 %v2706, %v2707
        %v2709 = vrot.slane %v2708, 4
        %v2710 = vadd.f32 %v2708, %v2709
        %v2711 = vrot.slane %v2710, 2
        %v2712 = vadd.f32 %v2710, %v2711
        %v2713 = vrot.slane %v2712, 1
        %v2714 = vadd.f32 %v2712, %v2713
        %v2715 = vsel %vm873, %v2585, 0.0
        %v2716 = vsel %vm873, %v2586, 0.0
        %v2717 = vadd.f32 %v2715, %v2716
        %v2718 = vrot.slane %v2717, 4
        %v2719 = vadd.f32 %v2717, %v2718
        %v2720 = vrot.slane %v2719, 2
        %v2721 = vadd.f32 %v2719, %v2720
        %v2722 = vrot.slane %v2721, 1
        %v2723 = vadd.f32 %v2721, %v2722
        %v2724 = vsel %vm873, %v2587, 0.0
        %v2725 = vsel %vm873, %v2588, 0.0
        %v2726 = vadd.f32 %v2724, %v2725
        %v2727 = vrot.slane %v2726, 4
        %v2728 = vadd.f32 %v2726, %v2727
        %v2729 = vrot.slane %v2728, 2
        %v2730 = vadd.f32 %v2728, %v2729
        %v2731 = vrot.slane %v2730, 1
        %v2732 = vadd.f32 %v2730, %v2731
        %v2733 = vlaneseq
        %v2734 = vshrl.u32 %v2733, 7
        %v2735 = vsub.s32 1, %v2734
        %v2736 = vrot.slane %v835, %v2735
        %2738 = vrot.lane.b32.xlu0 %v2736, 16
        %v2739 = vpop.permute.xlu0 %2738
        %v2741 = vmul.f32 %v799, %v2739
        %v2742 = vmul.f32 %v800, %v2739
        %v2743 = vmul.f32 %v801, %v2739
        %v2744 = vmul.f32 %v802, %v2739
        %v2745 = vmul.f32 %v803, %v2739
        %v2746 = vmul.f32 %v804, %v2739
        %v2747 = vmul.f32 %v805, %v2739
        %v2748 = vmul.f32 %v806, %v2739
        %v2749 = vmul.f32 %v807, %v2739
        %v2750 = vmul.f32 %v808, %v2739
        %v2751 = vmul.f32 %v809, %v2739
        %v2752 = vmul.f32 %v810, %v2739
        %v2753 = vmul.f32 %v811, %v2739
        %v2754 = vmul.f32 %v812, %v2739
        %v2755 = vmul.f32 %v813, %v2739
        %v2756 = vmul.f32 %v814, %v2739
        %v2757 = vmul.f32 %v815, %v2739
        %v2758 = vmul.f32 %v816, %v2739
        %v2759 = vmul.f32 %v817, %v2739
        %v2760 = vmul.f32 %v818, %v2739
        %v2761 = vmul.f32 %v819, %v2739
        %v2762 = vmul.f32 %v820, %v2739
        %v2763 = vmul.f32 %v821, %v2739
        %v2764 = vmul.f32 %v822, %v2739
        %v2765 = vmul.f32 %v823, %v2739
        %v2766 = vmul.f32 %v824, %v2739
        %v2767 = vmul.f32 %v825, %v2739
        %v2768 = vmul.f32 %v826, %v2739
        %v2769 = vmul.f32 %v827, %v2739
        %v2770 = vmul.f32 %v828, %v2739
        %v2771 = vmul.f32 %v829, %v2739
        %v2772 = vmul.f32 %v830, %v2739
        %2805 = vrot.lane.b32.xlu0 %v2741, 112
        %v2806 = vpop.permute.xlu0 %2805
        %2807 = vrot.lane.b32.xlu0 %v2742, 112
        %v2808 = vpop.permute.xlu0 %2807
        %2809 = vrot.lane.b32.xlu0 %v2743, 112
        %v2810 = vpop.permute.xlu0 %2809
        %2811 = vrot.lane.b32.xlu0 %v2744, 112
        %v2812 = vpop.permute.xlu0 %2811
        %2813 = vrot.lane.b32.xlu0 %v2745, 112
        %v2814 = vpop.permute.xlu0 %2813
        %2815 = vrot.lane.b32.xlu0 %v2746, 112
        %v2816 = vpop.permute.xlu0 %2815
        %2817 = vrot.lane.b32.xlu0 %v2747, 112
        %v2818 = vpop.permute.xlu0 %2817
        %2819 = vrot.lane.b32.xlu0 %v2748, 112
        %v2820 = vpop.permute.xlu0 %2819
        %2821 = vrot.lane.b32.xlu0 %v2749, 112
        %v2822 = vpop.permute.xlu0 %2821
        %2823 = vrot.lane.b32.xlu0 %v2750, 112
        %v2824 = vpop.permute.xlu0 %2823
        %2825 = vrot.lane.b32.xlu0 %v2751, 112
        %v2826 = vpop.permute.xlu0 %2825
        %2827 = vrot.lane.b32.xlu0 %v2752, 112
        %v2828 = vpop.permute.xlu0 %2827
        %2829 = vrot.lane.b32.xlu0 %v2753, 112
        %v2830 = vpop.permute.xlu0 %2829
        %2831 = vrot.lane.b32.xlu0 %v2754, 112
        %v2832 = vpop.permute.xlu0 %2831
        %2833 = vrot.lane.b32.xlu0 %v2755, 112
        %v2834 = vpop.permute.xlu0 %2833
        %2835 = vrot.lane.b32.xlu0 %v2756, 112
        %v2836 = vpop.permute.xlu0 %2835
        %2837 = vrot.lane.b32.xlu0 %v2757, 112
        %v2838 = vpop.permute.xlu0 %2837
        %2839 = vrot.lane.b32.xlu0 %v2758, 112
        %v2840 = vpop.permute.xlu0 %2839
        %2841 = vrot.lane.b32.xlu0 %v2759, 112
        %v2842 = vpop.permute.xlu0 %2841
        %2843 = vrot.lane.b32.xlu0 %v2760, 112
        %v2844 = vpop.permute.xlu0 %2843
        %2845 = vrot.lane.b32.xlu0 %v2761, 112
        %v2846 = vpop.permute.xlu0 %2845
        %2847 = vrot.lane.b32.xlu0 %v2762, 112
        %v2848 = vpop.permute.xlu0 %2847
        %2849 = vrot.lane.b32.xlu0 %v2763, 112
        %v2850 = vpop.permute.xlu0 %2849
        %2851 = vrot.lane.b32.xlu0 %v2764, 112
        %v2852 = vpop.permute.xlu0 %2851
        %2853 = vrot.lane.b32.xlu0 %v2765, 112
        %v2854 = vpop.permute.xlu0 %2853
        %2855 = vrot.lane.b32.xlu0 %v2766, 112
        %v2856 = vpop.permute.xlu0 %2855
        %2857 = vrot.lane.b32.xlu0 %v2767, 112
        %v2858 = vpop.permute.xlu0 %2857
        %2859 = vrot.lane.b32.xlu0 %v2768, 112
        %v2860 = vpop.permute.xlu0 %2859
        %2861 = vrot.lane.b32.xlu0 %v2769, 112
        %v2862 = vpop.permute.xlu0 %2861
        %2863 = vrot.lane.b32.xlu0 %v2770, 112
        %v2864 = vpop.permute.xlu0 %2863
        %2865 = vrot.lane.b32.xlu0 %v2771, 112
        %v2866 = vpop.permute.xlu0 %2865
        %2867 = vrot.lane.b32.xlu0 %v2772, 112
        %v2868 = vpop.permute.xlu0 %2867
        %v2901 = vsel %vm873, %v2806, 0.0
        %2902 = vadd.xlane.f32.xlu0 %v2901
        %v2903 = vpop.xlane.xlu0 %2902
        %v2904 = vsel %vm873, %v2808, 0.0
        %2905 = vadd.xlane.f32.xlu0 %v2904
        %v2906 = vpop.xlane.xlu0 %2905
        %v2907 = vsel %vm873, %v2810, 0.0
        %2908 = vadd.xlane.f32.xlu0 %v2907
        %v2909 = vpop.xlane.xlu0 %2908
        %v2910 = vsel %vm873, %v2812, 0.0
        %2911 = vadd.xlane.f32.xlu0 %v2910
        %v2912 = vpop.xlane.xlu0 %2911
        %v2913 = vsel %vm873, %v2814, 0.0
        %2914 = vadd.xlane.f32.xlu0 %v2913
        %v2915 = vpop.xlane.xlu0 %2914
        %v2916 = vsel %vm873, %v2816, 0.0
        %2917 = vadd.xlane.f32.xlu0 %v2916
        %v2918 = vpop.xlane.xlu0 %2917
        %v2919 = vsel %vm873, %v2818, 0.0
        %2920 = vadd.xlane.f32.xlu0 %v2919
        %v2921 = vpop.xlane.xlu0 %2920
        %v2922 = vsel %vm873, %v2820, 0.0
        %2923 = vadd.xlane.f32.xlu0 %v2922
        %v2924 = vpop.xlane.xlu0 %2923
        %v2925 = vsel %vm873, %v2822, 0.0
        %2926 = vadd.xlane.f32.xlu0 %v2925
        %v2927 = vpop.xlane.xlu0 %2926
        %v2928 = vsel %vm873, %v2824, 0.0
        %2929 = vadd.xlane.f32.xlu0 %v2928
        %v2930 = vpop.xlane.xlu0 %2929
        %v2931 = vsel %vm873, %v2826, 0.0
        %2932 = vadd.xlane.f32.xlu0 %v2931
        %v2933 = vpop.xlane.xlu0 %2932
        %v2934 = vsel %vm873, %v2828, 0.0
        %2935 = vadd.xlane.f32.xlu0 %v2934
        %v2936 = vpop.xlane.xlu0 %2935
        %v2937 = vsel %vm873, %v2830, 0.0
        %2938 = vadd.xlane.f32.xlu0 %v2937
        %v2939 = vpop.xlane.xlu0 %2938
        %v2940 = vsel %vm873, %v2832, 0.0
        %2941 = vadd.xlane.f32.xlu0 %v2940
        %v2942 = vpop.xlane.xlu0 %2941
        %v2943 = vsel %vm873, %v2834, 0.0
        %2944 = vadd.xlane.f32.xlu0 %v2943
        %v2945 = vpop.xlane.xlu0 %2944
        %v2946 = vsel %vm873, %v2836, 0.0
        %2947 = vadd.xlane.f32.xlu0 %v2946
        %v2948 = vpop.xlane.xlu0 %2947
        %v2949 = vsel %vm873, %v2838, 0.0
        %2950 = vadd.xlane.f32.xlu0 %v2949
        %v2951 = vpop.xlane.xlu0 %2950
        %v2952 = vsel %vm873, %v2840, 0.0
        %2953 = vadd.xlane.f32.xlu0 %v2952
        %v2954 = vpop.xlane.xlu0 %2953
        %v2955 = vsel %vm873, %v2842, 0.0
        %2956 = vadd.xlane.f32.xlu0 %v2955
        %v2957 = vpop.xlane.xlu0 %2956
        %v2958 = vsel %vm873, %v2844, 0.0
        %2959 = vadd.xlane.f32.xlu0 %v2958
        %v2960 = vpop.xlane.xlu0 %2959
        %v2961 = vsel %vm873, %v2846, 0.0
        %2962 = vadd.xlane.f32.xlu0 %v2961
        %v2963 = vpop.xlane.xlu0 %2962
        %v2964 = vsel %vm873, %v2848, 0.0
        %2965 = vadd.xlane.f32.xlu0 %v2964
        %v2966 = vpop.xlane.xlu0 %2965
        %v2967 = vsel %vm873, %v2850, 0.0
        %2968 = vadd.xlane.f32.xlu0 %v2967
        %v2969 = vpop.xlane.xlu0 %2968
        %v2970 = vsel %vm873, %v2852, 0.0
        %2971 = vadd.xlane.f32.xlu0 %v2970
        %v2972 = vpop.xlane.xlu0 %2971
        %v2973 = vsel %vm873, %v2854, 0.0
        %2974 = vadd.xlane.f32.xlu0 %v2973
        %v2975 = vpop.xlane.xlu0 %2974
        %v2976 = vsel %vm873, %v2856, 0.0
        %2977 = vadd.xlane.f32.xlu0 %v2976
        %v2978 = vpop.xlane.xlu0 %2977
        %v2979 = vsel %vm873, %v2858, 0.0
        %2980 = vadd.xlane.f32.xlu0 %v2979
        %v2981 = vpop.xlane.xlu0 %2980
        %v2982 = vsel %vm873, %v2860, 0.0
        %2983 = vadd.xlane.f32.xlu0 %v2982
        %v2984 = vpop.xlane.xlu0 %2983
        %v2985 = vsel %vm873, %v2862, 0.0
        %2986 = vadd.xlane.f32.xlu0 %v2985
        %v2987 = vpop.xlane.xlu0 %2986
        %v2988 = vsel %vm873, %v2864, 0.0
        %2989 = vadd.xlane.f32.xlu0 %v2988
        %v2990 = vpop.xlane.xlu0 %2989
        %v2991 = vsel %vm873, %v2866, 0.0
        %2992 = vadd.xlane.f32.xlu0 %v2991
        %v2993 = vpop.xlane.xlu0 %2992
        %v2994 = vsel %vm873, %v2868, 0.0
        %2995 = vadd.xlane.f32.xlu0 %v2994
        %v2996 = vpop.xlane.xlu0 %2995
        %v2997 = vrot.slane %v836, 1
        %s2998 = vtos %v2997
        %v2999 = vstv %s2998
        %v3001 = vadd.f32 %v2903, %v2999
        %v3002 = vadd.f32 %v2906, %v2999
        %v3003 = vadd.f32 %v2909, %v2999
        %v3004 = vadd.f32 %v2912, %v2999
        %v3005 = vadd.f32 %v2915, %v2999
        %v3006 = vadd.f32 %v2918, %v2999
        %v3007 = vadd.f32 %v2921, %v2999
        %v3008 = vadd.f32 %v2924, %v2999
        %v3009 = vadd.f32 %v2927, %v2999
        %v3010 = vadd.f32 %v2930, %v2999
        %v3011 = vadd.f32 %v2933, %v2999
        %v3012 = vadd.f32 %v2936, %v2999
        %v3013 = vadd.f32 %v2939, %v2999
        %v3014 = vadd.f32 %v2942, %v2999
        %v3015 = vadd.f32 %v2945, %v2999
        %v3016 = vadd.f32 %v2948, %v2999
        %v3017 = vadd.f32 %v2951, %v2999
        %v3018 = vadd.f32 %v2954, %v2999
        %v3019 = vadd.f32 %v2957, %v2999
        %v3020 = vadd.f32 %v2960, %v2999
        %v3021 = vadd.f32 %v2963, %v2999
        %v3022 = vadd.f32 %v2966, %v2999
        %v3023 = vadd.f32 %v2969, %v2999
        %v3024 = vadd.f32 %v2972, %v2999
        %v3025 = vadd.f32 %v2975, %v2999
        %v3026 = vadd.f32 %v2978, %v2999
        %v3027 = vadd.f32 %v2981, %v2999
        %v3028 = vadd.f32 %v2984, %v2999
        %v3029 = vadd.f32 %v2987, %v2999
        %v3030 = vadd.f32 %v2990, %v2999
        %v3031 = vadd.f32 %v2993, %v2999
        %v3032 = vadd.f32 %v2996, %v2999
        %v3033 = vadd.f32 %v3001, %v1014
        %v3034 = vadd.f32 %v3002, %v1018
        %v3035 = vadd.f32 %v3003, %v1025
        %v3036 = vadd.f32 %v3004, %v1029
        %v3037 = vadd.f32 %v3005, %v1036
        %v3038 = vadd.f32 %v3006, %v1040
        %v3039 = vadd.f32 %v3007, %v1047
        %v3040 = vadd.f32 %v3008, %v1051
        %v3041 = vadd.f32 %v3009, %v1058
        %v3042 = vadd.f32 %v3010, %v1062
        %v3043 = vadd.f32 %v3011, %v1069
        %v3044 = vadd.f32 %v3012, %v1073
        %v3045 = vadd.f32 %v3013, %v1080
        %v3046 = vadd.f32 %v3014, %v1084
        %v3047 = vadd.f32 %v3015, %v1091
        %v3048 = vadd.f32 %v3016, %v1095
        %v3049 = vadd.f32 %v3017, %v1102
        %v3050 = vadd.f32 %v3018, %v1106
        %v3051 = vadd.f32 %v3019, %v1113
        %v3052 = vadd.f32 %v3020, %v1117
        %v3053 = vadd.f32 %v3021, %v1124
        %v3054 = vadd.f32 %v3022, %v1128
        %v3055 = vadd.f32 %v3023, %v1135
        %v3056 = vadd.f32 %v3024, %v1139
        %v3057 = vadd.f32 %v3025, %v1146
        %v3058 = vadd.f32 %v3026, %v1150
        %v3059 = vadd.f32 %v3027, %v1157
        %v3060 = vadd.f32 %v3028, %v1161
        %v3061 = vadd.f32 %v3029, %v1168
        %v3062 = vadd.f32 %v3030, %v1172
        %v3063 = vadd.f32 %v3031, %v1179
        %v3064 = vadd.f32 %v3032, %v1183
        %3097 = vset.pattern.permute.xlu0 0
        %3098 = vperm.xlu0 %3097, %v3033
        %v3099 = vpop.permute.xlu0 %3098
        %3100 = vset.pattern.permute.xlu0 0
        %3101 = vperm.xlu0 %3100, %v3034
        %v3102 = vpop.permute.xlu0 %3101
        %3103 = vset.pattern.permute.xlu0 0
        %3104 = vperm.xlu0 %3103, %v3035
        %v3105 = vpop.permute.xlu0 %3104
        %3106 = vset.pattern.permute.xlu0 0
        %3107 = vperm.xlu0 %3106, %v3036
        %v3108 = vpop.permute.xlu0 %3107
        %3109 = vset.pattern.permute.xlu0 0
        %3110 = vperm.xlu0 %3109, %v3037
        %v3111 = vpop.permute.xlu0 %3110
        %3112 = vset.pattern.permute.xlu0 0
        %3113 = vperm.xlu0 %3112, %v3038
        %v3114 = vpop.permute.xlu0 %3113
        %3115 = vset.pattern.permute.xlu0 0
        %3116 = vperm.xlu0 %3115, %v3039
        %v3117 = vpop.permute.xlu0 %3116
        %3118 = vset.pattern.permute.xlu0 0
        %3119 = vperm.xlu0 %3118, %v3040
        %v3120 = vpop.permute.xlu0 %3119
        %3121 = vset.pattern.permute.xlu0 0
        %3122 = vperm.xlu0 %3121, %v3041
        %v3123 = vpop.permute.xlu0 %3122
        %3124 = vset.pattern.permute.xlu0 0
        %3125 = vperm.xlu0 %3124, %v3042
        %v3126 = vpop.permute.xlu0 %3125
        %3127 = vset.pattern.permute.xlu0 0
        %3128 = vperm.xlu0 %3127, %v3043
        %v3129 = vpop.permute.xlu0 %3128
        %3130 = vset.pattern.permute.xlu0 0
        %3131 = vperm.xlu0 %3130, %v3044
        %v3132 = vpop.permute.xlu0 %3131
        %3133 = vset.pattern.permute.xlu0 0
        %3134 = vperm.xlu0 %3133, %v3045
        %v3135 = vpop.permute.xlu0 %3134
        %3136 = vset.pattern.permute.xlu0 0
        %3137 = vperm.xlu0 %3136, %v3046
        %v3138 = vpop.permute.xlu0 %3137
        %3139 = vset.pattern.permute.xlu0 0
        %3140 = vperm.xlu0 %3139, %v3047
        %v3141 = vpop.permute.xlu0 %3140
        %3142 = vset.pattern.permute.xlu0 0
        %3143 = vperm.xlu0 %3142, %v3048
        %v3144 = vpop.permute.xlu0 %3143
        %3145 = vset.pattern.permute.xlu0 0
        %3146 = vperm.xlu0 %3145, %v3049
        %v3147 = vpop.permute.xlu0 %3146
        %3148 = vset.pattern.permute.xlu0 0
        %3149 = vperm.xlu0 %3148, %v3050
        %v3150 = vpop.permute.xlu0 %3149
        %3151 = vset.pattern.permute.xlu0 0
        %3152 = vperm.xlu0 %3151, %v3051
        %v3153 = vpop.permute.xlu0 %3152
        %3154 = vset.pattern.permute.xlu0 0
        %3155 = vperm.xlu0 %3154, %v3052
        %v3156 = vpop.permute.xlu0 %3155
        %3157 = vset.pattern.permute.xlu0 0
        %3158 = vperm.xlu0 %3157, %v3053
        %v3159 = vpop.permute.xlu0 %3158
        %3160 = vset.pattern.permute.xlu0 0
        %3161 = vperm.xlu0 %3160, %v3054
        %v3162 = vpop.permute.xlu0 %3161
        %3163 = vset.pattern.permute.xlu0 0
        %3164 = vperm.xlu0 %3163, %v3055
        %v3165 = vpop.permute.xlu0 %3164
        %3166 = vset.pattern.permute.xlu0 0
        %3167 = vperm.xlu0 %3166, %v3056
        %v3168 = vpop.permute.xlu0 %3167
        %3169 = vset.pattern.permute.xlu0 0
        %3170 = vperm.xlu0 %3169, %v3057
        %v3171 = vpop.permute.xlu0 %3170
        %3172 = vset.pattern.permute.xlu0 0
        %3173 = vperm.xlu0 %3172, %v3058
        %v3174 = vpop.permute.xlu0 %3173
        %3175 = vset.pattern.permute.xlu0 0
        %3176 = vperm.xlu0 %3175, %v3059
        %v3177 = vpop.permute.xlu0 %3176
        %3178 = vset.pattern.permute.xlu0 0
        %3179 = vperm.xlu0 %3178, %v3060
        %v3180 = vpop.permute.xlu0 %3179
        %3181 = vset.pattern.permute.xlu0 0
        %3182 = vperm.xlu0 %3181, %v3061
        %v3183 = vpop.permute.xlu0 %3182
        %3184 = vset.pattern.permute.xlu0 0
        %3185 = vperm.xlu0 %3184, %v3062
        %v3186 = vpop.permute.xlu0 %3185
        %3187 = vset.pattern.permute.xlu0 0
        %3188 = vperm.xlu0 %3187, %v3063
        %v3189 = vpop.permute.xlu0 %3188
        %3190 = vset.pattern.permute.xlu0 0
        %3191 = vperm.xlu0 %3190, %v3064
        %v3192 = vpop.permute.xlu0 %3191
        %v3193 = vlaneseq
        %v3194 = vshrl.u32 %v3193, 7
        %v3195 = vsub.s32 %v1377, %v3194
        %v3196 = vrot.slane %v3099, %v3195
        %v3197 = vlaneseq
        %v3198 = vshrl.u32 %v3197, 7
        %v3199 = vsub.s32 %v1382, %v3198
        %v3200 = vrot.slane %v3102, %v3199
        %v3201 = vsel %vm1387, %v3200, %v3196
        %v3202 = vlaneseq
        %v3203 = vshrl.u32 %v3202, 7
        %v3204 = vsub.s32 %v1377, %v3203
        %v3205 = vrot.slane %v3105, %v3204
        %v3206 = vlaneseq
        %v3207 = vshrl.u32 %v3206, 7
        %v3208 = vsub.s32 %v1382, %v3207
        %v3209 = vrot.slane %v3108, %v3208
        %v3210 = vsel %vm1387, %v3209, %v3205
        %v3211 = vlaneseq
        %v3212 = vshrl.u32 %v3211, 7
        %v3213 = vsub.s32 %v1377, %v3212
        %v3214 = vrot.slane %v3111, %v3213
        %v3215 = vlaneseq
        %v3216 = vshrl.u32 %v3215, 7
        %v3217 = vsub.s32 %v1382, %v3216
        %v3218 = vrot.slane %v3114, %v3217
        %v3219 = vsel %vm1387, %v3218, %v3214
        %v3220 = vlaneseq
        %v3221 = vshrl.u32 %v3220, 7
        %v3222 = vsub.s32 %v1377, %v3221
        %v3223 = vrot.slane %v3117, %v3222
        %v3224 = vlaneseq
        %v3225 = vshrl.u32 %v3224, 7
        %v3226 = vsub.s32 %v1382, %v3225
        %v3227 = vrot.slane %v3120, %v3226
        %v3228 = vsel %vm1387, %v3227, %v3223
        %v3229 = vlaneseq
        %v3230 = vshrl.u32 %v3229, 7
        %v3231 = vsub.s32 %v1377, %v3230
        %v3232 = vrot.slane %v3123, %v3231
        %v3233 = vlaneseq
        %v3234 = vshrl.u32 %v3233, 7
        %v3235 = vsub.s32 %v1382, %v3234
        %v3236 = vrot.slane %v3126, %v3235
        %v3237 = vsel %vm1387, %v3236, %v3232
        %v3238 = vlaneseq
        %v3239 = vshrl.u32 %v3238, 7
        %v3240 = vsub.s32 %v1377, %v3239
        %v3241 = vrot.slane %v3129, %v3240
        %v3242 = vlaneseq
        %v3243 = vshrl.u32 %v3242, 7
        %v3244 = vsub.s32 %v1382, %v3243
        %v3245 = vrot.slane %v3132, %v3244
        %v3246 = vsel %vm1387, %v3245, %v3241
        %v3247 = vlaneseq
        %v3248 = vshrl.u32 %v3247, 7
        %v3249 = vsub.s32 %v1377, %v3248
        %v3250 = vrot.slane %v3135, %v3249
        %v3251 = vlaneseq
        %v3252 = vshrl.u32 %v3251, 7
        %v3253 = vsub.s32 %v1382, %v3252
        %v3254 = vrot.slane %v3138, %v3253
        %v3255 = vsel %vm1387, %v3254, %v3250
        %v3256 = vlaneseq
        %v3257 = vshrl.u32 %v3256, 7
        %v3258 = vsub.s32 %v1377, %v3257
        %v3259 = vrot.slane %v3141, %v3258
        %v3260 = vlaneseq
        %v3261 = vshrl.u32 %v3260, 7
        %v3262 = vsub.s32 %v1382, %v3261
        %v3263 = vrot.slane %v3144, %v3262
        %v3264 = vsel %vm1387, %v3263, %v3259
        %v3265 = vlaneseq
        %v3266 = vshrl.u32 %v3265, 7
        %v3267 = vsub.s32 %v1377, %v3266
        %v3268 = vrot.slane %v3147, %v3267
        %v3269 = vlaneseq
        %v3270 = vshrl.u32 %v3269, 7
        %v3271 = vsub.s32 %v1382, %v3270
        %v3272 = vrot.slane %v3150, %v3271
        %v3273 = vsel %vm1387, %v3272, %v3268
        %v3274 = vlaneseq
        %v3275 = vshrl.u32 %v3274, 7
        %v3276 = vsub.s32 %v1377, %v3275
        %v3277 = vrot.slane %v3153, %v3276
        %v3278 = vlaneseq
        %v3279 = vshrl.u32 %v3278, 7
        %v3280 = vsub.s32 %v1382, %v3279
        %v3281 = vrot.slane %v3156, %v3280
        %v3282 = vsel %vm1387, %v3281, %v3277
        %v3283 = vlaneseq
        %v3284 = vshrl.u32 %v3283, 7
        %v3285 = vsub.s32 %v1377, %v3284
        %v3286 = vrot.slane %v3159, %v3285
        %v3287 = vlaneseq
        %v3288 = vshrl.u32 %v3287, 7
        %v3289 = vsub.s32 %v1382, %v3288
        %v3290 = vrot.slane %v3162, %v3289
        %v3291 = vsel %vm1387, %v3290, %v3286
        %v3292 = vlaneseq
        %v3293 = vshrl.u32 %v3292, 7
        %v3294 = vsub.s32 %v1377, %v3293
        %v3295 = vrot.slane %v3165, %v3294
        %v3296 = vlaneseq
        %v3297 = vshrl.u32 %v3296, 7
        %v3298 = vsub.s32 %v1382, %v3297
        %v3299 = vrot.slane %v3168, %v3298
        %v3300 = vsel %vm1387, %v3299, %v3295
        %v3301 = vlaneseq
        %v3302 = vshrl.u32 %v3301, 7
        %v3303 = vsub.s32 %v1377, %v3302
        %v3304 = vrot.slane %v3171, %v3303
        %v3305 = vlaneseq
        %v3306 = vshrl.u32 %v3305, 7
        %v3307 = vsub.s32 %v1382, %v3306
        %v3308 = vrot.slane %v3174, %v3307
        %v3309 = vsel %vm1387, %v3308, %v3304
        %v3310 = vlaneseq
        %v3311 = vshrl.u32 %v3310, 7
        %v3312 = vsub.s32 %v1377, %v3311
        %v3313 = vrot.slane %v3177, %v3312
        %v3314 = vlaneseq
        %v3315 = vshrl.u32 %v3314, 7
        %v3316 = vsub.s32 %v1382, %v3315
        %v3317 = vrot.slane %v3180, %v3316
        %v3318 = vsel %vm1387, %v3317, %v3313
        %v3319 = vlaneseq
        %v3320 = vshrl.u32 %v3319, 7
        %v3321 = vsub.s32 %v1377, %v3320
        %v3322 = vrot.slane %v3183, %v3321
        %v3323 = vlaneseq
        %v3324 = vshrl.u32 %v3323, 7
        %v3325 = vsub.s32 %v1382, %v3324
        %v3326 = vrot.slane %v3186, %v3325
        %v3327 = vsel %vm1387, %v3326, %v3322
        %v3328 = vlaneseq
        %v3329 = vshrl.u32 %v3328, 7
        %v3330 = vsub.s32 %v1377, %v3329
        %v3331 = vrot.slane %v3189, %v3330
        %v3332 = vlaneseq
        %v3333 = vshrl.u32 %v3332, 7
        %v3334 = vsub.s32 %v1382, %v3333
        %v3335 = vrot.slane %v3192, %v3334
        %v3336 = vsel %vm1387, %v3335, %v3331
        %v3337 = vsel %vm1524, %v3210, %v3201
        %v3338 = vsel %vm1526, %v3219, %v3337
        %v3339 = vsel %vm1528, %v3228, %v3338
        %v3340 = vsel %vm1530, %v3237, %v3339
        %v3341 = vsel %vm1532, %v3246, %v3340
        %v3342 = vsel %vm1534, %v3255, %v3341
        %v3343 = vsel %vm1536, %v3264, %v3342
        %v3344 = vsel %vm1524, %v3282, %v3273
        %v3345 = vsel %vm1526, %v3291, %v3344
        %v3346 = vsel %vm1528, %v3300, %v3345
        %v3347 = vsel %vm1530, %v3309, %v3346
        %v3348 = vsel %vm1532, %v3318, %v3347
        %v3349 = vsel %vm1534, %v3327, %v3348
        %v3350 = vsel %vm1536, %v3336, %v3349
        %v3353 = vsel %vm873, %v3343, -inf
        %3354 = vmax.xlane.f32.xlu0 %v3353
        %v3355 = vpop.xlane.xlu0 %3354
        %v3356 = vsel %vm873, %v3350, -inf
        %3357 = vmax.xlane.f32.xlu0 %v3356
        %v3358 = vpop.xlane.xlu0 %3357
        %v3361 = vlaneseq
        %v3362 = vshrl.u32 %v3361, 7
        %v3363 = vsub.s32 0, %v3362
        %v3364 = vrot.slane %v3355, %v3363
        %v3365 = vlaneseq
        %v3366 = vshrl.u32 %v3365, 7
        %v3367 = vsub.s32 1, %v3366
        %v3368 = vrot.slane %v3355, %v3367
        %v3369 = vlaneseq
        %v3370 = vshrl.u32 %v3369, 7
        %v3371 = vsub.s32 2, %v3370
        %v3372 = vrot.slane %v3355, %v3371
        %v3373 = vlaneseq
        %v3374 = vshrl.u32 %v3373, 7
        %v3375 = vsub.s32 3, %v3374
        %v3376 = vrot.slane %v3355, %v3375
        %v3377 = vlaneseq
        %v3378 = vshrl.u32 %v3377, 7
        %v3379 = vsub.s32 4, %v3378
        %v3380 = vrot.slane %v3355, %v3379
        %v3381 = vlaneseq
        %v3382 = vshrl.u32 %v3381, 7
        %v3383 = vsub.s32 5, %v3382
        %v3384 = vrot.slane %v3355, %v3383
        %v3385 = vlaneseq
        %v3386 = vshrl.u32 %v3385, 7
        %v3387 = vsub.s32 6, %v3386
        %v3388 = vrot.slane %v3355, %v3387
        %v3389 = vlaneseq
        %v3390 = vshrl.u32 %v3389, 7
        %v3391 = vsub.s32 7, %v3390
        %v3392 = vrot.slane %v3355, %v3391
        %v3393 = vlaneseq
        %v3394 = vshrl.u32 %v3393, 7
        %v3395 = vsub.s32 0, %v3394
        %v3396 = vrot.slane %v3358, %v3395
        %v3397 = vlaneseq
        %v3398 = vshrl.u32 %v3397, 7
        %v3399 = vsub.s32 1, %v3398
        %v3400 = vrot.slane %v3358, %v3399
        %v3401 = vlaneseq
        %v3402 = vshrl.u32 %v3401, 7
        %v3403 = vsub.s32 2, %v3402
        %v3404 = vrot.slane %v3358, %v3403
        %v3405 = vlaneseq
        %v3406 = vshrl.u32 %v3405, 7
        %v3407 = vsub.s32 3, %v3406
        %v3408 = vrot.slane %v3358, %v3407
        %v3409 = vlaneseq
        %v3410 = vshrl.u32 %v3409, 7
        %v3411 = vsub.s32 4, %v3410
        %v3412 = vrot.slane %v3358, %v3411
        %v3413 = vlaneseq
        %v3414 = vshrl.u32 %v3413, 7
        %v3415 = vsub.s32 5, %v3414
        %v3416 = vrot.slane %v3358, %v3415
        %v3417 = vlaneseq
        %v3418 = vshrl.u32 %v3417, 7
        %v3419 = vsub.s32 6, %v3418
        %v3420 = vrot.slane %v3358, %v3419
        %v3421 = vlaneseq
        %v3422 = vshrl.u32 %v3421, 7
        %v3423 = vsub.s32 7, %v3422
        %v3424 = vrot.slane %v3358, %v3423
        %v3441 = vsub.f32 %v3033, %v3364
        %v3442 = vsub.f32 %v3034, %v3364
        %v3443 = vsub.f32 %v3035, %v3368
        %v3444 = vsub.f32 %v3036, %v3368
        %v3445 = vsub.f32 %v3037, %v3372
        %v3446 = vsub.f32 %v3038, %v3372
        %v3447 = vsub.f32 %v3039, %v3376
        %v3448 = vsub.f32 %v3040, %v3376
        %v3449 = vsub.f32 %v3041, %v3380
        %v3450 = vsub.f32 %v3042, %v3380
        %v3451 = vsub.f32 %v3043, %v3384
        %v3452 = vsub.f32 %v3044, %v3384
        %v3453 = vsub.f32 %v3045, %v3388
        %v3454 = vsub.f32 %v3046, %v3388
        %v3455 = vsub.f32 %v3047, %v3392
        %v3456 = vsub.f32 %v3048, %v3392
        %v3457 = vsub.f32 %v3049, %v3396
        %v3458 = vsub.f32 %v3050, %v3396
        %v3459 = vsub.f32 %v3051, %v3400
        %v3460 = vsub.f32 %v3052, %v3400
        %v3461 = vsub.f32 %v3053, %v3404
        %v3462 = vsub.f32 %v3054, %v3404
        %v3463 = vsub.f32 %v3055, %v3408
        %v3464 = vsub.f32 %v3056, %v3408
        %v3465 = vsub.f32 %v3057, %v3412
        %v3466 = vsub.f32 %v3058, %v3412
        %v3467 = vsub.f32 %v3059, %v3416
        %v3468 = vsub.f32 %v3060, %v3416
        %v3469 = vsub.f32 %v3061, %v3420
        %v3470 = vsub.f32 %v3062, %v3420
        %v3471 = vsub.f32 %v3063, %v3424
        %v3472 = vsub.f32 %v3064, %v3424
        %v3473 = vmul.f32 %v3441, 1.442695
        %v3474 = vpow.pop %v3473
        %v3475 = vmul.f32 %v3442, 1.442695
        %v3476 = vpow.pop %v3475
        %v3477 = vmul.f32 %v3443, 1.442695
        %v3478 = vpow.pop %v3477
        %v3479 = vmul.f32 %v3444, 1.442695
        %v3480 = vpow.pop %v3479
        %v3481 = vmul.f32 %v3445, 1.442695
        %v3482 = vpow.pop %v3481
        %v3483 = vmul.f32 %v3446, 1.442695
        %v3484 = vpow.pop %v3483
        %v3485 = vmul.f32 %v3447, 1.442695
        %v3486 = vpow.pop %v3485
        %v3487 = vmul.f32 %v3448, 1.442695
        %v3488 = vpow.pop %v3487
        %v3489 = vmul.f32 %v3449, 1.442695
        %v3490 = vpow.pop %v3489
        %v3491 = vmul.f32 %v3450, 1.442695
        %v3492 = vpow.pop %v3491
        %v3493 = vmul.f32 %v3451, 1.442695
        %v3494 = vpow.pop %v3493
        %v3495 = vmul.f32 %v3452, 1.442695
        %v3496 = vpow.pop %v3495
        %v3497 = vmul.f32 %v3453, 1.442695
        %v3498 = vpow.pop %v3497
        %v3499 = vmul.f32 %v3454, 1.442695
        %v3500 = vpow.pop %v3499
        %v3501 = vmul.f32 %v3455, 1.442695
        %v3502 = vpow.pop %v3501
        %v3503 = vmul.f32 %v3456, 1.442695
        %v3504 = vpow.pop %v3503
        %v3505 = vmul.f32 %v3457, 1.442695
        %v3506 = vpow.pop %v3505
        %v3507 = vmul.f32 %v3458, 1.442695
        %v3508 = vpow.pop %v3507
        %v3509 = vmul.f32 %v3459, 1.442695
        %v3510 = vpow.pop %v3509
        %v3511 = vmul.f32 %v3460, 1.442695
        %v3512 = vpow.pop %v3511
        %v3513 = vmul.f32 %v3461, 1.442695
        %v3514 = vpow.pop %v3513
        %v3515 = vmul.f32 %v3462, 1.442695
        %v3516 = vpow.pop %v3515
        %v3517 = vmul.f32 %v3463, 1.442695
        %v3518 = vpow.pop %v3517
        %v3519 = vmul.f32 %v3464, 1.442695
        %v3520 = vpow.pop %v3519
        %v3521 = vmul.f32 %v3465, 1.442695
        %v3522 = vpow.pop %v3521
        %v3523 = vmul.f32 %v3466, 1.442695
        %v3524 = vpow.pop %v3523
        %v3525 = vmul.f32 %v3467, 1.442695
        %v3526 = vpow.pop %v3525
        %v3527 = vmul.f32 %v3468, 1.442695
        %v3528 = vpow.pop %v3527
        %v3529 = vmul.f32 %v3469, 1.442695
        %v3530 = vpow.pop %v3529
        %v3531 = vmul.f32 %v3470, 1.442695
        %v3532 = vpow.pop %v3531
        %v3533 = vmul.f32 %v3471, 1.442695
        %v3534 = vpow.pop %v3533
        %v3535 = vmul.f32 %v3472, 1.442695
        %v3536 = vpow.pop %v3535
        %3569 = vset.pattern.permute.xlu0 0
        %3570 = vperm.xlu0 %3569, %v3474
        %v3571 = vpop.permute.xlu0 %3570
        %3572 = vset.pattern.permute.xlu0 0
        %3573 = vperm.xlu0 %3572, %v3476
        %v3574 = vpop.permute.xlu0 %3573
        %3575 = vset.pattern.permute.xlu0 0
        %3576 = vperm.xlu0 %3575, %v3478
        %v3577 = vpop.permute.xlu0 %3576
        %3578 = vset.pattern.permute.xlu0 0
        %3579 = vperm.xlu0 %3578, %v3480
        %v3580 = vpop.permute.xlu0 %3579
        %3581 = vset.pattern.permute.xlu0 0
        %3582 = vperm.xlu0 %3581, %v3482
        %v3583 = vpop.permute.xlu0 %3582
        %3584 = vset.pattern.permute.xlu0 0
        %3585 = vperm.xlu0 %3584, %v3484
        %v3586 = vpop.permute.xlu0 %3585
        %3587 = vset.pattern.permute.xlu0 0
        %3588 = vperm.xlu0 %3587, %v3486
        %v3589 = vpop.permute.xlu0 %3588
        %3590 = vset.pattern.permute.xlu0 0
        %3591 = vperm.xlu0 %3590, %v3488
        %v3592 = vpop.permute.xlu0 %3591
        %3593 = vset.pattern.permute.xlu0 0
        %3594 = vperm.xlu0 %3593, %v3490
        %v3595 = vpop.permute.xlu0 %3594
        %3596 = vset.pattern.permute.xlu0 0
        %3597 = vperm.xlu0 %3596, %v3492
        %v3598 = vpop.permute.xlu0 %3597
        %3599 = vset.pattern.permute.xlu0 0
        %3600 = vperm.xlu0 %3599, %v3494
        %v3601 = vpop.permute.xlu0 %3600
        %3602 = vset.pattern.permute.xlu0 0
        %3603 = vperm.xlu0 %3602, %v3496
        %v3604 = vpop.permute.xlu0 %3603
        %3605 = vset.pattern.permute.xlu0 0
        %3606 = vperm.xlu0 %3605, %v3498
        %v3607 = vpop.permute.xlu0 %3606
        %3608 = vset.pattern.permute.xlu0 0
        %3609 = vperm.xlu0 %3608, %v3500
        %v3610 = vpop.permute.xlu0 %3609
        %3611 = vset.pattern.permute.xlu0 0
        %3612 = vperm.xlu0 %3611, %v3502
        %v3613 = vpop.permute.xlu0 %3612
        %3614 = vset.pattern.permute.xlu0 0
        %3615 = vperm.xlu0 %3614, %v3504
        %v3616 = vpop.permute.xlu0 %3615
        %3617 = vset.pattern.permute.xlu0 0
        %3618 = vperm.xlu0 %3617, %v3506
        %v3619 = vpop.permute.xlu0 %3618
        %3620 = vset.pattern.permute.xlu0 0
        %3621 = vperm.xlu0 %3620, %v3508
        %v3622 = vpop.permute.xlu0 %3621
        %3623 = vset.pattern.permute.xlu0 0
        %3624 = vperm.xlu0 %3623, %v3510
        %v3625 = vpop.permute.xlu0 %3624
        %3626 = vset.pattern.permute.xlu0 0
        %3627 = vperm.xlu0 %3626, %v3512
        %v3628 = vpop.permute.xlu0 %3627
        %3629 = vset.pattern.permute.xlu0 0
        %3630 = vperm.xlu0 %3629, %v3514
        %v3631 = vpop.permute.xlu0 %3630
        %3632 = vset.pattern.permute.xlu0 0
        %3633 = vperm.xlu0 %3632, %v3516
        %v3634 = vpop.permute.xlu0 %3633
        %3635 = vset.pattern.permute.xlu0 0
        %3636 = vperm.xlu0 %3635, %v3518
        %v3637 = vpop.permute.xlu0 %3636
        %3638 = vset.pattern.permute.xlu0 0
        %3639 = vperm.xlu0 %3638, %v3520
        %v3640 = vpop.permute.xlu0 %3639
        %3641 = vset.pattern.permute.xlu0 0
        %3642 = vperm.xlu0 %3641, %v3522
        %v3643 = vpop.permute.xlu0 %3642
        %3644 = vset.pattern.permute.xlu0 0
        %3645 = vperm.xlu0 %3644, %v3524
        %v3646 = vpop.permute.xlu0 %3645
        %3647 = vset.pattern.permute.xlu0 0
        %3648 = vperm.xlu0 %3647, %v3526
        %v3649 = vpop.permute.xlu0 %3648
        %3650 = vset.pattern.permute.xlu0 0
        %3651 = vperm.xlu0 %3650, %v3528
        %v3652 = vpop.permute.xlu0 %3651
        %3653 = vset.pattern.permute.xlu0 0
        %3654 = vperm.xlu0 %3653, %v3530
        %v3655 = vpop.permute.xlu0 %3654
        %3656 = vset.pattern.permute.xlu0 0
        %3657 = vperm.xlu0 %3656, %v3532
        %v3658 = vpop.permute.xlu0 %3657
        %3659 = vset.pattern.permute.xlu0 0
        %3660 = vperm.xlu0 %3659, %v3534
        %v3661 = vpop.permute.xlu0 %3660
        %3662 = vset.pattern.permute.xlu0 0
        %3663 = vperm.xlu0 %3662, %v3536
        %v3664 = vpop.permute.xlu0 %3663
        %v3665 = vlaneseq
        %v3666 = vshrl.u32 %v3665, 7
        %v3667 = vsub.s32 %v1377, %v3666
        %v3668 = vrot.slane %v3571, %v3667
        %v3669 = vlaneseq
        %v3670 = vshrl.u32 %v3669, 7
        %v3671 = vsub.s32 %v1382, %v3670
        %v3672 = vrot.slane %v3574, %v3671
        %v3673 = vsel %vm1387, %v3672, %v3668
        %v3674 = vlaneseq
        %v3675 = vshrl.u32 %v3674, 7
        %v3676 = vsub.s32 %v1377, %v3675
        %v3677 = vrot.slane %v3577, %v3676
        %v3678 = vlaneseq
        %v3679 = vshrl.u32 %v3678, 7
        %v3680 = vsub.s32 %v1382, %v3679
        %v3681 = vrot.slane %v3580, %v3680
        %v3682 = vsel %vm1387, %v3681, %v3677
        %v3683 = vlaneseq
        %v3684 = vshrl.u32 %v3683, 7
        %v3685 = vsub.s32 %v1377, %v3684
        %v3686 = vrot.slane %v3583, %v3685
        %v3687 = vlaneseq
        %v3688 = vshrl.u32 %v3687, 7
        %v3689 = vsub.s32 %v1382, %v3688
        %v3690 = vrot.slane %v3586, %v3689
        %v3691 = vsel %vm1387, %v3690, %v3686
        %v3692 = vlaneseq
        %v3693 = vshrl.u32 %v3692, 7
        %v3694 = vsub.s32 %v1377, %v3693
        %v3695 = vrot.slane %v3589, %v3694
        %v3696 = vlaneseq
        %v3697 = vshrl.u32 %v3696, 7
        %v3698 = vsub.s32 %v1382, %v3697
        %v3699 = vrot.slane %v3592, %v3698
        %v3700 = vsel %vm1387, %v3699, %v3695
        %v3701 = vlaneseq
        %v3702 = vshrl.u32 %v3701, 7
        %v3703 = vsub.s32 %v1377, %v3702
        %v3704 = vrot.slane %v3595, %v3703
        %v3705 = vlaneseq
        %v3706 = vshrl.u32 %v3705, 7
        %v3707 = vsub.s32 %v1382, %v3706
        %v3708 = vrot.slane %v3598, %v3707
        %v3709 = vsel %vm1387, %v3708, %v3704
        %v3710 = vlaneseq
        %v3711 = vshrl.u32 %v3710, 7
        %v3712 = vsub.s32 %v1377, %v3711
        %v3713 = vrot.slane %v3601, %v3712
        %v3714 = vlaneseq
        %v3715 = vshrl.u32 %v3714, 7
        %v3716 = vsub.s32 %v1382, %v3715
        %v3717 = vrot.slane %v3604, %v3716
        %v3718 = vsel %vm1387, %v3717, %v3713
        %v3719 = vlaneseq
        %v3720 = vshrl.u32 %v3719, 7
        %v3721 = vsub.s32 %v1377, %v3720
        %v3722 = vrot.slane %v3607, %v3721
        %v3723 = vlaneseq
        %v3724 = vshrl.u32 %v3723, 7
        %v3725 = vsub.s32 %v1382, %v3724
        %v3726 = vrot.slane %v3610, %v3725
        %v3727 = vsel %vm1387, %v3726, %v3722
        %v3728 = vlaneseq
        %v3729 = vshrl.u32 %v3728, 7
        %v3730 = vsub.s32 %v1377, %v3729
        %v3731 = vrot.slane %v3613, %v3730
        %v3732 = vlaneseq
        %v3733 = vshrl.u32 %v3732, 7
        %v3734 = vsub.s32 %v1382, %v3733
        %v3735 = vrot.slane %v3616, %v3734
        %v3736 = vsel %vm1387, %v3735, %v3731
        %v3737 = vlaneseq
        %v3738 = vshrl.u32 %v3737, 7
        %v3739 = vsub.s32 %v1377, %v3738
        %v3740 = vrot.slane %v3619, %v3739
        %v3741 = vlaneseq
        %v3742 = vshrl.u32 %v3741, 7
        %v3743 = vsub.s32 %v1382, %v3742
        %v3744 = vrot.slane %v3622, %v3743
        %v3745 = vsel %vm1387, %v3744, %v3740
        %v3746 = vlaneseq
        %v3747 = vshrl.u32 %v3746, 7
        %v3748 = vsub.s32 %v1377, %v3747
        %v3749 = vrot.slane %v3625, %v3748
        %v3750 = vlaneseq
        %v3751 = vshrl.u32 %v3750, 7
        %v3752 = vsub.s32 %v1382, %v3751
        %v3753 = vrot.slane %v3628, %v3752
        %v3754 = vsel %vm1387, %v3753, %v3749
        %v3755 = vlaneseq
        %v3756 = vshrl.u32 %v3755, 7
        %v3757 = vsub.s32 %v1377, %v3756
        %v3758 = vrot.slane %v3631, %v3757
        %v3759 = vlaneseq
        %v3760 = vshrl.u32 %v3759, 7
        %v3761 = vsub.s32 %v1382, %v3760
        %v3762 = vrot.slane %v3634, %v3761
        %v3763 = vsel %vm1387, %v3762, %v3758
        %v3764 = vlaneseq
        %v3765 = vshrl.u32 %v3764, 7
        %v3766 = vsub.s32 %v1377, %v3765
        %v3767 = vrot.slane %v3637, %v3766
        %v3768 = vlaneseq
        %v3769 = vshrl.u32 %v3768, 7
        %v3770 = vsub.s32 %v1382, %v3769
        %v3771 = vrot.slane %v3640, %v3770
        %v3772 = vsel %vm1387, %v3771, %v3767
        %v3773 = vlaneseq
        %v3774 = vshrl.u32 %v3773, 7
        %v3775 = vsub.s32 %v1377, %v3774
        %v3776 = vrot.slane %v3643, %v3775
        %v3777 = vlaneseq
        %v3778 = vshrl.u32 %v3777, 7
        %v3779 = vsub.s32 %v1382, %v3778
        %v3780 = vrot.slane %v3646, %v3779
        %v3781 = vsel %vm1387, %v3780, %v3776
        %v3782 = vlaneseq
        %v3783 = vshrl.u32 %v3782, 7
        %v3784 = vsub.s32 %v1377, %v3783
        %v3785 = vrot.slane %v3649, %v3784
        %v3786 = vlaneseq
        %v3787 = vshrl.u32 %v3786, 7
        %v3788 = vsub.s32 %v1382, %v3787
        %v3789 = vrot.slane %v3652, %v3788
        %v3790 = vsel %vm1387, %v3789, %v3785
        %v3791 = vlaneseq
        %v3792 = vshrl.u32 %v3791, 7
        %v3793 = vsub.s32 %v1377, %v3792
        %v3794 = vrot.slane %v3655, %v3793
        %v3795 = vlaneseq
        %v3796 = vshrl.u32 %v3795, 7
        %v3797 = vsub.s32 %v1382, %v3796
        %v3798 = vrot.slane %v3658, %v3797
        %v3799 = vsel %vm1387, %v3798, %v3794
        %v3800 = vlaneseq
        %v3801 = vshrl.u32 %v3800, 7
        %v3802 = vsub.s32 %v1377, %v3801
        %v3803 = vrot.slane %v3661, %v3802
        %v3804 = vlaneseq
        %v3805 = vshrl.u32 %v3804, 7
        %v3806 = vsub.s32 %v1382, %v3805
        %v3807 = vrot.slane %v3664, %v3806
        %v3808 = vsel %vm1387, %v3807, %v3803
        %v3809 = vsel %vm1524, %v3682, %v3673
        %v3810 = vsel %vm1526, %v3691, %v3809
        %v3811 = vsel %vm1528, %v3700, %v3810
        %v3812 = vsel %vm1530, %v3709, %v3811
        %v3813 = vsel %vm1532, %v3718, %v3812
        %v3814 = vsel %vm1534, %v3727, %v3813
        %v3815 = vsel %vm1536, %v3736, %v3814
        %v3816 = vsel %vm1524, %v3754, %v3745
        %v3817 = vsel %vm1526, %v3763, %v3816
        %v3818 = vsel %vm1528, %v3772, %v3817
        %v3819 = vsel %vm1530, %v3781, %v3818
        %v3820 = vsel %vm1532, %v3790, %v3819
        %v3821 = vsel %vm1534, %v3799, %v3820
        %v3822 = vsel %vm1536, %v3808, %v3821
        %v3825 = vsel %vm873, %v3815, 0.0
        %3826 = vadd.xlane.f32.xlu0 %v3825
        %v3827 = vpop.xlane.xlu0 %3826
        %v3828 = vsel %vm873, %v3822, 0.0
        %3829 = vadd.xlane.f32.xlu0 %v3828
        %v3830 = vpop.xlane.xlu0 %3829
        %v3833 = vlaneseq
        %v3834 = vshrl.u32 %v3833, 7
        %v3835 = vsub.s32 0, %v3834
        %v3836 = vrot.slane %v3827, %v3835
        %v3837 = vlaneseq
        %v3838 = vshrl.u32 %v3837, 7
        %v3839 = vsub.s32 1, %v3838
        %v3840 = vrot.slane %v3827, %v3839
        %v3841 = vlaneseq
        %v3842 = vshrl.u32 %v3841, 7
        %v3843 = vsub.s32 2, %v3842
        %v3844 = vrot.slane %v3827, %v3843
        %v3845 = vlaneseq
        %v3846 = vshrl.u32 %v3845, 7
        %v3847 = vsub.s32 3, %v3846
        %v3848 = vrot.slane %v3827, %v3847
        %v3849 = vlaneseq
        %v3850 = vshrl.u32 %v3849, 7
        %v3851 = vsub.s32 4, %v3850
        %v3852 = vrot.slane %v3827, %v3851
        %v3853 = vlaneseq
        %v3854 = vshrl.u32 %v3853, 7
        %v3855 = vsub.s32 5, %v3854
        %v3856 = vrot.slane %v3827, %v3855
        %v3857 = vlaneseq
        %v3858 = vshrl.u32 %v3857, 7
        %v3859 = vsub.s32 6, %v3858
        %v3860 = vrot.slane %v3827, %v3859
        %v3861 = vlaneseq
        %v3862 = vshrl.u32 %v3861, 7
        %v3863 = vsub.s32 7, %v3862
        %v3864 = vrot.slane %v3827, %v3863
        %v3865 = vlaneseq
        %v3866 = vshrl.u32 %v3865, 7
        %v3867 = vsub.s32 0, %v3866
        %v3868 = vrot.slane %v3830, %v3867
        %v3869 = vlaneseq
        %v3870 = vshrl.u32 %v3869, 7
        %v3871 = vsub.s32 1, %v3870
        %v3872 = vrot.slane %v3830, %v3871
        %v3873 = vlaneseq
        %v3874 = vshrl.u32 %v3873, 7
        %v3875 = vsub.s32 2, %v3874
        %v3876 = vrot.slane %v3830, %v3875
        %v3877 = vlaneseq
        %v3878 = vshrl.u32 %v3877, 7
        %v3879 = vsub.s32 3, %v3878
        %v3880 = vrot.slane %v3830, %v3879
        %v3881 = vlaneseq
        %v3882 = vshrl.u32 %v3881, 7
        %v3883 = vsub.s32 4, %v3882
        %v3884 = vrot.slane %v3830, %v3883
        %v3885 = vlaneseq
        %v3886 = vshrl.u32 %v3885, 7
        %v3887 = vsub.s32 5, %v3886
        %v3888 = vrot.slane %v3830, %v3887
        %v3889 = vlaneseq
        %v3890 = vshrl.u32 %v3889, 7
        %v3891 = vsub.s32 6, %v3890
        %v3892 = vrot.slane %v3830, %v3891
        %v3893 = vlaneseq
        %v3894 = vshrl.u32 %v3893, 7
        %v3895 = vsub.s32 7, %v3894
        %v3896 = vrot.slane %v3830, %v3895
        %v3913 = vrcp.pop %v3836
        %v3914 = vmul.f32 %v3474, %v3913
        %v3915 = vmul.f32 %v3476, %v3913
        %v3916 = vrcp.pop %v3840
        %v3917 = vmul.f32 %v3478, %v3916
        %v3918 = vmul.f32 %v3480, %v3916
        %v3919 = vrcp.pop %v3844
        %v3920 = vmul.f32 %v3482, %v3919
        %v3921 = vmul.f32 %v3484, %v3919
        %v3922 = vrcp.pop %v3848
        %v3923 = vmul.f32 %v3486, %v3922
        %v3924 = vmul.f32 %v3488, %v3922
        %v3925 = vrcp.pop %v3852
        %v3926 = vmul.f32 %v3490, %v3925
        %v3927 = vmul.f32 %v3492, %v3925
        %v3928 = vrcp.pop %v3856
        %v3929 = vmul.f32 %v3494, %v3928
        %v3930 = vmul.f32 %v3496, %v3928
        %v3931 = vrcp.pop %v3860
        %v3932 = vmul.f32 %v3498, %v3931
        %v3933 = vmul.f32 %v3500, %v3931
        %v3934 = vrcp.pop %v3864
        %v3935 = vmul.f32 %v3502, %v3934
        %v3936 = vmul.f32 %v3504, %v3934
        %v3937 = vrcp.pop %v3868
        %v3938 = vmul.f32 %v3506, %v3937
        %v3939 = vmul.f32 %v3508, %v3937
        %v3940 = vrcp.pop %v3872
        %v3941 = vmul.f32 %v3510, %v3940
        %v3942 = vmul.f32 %v3512, %v3940
        %v3943 = vrcp.pop %v3876
        %v3944 = vmul.f32 %v3514, %v3943
        %v3945 = vmul.f32 %v3516, %v3943
        %v3946 = vrcp.pop %v3880
        %v3947 = vmul.f32 %v3518, %v3946
        %v3948 = vmul.f32 %v3520, %v3946
        %v3949 = vrcp.pop %v3884
        %v3950 = vmul.f32 %v3522, %v3949
        %v3951 = vmul.f32 %v3524, %v3949
        %v3952 = vrcp.pop %v3888
        %v3953 = vmul.f32 %v3526, %v3952
        %v3954 = vmul.f32 %v3528, %v3952
        %v3955 = vrcp.pop %v3892
        %v3956 = vmul.f32 %v3530, %v3955
        %v3957 = vmul.f32 %v3532, %v3955
        %v3958 = vrcp.pop %v3896
        %v3959 = vmul.f32 %v3534, %v3958
        %v3960 = vmul.f32 %v3536, %v3958
        %v3961 = vmul.f32 %v3914, %v2163
        %v3962 = vmul.f32 %v3915, %v2167
        %v3963 = vmul.f32 %v3917, %v2174
        %v3964 = vmul.f32 %v3918, %v2178
        %v3965 = vmul.f32 %v3920, %v2185
        %v3966 = vmul.f32 %v3921, %v2189
        %v3967 = vmul.f32 %v3923, %v2196
        %v3968 = vmul.f32 %v3924, %v2200
        %v3969 = vmul.f32 %v3926, %v2207
        %v3970 = vmul.f32 %v3927, %v2211
        %v3971 = vmul.f32 %v3929, %v2218
        %v3972 = vmul.f32 %v3930, %v2222
        %v3973 = vmul.f32 %v3932, %v2229
        %v3974 = vmul.f32 %v3933, %v2233
        %v3975 = vmul.f32 %v3935, %v2240
        %v3976 = vmul.f32 %v3936, %v2244
        %v3977 = vmul.f32 %v3938, %v2251
        %v3978 = vmul.f32 %v3939, %v2255
        %v3979 = vmul.f32 %v3941, %v2262
        %v3980 = vmul.f32 %v3942, %v2266
        %v3981 = vmul.f32 %v3944, %v2273
        %v3982 = vmul.f32 %v3945, %v2277
        %v3983 = vmul.f32 %v3947, %v2284
        %v3984 = vmul.f32 %v3948, %v2288
        %v3985 = vmul.f32 %v3950, %v2295
        %v3986 = vmul.f32 %v3951, %v2299
        %v3987 = vmul.f32 %v3953, %v2306
        %v3988 = vmul.f32 %v3954, %v2310
        %v3989 = vmul.f32 %v3956, %v2317
        %v3990 = vmul.f32 %v3957, %v2321
        %v3991 = vmul.f32 %v3959, %v2328
        %v3992 = vmul.f32 %v3960, %v2332
        %3994 = vset.pattern.permute.xlu0 0
        %3995 = vperm.xlu0 %3994, %v3961
        %v3996 = vpop.permute.xlu0 %3995
        %3999 = vset.pattern.permute.xlu0 0
        %4000 = vperm.xlu0 %3999, %v3962
        %v4001 = vpop.permute.xlu0 %4000
        %4004 = vset.pattern.permute.xlu0 0
        %4005 = vperm.xlu0 %4004, %v3963
        %v4006 = vpop.permute.xlu0 %4005
        %4009 = vset.pattern.permute.xlu0 0
        %4010 = vperm.xlu0 %4009, %v3964
        %v4011 = vpop.permute.xlu0 %4010
        %4014 = vset.pattern.permute.xlu0 0
        %4015 = vperm.xlu0 %4014, %v3965
        %v4016 = vpop.permute.xlu0 %4015
        %4019 = vset.pattern.permute.xlu0 0
        %4020 = vperm.xlu0 %4019, %v3966
        %v4021 = vpop.permute.xlu0 %4020
        %4024 = vset.pattern.permute.xlu0 0
        %4025 = vperm.xlu0 %4024, %v3967
        %v4026 = vpop.permute.xlu0 %4025
        %4029 = vset.pattern.permute.xlu0 0
        %4030 = vperm.xlu0 %4029, %v3968
        %v4031 = vpop.permute.xlu0 %4030
        %4034 = vset.pattern.permute.xlu0 0
        %4035 = vperm.xlu0 %4034, %v3969
        %v4036 = vpop.permute.xlu0 %4035
        %4039 = vset.pattern.permute.xlu0 0
        %4040 = vperm.xlu0 %4039, %v3970
        %v4041 = vpop.permute.xlu0 %4040
        %4044 = vset.pattern.permute.xlu0 0
        %4045 = vperm.xlu0 %4044, %v3971
        %v4046 = vpop.permute.xlu0 %4045
        %4049 = vset.pattern.permute.xlu0 0
        %4050 = vperm.xlu0 %4049, %v3972
        %v4051 = vpop.permute.xlu0 %4050
        %4054 = vset.pattern.permute.xlu0 0
        %4055 = vperm.xlu0 %4054, %v3973
        %v4056 = vpop.permute.xlu0 %4055
        %4059 = vset.pattern.permute.xlu0 0
        %4060 = vperm.xlu0 %4059, %v3974
        %v4061 = vpop.permute.xlu0 %4060
        %4064 = vset.pattern.permute.xlu0 0
        %4065 = vperm.xlu0 %4064, %v3975
        %v4066 = vpop.permute.xlu0 %4065
        %4069 = vset.pattern.permute.xlu0 0
        %4070 = vperm.xlu0 %4069, %v3976
        %v4071 = vpop.permute.xlu0 %4070
        %4074 = vset.pattern.permute.xlu0 0
        %4075 = vperm.xlu0 %4074, %v3977
        %v4076 = vpop.permute.xlu0 %4075
        %4079 = vset.pattern.permute.xlu0 0
        %4080 = vperm.xlu0 %4079, %v3978
        %v4081 = vpop.permute.xlu0 %4080
        %4084 = vset.pattern.permute.xlu0 0
        %4085 = vperm.xlu0 %4084, %v3979
        %v4086 = vpop.permute.xlu0 %4085
        %4089 = vset.pattern.permute.xlu0 0
        %4090 = vperm.xlu0 %4089, %v3980
        %v4091 = vpop.permute.xlu0 %4090
        %4094 = vset.pattern.permute.xlu0 0
        %4095 = vperm.xlu0 %4094, %v3981
        %v4096 = vpop.permute.xlu0 %4095
        %4099 = vset.pattern.permute.xlu0 0
        %4100 = vperm.xlu0 %4099, %v3982
        %v4101 = vpop.permute.xlu0 %4100
        %4104 = vset.pattern.permute.xlu0 0
        %4105 = vperm.xlu0 %4104, %v3983
        %v4106 = vpop.permute.xlu0 %4105
        %4109 = vset.pattern.permute.xlu0 0
        %4110 = vperm.xlu0 %4109, %v3984
        %v4111 = vpop.permute.xlu0 %4110
        %4114 = vset.pattern.permute.xlu0 0
        %4115 = vperm.xlu0 %4114, %v3985
        %v4116 = vpop.permute.xlu0 %4115
        %4119 = vset.pattern.permute.xlu0 0
        %4120 = vperm.xlu0 %4119, %v3986
        %v4121 = vpop.permute.xlu0 %4120
        %4124 = vset.pattern.permute.xlu0 0
        %4125 = vperm.xlu0 %4124, %v3987
        %v4126 = vpop.permute.xlu0 %4125
        %4129 = vset.pattern.permute.xlu0 0
        %4130 = vperm.xlu0 %4129, %v3988
        %v4131 = vpop.permute.xlu0 %4130
        %4134 = vset.pattern.permute.xlu0 0
        %4135 = vperm.xlu0 %4134, %v3989
        %v4136 = vpop.permute.xlu0 %4135
        %4139 = vset.pattern.permute.xlu0 0
        %4140 = vperm.xlu0 %4139, %v3990
        %v4141 = vpop.permute.xlu0 %4140
        %4144 = vset.pattern.permute.xlu0 0
        %4145 = vperm.xlu0 %4144, %v3991
        %v4146 = vpop.permute.xlu0 %4145
        %4149 = vset.pattern.permute.xlu0 0
        %4150 = vperm.xlu0 %4149, %v3992
        %v4151 = vpop.permute.xlu0 %4150
        %v4153 = vmul.f32 %v3996, %v799
        %v4154 = vmul.f32 %v4001, %v800
        %v4155 = vmul.f32 %v4006, %v801
        %v4156 = vmul.f32 %v4011, %v802
        %v4157 = vmul.f32 %v4016, %v803
        %v4158 = vmul.f32 %v4021, %v804
        %v4159 = vmul.f32 %v4026, %v805
        %v4160 = vmul.f32 %v4031, %v806
        %v4161 = vmul.f32 %v4036, %v807
        %v4162 = vmul.f32 %v4041, %v808
        %v4163 = vmul.f32 %v4046, %v809
        %v4164 = vmul.f32 %v4051, %v810
        %v4165 = vmul.f32 %v4056, %v811
        %v4166 = vmul.f32 %v4061, %v812
        %v4167 = vmul.f32 %v4066, %v813
        %v4168 = vmul.f32 %v4071, %v814
        %v4169 = vmul.f32 %v4076, %v815
        %v4170 = vmul.f32 %v4081, %v816
        %v4171 = vmul.f32 %v4086, %v817
        %v4172 = vmul.f32 %v4091, %v818
        %v4173 = vmul.f32 %v4096, %v819
        %v4174 = vmul.f32 %v4101, %v820
        %v4175 = vmul.f32 %v4106, %v821
        %v4176 = vmul.f32 %v4111, %v822
        %v4177 = vmul.f32 %v4116, %v823
        %v4178 = vmul.f32 %v4121, %v824
        %v4179 = vmul.f32 %v4126, %v825
        %v4180 = vmul.f32 %v4131, %v826
        %v4181 = vmul.f32 %v4136, %v827
        %v4182 = vmul.f32 %v4141, %v828
        %v4183 = vmul.f32 %v4146, %v829
        %v4184 = vmul.f32 %v4151, %v830
        %vm4185 = vcmask 261248
        %v4186 = vsel %vm4185, %v4153, 0.0
        %v4187 = vsel %vm4185, %v4154, 0.0
        %v4188 = vadd.f32 %v4186, %v4187
        %v4189 = vrot.slane %v4188, 4
        %v4190 = vadd.f32 %v4188, %v4189
        %v4191 = vrot.slane %v4190, 2
        %v4192 = vadd.f32 %v4190, %v4191
        %v4193 = vrot.slane %v4192, 1
        %v4194 = vadd.f32 %v4192, %v4193
        %v4195 = vsel %vm4185, %v4155, 0.0
        %v4196 = vsel %vm4185, %v4156, 0.0
        %v4197 = vadd.f32 %v4195, %v4196
        %v4198 = vrot.slane %v4197, 4
        %v4199 = vadd.f32 %v4197, %v4198
        %v4200 = vrot.slane %v4199, 2
        %v4201 = vadd.f32 %v4199, %v4200
        %v4202 = vrot.slane %v4201, 1
        %v4203 = vadd.f32 %v4201, %v4202
        %v4204 = vsel %vm4185, %v4157, 0.0
        %v4205 = vsel %vm4185, %v4158, 0.0
        %v4206 = vadd.f32 %v4204, %v4205
        %v4207 = vrot.slane %v4206, 4
        %v4208 = vadd.f32 %v4206, %v4207
        %v4209 = vrot.slane %v4208, 2
        %v4210 = vadd.f32 %v4208, %v4209
        %v4211 = vrot.slane %v4210, 1
        %v4212 = vadd.f32 %v4210, %v4211
        %v4213 = vsel %vm4185, %v4159, 0.0
        %v4214 = vsel %vm4185, %v4160, 0.0
        %v4215 = vadd.f32 %v4213, %v4214
        %v4216 = vrot.slane %v4215, 4
        %v4217 = vadd.f32 %v4215, %v4216
        %v4218 = vrot.slane %v4217, 2
        %v4219 = vadd.f32 %v4217, %v4218
        %v4220 = vrot.slane %v4219, 1
        %v4221 = vadd.f32 %v4219, %v4220
        %v4222 = vsel %vm4185, %v4161, 0.0
        %v4223 = vsel %vm4185, %v4162, 0.0
        %v4224 = vadd.f32 %v4222, %v4223
        %v4225 = vrot.slane %v4224, 4
        %v4226 = vadd.f32 %v4224, %v4225
        %v4227 = vrot.slane %v4226, 2
        %v4228 = vadd.f32 %v4226, %v4227
        %v4229 = vrot.slane %v4228, 1
        %v4230 = vadd.f32 %v4228, %v4229
        %v4231 = vsel %vm4185, %v4163, 0.0
        %v4232 = vsel %vm4185, %v4164, 0.0
        %v4233 = vadd.f32 %v4231, %v4232
        %v4234 = vrot.slane %v4233, 4
        %v4235 = vadd.f32 %v4233, %v4234
        %v4236 = vrot.slane %v4235, 2
        %v4237 = vadd.f32 %v4235, %v4236
        %v4238 = vrot.slane %v4237, 1
        %v4239 = vadd.f32 %v4237, %v4238
        %v4240 = vsel %vm4185, %v4165, 0.0
        %v4241 = vsel %vm4185, %v4166, 0.0
        %v4242 = vadd.f32 %v4240, %v4241
        %v4243 = vrot.slane %v4242, 4
        %v4244 = vadd.f32 %v4242, %v4243
        %v4245 = vrot.slane %v4244, 2
        %v4246 = vadd.f32 %v4244, %v4245
        %v4247 = vrot.slane %v4246, 1
        %v4248 = vadd.f32 %v4246, %v4247
        %v4249 = vsel %vm4185, %v4167, 0.0
        %v4250 = vsel %vm4185, %v4168, 0.0
        %v4251 = vadd.f32 %v4249, %v4250
        %v4252 = vrot.slane %v4251, 4
        %v4253 = vadd.f32 %v4251, %v4252
        %v4254 = vrot.slane %v4253, 2
        %v4255 = vadd.f32 %v4253, %v4254
        %v4256 = vrot.slane %v4255, 1
        %v4257 = vadd.f32 %v4255, %v4256
        %v4258 = vsel %vm4185, %v4169, 0.0
        %v4259 = vsel %vm4185, %v4170, 0.0
        %v4260 = vadd.f32 %v4258, %v4259
        %v4261 = vrot.slane %v4260, 4
        %v4262 = vadd.f32 %v4260, %v4261
        %v4263 = vrot.slane %v4262, 2
        %v4264 = vadd.f32 %v4262, %v4263
        %v4265 = vrot.slane %v4264, 1
        %v4266 = vadd.f32 %v4264, %v4265
        %v4267 = vsel %vm4185, %v4171, 0.0
        %v4268 = vsel %vm4185, %v4172, 0.0
        %v4269 = vadd.f32 %v4267, %v4268
        %v4270 = vrot.slane %v4269, 4
        %v4271 = vadd.f32 %v4269, %v4270
        %v4272 = vrot.slane %v4271, 2
        %v4273 = vadd.f32 %v4271, %v4272
        %v4274 = vrot.slane %v4273, 1
        %v4275 = vadd.f32 %v4273, %v4274
        %v4276 = vsel %vm4185, %v4173, 0.0
        %v4277 = vsel %vm4185, %v4174, 0.0
        %v4278 = vadd.f32 %v4276, %v4277
        %v4279 = vrot.slane %v4278, 4
        %v4280 = vadd.f32 %v4278, %v4279
        %v4281 = vrot.slane %v4280, 2
        %v4282 = vadd.f32 %v4280, %v4281
        %v4283 = vrot.slane %v4282, 1
        %v4284 = vadd.f32 %v4282, %v4283
        %v4285 = vsel %vm4185, %v4175, 0.0
        %v4286 = vsel %vm4185, %v4176, 0.0
        %v4287 = vadd.f32 %v4285, %v4286
        %v4288 = vrot.slane %v4287, 4
        %v4289 = vadd.f32 %v4287, %v4288
        %v4290 = vrot.slane %v4289, 2
        %v4291 = vadd.f32 %v4289, %v4290
        %v4292 = vrot.slane %v4291, 1
        %v4293 = vadd.f32 %v4291, %v4292
        %v4294 = vsel %vm4185, %v4177, 0.0
        %v4295 = vsel %vm4185, %v4178, 0.0
        %v4296 = vadd.f32 %v4294, %v4295
        %v4297 = vrot.slane %v4296, 4
        %v4298 = vadd.f32 %v4296, %v4297
        %v4299 = vrot.slane %v4298, 2
        %v4300 = vadd.f32 %v4298, %v4299
        %v4301 = vrot.slane %v4300, 1
        %v4302 = vadd.f32 %v4300, %v4301
        %v4303 = vsel %vm4185, %v4179, 0.0
        %v4304 = vsel %vm4185, %v4180, 0.0
        %v4305 = vadd.f32 %v4303, %v4304
        %v4306 = vrot.slane %v4305, 4
        %v4307 = vadd.f32 %v4305, %v4306
        %v4308 = vrot.slane %v4307, 2
        %v4309 = vadd.f32 %v4307, %v4308
        %v4310 = vrot.slane %v4309, 1
        %v4311 = vadd.f32 %v4309, %v4310
        %v4312 = vsel %vm4185, %v4181, 0.0
        %v4313 = vsel %vm4185, %v4182, 0.0
        %v4314 = vadd.f32 %v4312, %v4313
        %v4315 = vrot.slane %v4314, 4
        %v4316 = vadd.f32 %v4314, %v4315
        %v4317 = vrot.slane %v4316, 2
        %v4318 = vadd.f32 %v4316, %v4317
        %v4319 = vrot.slane %v4318, 1
        %v4320 = vadd.f32 %v4318, %v4319
        %v4321 = vsel %vm4185, %v4183, 0.0
        %v4322 = vsel %vm4185, %v4184, 0.0
        %v4323 = vadd.f32 %v4321, %v4322
        %v4324 = vrot.slane %v4323, 4
        %v4325 = vadd.f32 %v4323, %v4324
        %v4326 = vrot.slane %v4325, 2
        %v4327 = vadd.f32 %v4325, %v4326
        %v4328 = vrot.slane %v4327, 1
        %v4329 = vadd.f32 %v4327, %v4328
        %v4346 = vsel %vm1524, %v2606, %v2597
        %v4347 = vsel %vm1526, %v2615, %v4346
        %v4348 = vsel %vm1528, %v2624, %v4347
        %v4349 = vsel %vm1530, %v2633, %v4348
        %v4350 = vsel %vm1532, %v2642, %v4349
        %v4351 = vsel %vm1534, %v2651, %v4350
        %v4352 = vsel %vm1536, %v2660, %v4351
        %v4353 = vsel %vm1524, %v2678, %v2669
        %v4354 = vsel %vm1526, %v2687, %v4353
        %v4355 = vsel %vm1528, %v2696, %v4354
        %v4356 = vsel %vm1530, %v2705, %v4355
        %v4357 = vsel %vm1532, %v2714, %v4356
        %v4358 = vsel %vm1534, %v2723, %v4357
        %v4359 = vsel %vm1536, %v2732, %v4358
        %v4378 = vsel %vm1524, %v4203, %v4194
        %v4379 = vsel %vm1526, %v4212, %v4378
        %v4380 = vsel %vm1528, %v4221, %v4379
        %v4381 = vsel %vm1530, %v4230, %v4380
        %v4382 = vsel %vm1532, %v4239, %v4381
        %v4383 = vsel %vm1534, %v4248, %v4382
        %v4384 = vsel %vm1536, %v4257, %v4383
        %v4385 = vsel %vm1524, %v4275, %v4266
        %v4386 = vsel %vm1526, %v4284, %v4385
        %v4387 = vsel %vm1528, %v4293, %v4386
        %v4388 = vsel %vm1530, %v4302, %v4387
        %v4389 = vsel %vm1532, %v4311, %v4388
        %v4390 = vsel %vm1534, %v4320, %v4389
        %v4391 = vsel %vm1536, %v4329, %v4390
        %v4394 = vsel %vm873, %v4352, %v4384
        %v4395 = vsel %vm873, %v4359, %v4391
        %v4396 = vpack.c.bf16 %v4395, %v4394
        %v4397 = vld [vmem:[%s8] sm:$0xf]
        %v4398 = vld [vmem:[%s8 + $0x4] sm:$0xf]
        %v4399 = vld [vmem:[%s8 + $0x8] sm:$0xf]
        %v4400 = vld [vmem:[%s8 + $0xc] sm:$0xf]
        %v4401 = vld [vmem:[%s9] sm:$0x1]
        %v4403 = vlaneseq
        %v4404 = vshrl.u32 %v4403, 7
        %v4405 = vsub.s32 0, %v4404
        %v4406 = vrot.slane %v4401, %v4405
        %v4412 = vunpack.c.l.b16 %v4397
        %v4413 = vunpack.c.l.b16 %v4398
        %v4414 = vunpack.c.l.b16 %v4399
        %v4415 = vunpack.c.l.b16 %v4400
        %v4416 = vpack.c.b16 %v4413, %v4412
        %v4417 = vpack.c.b16 %v4415, %v4414
        %v4421 = vsel %vm452, %v4396, 0
        %4423 = vmatprep.subr.bf16.mxu0 0
        %4424 = vmatpush1.bf16.msra.mxu0 0
        %4425 = vmatprep.subr.bf16.mxu0 0
        %4426 = vmatpush1.bf16.msra.mxu0 0
        %4427 = vmatprep.subr.bf16.mxu0 0
        %4428 = vmatpush1.bf16.msra.mxu0 0
        %4429 = vmatprep.subr.bf16.mxu0 0
        %4430 = vmatpush1.bf16.msra.mxu0 0
        %4431 = vmatprep.subr.bf16.mxu0 0
        %4432 = vmatpush1.bf16.msra.mxu0 0
        %4433 = vmatprep.subr.bf16.mxu0 0
        %4434 = vmatpush1.bf16.msra.mxu0 0
        %4435 = vmatprep.subr.bf16.mxu0 0
        %4436 = vmatpush1.bf16.msra.mxu0 %v4417
        %4437 = vmatprep.subr.bf16.mxu0 0
        %4438 = vmatpush1.bf16.msra.mxu0 %v4416
        %4439 = vmatprep.subr.bf16.mxu0 0
        %4440 = vmatpush2.bf16.msra.mxu0 0
        %4441 = vmatprep.subr.bf16.mxu0 0
        %4442 = vmatpush2.bf16.msra.mxu0 0
        %4443 = vmatprep.subr.bf16.mxu0 0
        %4444 = vmatpush2.bf16.msra.mxu0 0
        %4445 = vmatprep.subr.bf16.mxu0 0
        %4446 = vmatpush2.bf16.msra.mxu0 0
        %4447 = vmatprep.subr.bf16.mxu0 0
        %4448 = vmatpush2.bf16.msra.mxu0 0
        %4449 = vmatprep.subr.bf16.mxu0 0
        %4450 = vmatpush2.bf16.msra.mxu0 0
        %4451 = vmatprep.subr.bf16.mxu0 0
        %4452 = vmatpush2.bf16.msra.mxu0 0
        %4453 = vmatprep.subr.bf16.mxu0 0
        %4454 = vmatpush2.bf16.msra.mxu0 0
        %4455 = vmatprep.mubr.bf16.mxu0 0
        %4456 = vmatmul.mubr.bf16.gmra.mxu0 %v4421
        %v4457 = vpop.f32.mrf.mxu0
        %v4458 = vadd.f32 %v4406, %v4457
        %v4459 = vpop.f32.mrf.mxu0
        %v4460 = vpop.f32.mrf.mxu0
        %v4461 = vadd.f32 %v4406, %v4460
        %v4462 = vpop.f32.mrf.mxu0
        %4463 = vdwg.mxu0
        %v4464 = vmax.f32 %v4458, 0.0
        %v4465 = vmax.f32 %v4461, 0.0
        %4466 = vst.msk [vmem:[%s382] sm:$0xff] %vm452, %v4464
        %4467 = vst.msk [vmem:[%s382 + $0x8] sm:$0xff] %vm452, %v4465
        %s4468 = sand.u32 %s257, 1
        %s4469 = scalar_lea.sflag [#allocation3], %s4468
        %s4470 = sand.u32 %s257, 1
        %s4471 = smul.addr %s4470, 16
        %s4472 = scalar_lea.vmem [#allocation2], %s4471
        // Predicated region
        $region61: #{tpu_custom_call.1} parent=59 // pred_check
          %p4473 = pneg %p267
        $region62: #{tpu_custom_call.1} parent=59 // pred_check_branch
          %4475 = sbr.rel (%p4473) target = $region64
        $region63: #{tpu_custom_call.1} parent=59 // pred_region
          %s4477 = ssub.s32 256, 256
          %4478 = vsyncadd %s4469, %s4477
          %s4479 = smul.addr %s24, 2
          %s4480 = smul.addr %s4479, 128
          %s4481 = scalar_lea.hbm %s10, %s4480
          %s4482 = sshll.u32 %s4472, 4
          %s4483 = int_to_ptr.vmem [resolvable:$true] %s4482
          %4488 = dma.vmem_to_hbm [thread:$0]  %s4483, 256, %s4481, %s4469, 128, 128, 8
        $region64: #{tpu_custom_call.1} parent=59 // pred_fallthru
          _
      $region60: #{tpu_custom_call.1} parent=5 // pred_fallthru
        _
      %p4489 = scmp.le.s32.totalorder 2, %s19
      // Predicated region
      $region65: #{tpu_custom_call.1} parent=5 // pred_check
        %p4490 = pneg %p4489
      $region66: #{tpu_custom_call.1} parent=5 // pred_check_branch
        %4492 = sbr.rel (%p4490) target = $region68
      $region67: #{tpu_custom_call.1} parent=5 // pred_region
        %s4493 = ssub.s32 %s19, 2
        // Predicated region
        $region69: #{tpu_custom_call.1} parent=67 // pred_check
          %p4494 = pneg %p273
        $region70: #{tpu_custom_call.1} parent=67 // pred_check_branch
          %4496 = sbr.rel (%p4494) target = $region72
        $region71: #{tpu_custom_call.1} parent=67 // pred_region
          %s4497 = sand.u32 %s258, 1
          %s4498 = scalar_lea.sflag [#allocation3], %s4497
          %s4499 = sand.u32 %s258, 1
          %s4500 = smul.addr %s4499, 16
          %s4501 = scalar_lea.vmem [#allocation2], %s4500
          %4502 = dma.done %s4498, 256
        $region72: #{tpu_custom_call.1} parent=67 // pred_fallthru
          _
      $region68: #{tpu_custom_call.1} parent=5 // pred_fallthru
        _
    $region6: #{tpu_custom_call.1} parent=1 // loop_footer
      %s23 = sadd.s32 1, %s19
    $region7: #{tpu_custom_call.1} parent=1 // loop_footer_branch
      %18 = sbr.rel target = $region3
    $region8: #{tpu_custom_call.1} parent=1 // loop_exit
      _
    %4503 = vsyncpa [#allocation3], 1
    %s4504 = scalar_lea.sflag [#allocation3], 1
    %4505 = vsyncpa %s4504, 1

</llo_original>
